<compile_context>
chip_gen: v5e
topology: v5e:2x2
jax: 0.10.0
libtpu: 0.0.40
codegen_flags: <defaults>
</compile_context>

<pallas_src>
import jax
import jax.numpy as jnp
from jax import lax
from jax.experimental import pallas as pl
from jax.experimental.pallas import tpu as pltpu

_VMEM_LIMIT = 32 * 1024 * 1024


def _round_up(x, m):
    return ((x + m - 1) // m) * m


# ----------------------------------------------------------------------------
# GRU sequence kernel.  Grid axis 0 = direction (encoder runs fwd+bwd fused in
# one pallas_call; decoder uses D=1).  PyTorch gate order: r, z, n.
# ----------------------------------------------------------------------------
def _gru_kernel(tmax_ref, x_ref, h0_ref, wih_ref, whh_ref, bgi_ref, bhn_ref,
                len_ref, out_ref, hT_ref, h_scr, gir_scr, giz_scr, gin_scr):
    # x_ref:   [T, B, E] bf16     h0_ref:  [B, H]    f32
    # wih_ref: [3, E, H] bf16     whh_ref: [3, H, H] bf16
    # bgi_ref: [3, 1, H] f32      (b_ih + b_hh for r,z ; b_ih only for n)
    # bhn_ref: [1, H]    f32      (b_hh of n, applied inside r*(...))
    # len_ref: [B, 1]    i32      tmax_ref: [1] i32 in SMEM (max valid length)
    # out_ref: [T, B, H] f32      hT_ref:  [B, H] f32
    T, B, E = x_ref.shape
    H = h0_ref.shape[-1]

    # ---- hoisted input projection: one [T*B,E]x[E,H] bf16 matmul per gate ----
    x2 = x_ref[...].reshape(T * B, E)
    bgi = bgi_ref[...]
    gir_scr[...] = (jnp.dot(x2, wih_ref[0], preferred_element_type=jnp.float32)
                    + bgi[0]).reshape(T, B, H)
    giz_scr[...] = (jnp.dot(x2, wih_ref[1], preferred_element_type=jnp.float32)
                    + bgi[1]).reshape(T, B, H)
    gin_scr[...] = (jnp.dot(x2, wih_ref[2], preferred_element_type=jnp.float32)
                    + bgi[2]).reshape(T, B, H)

    # Recurrence stops at max(lengths) <= T: pre-zero output so the trailing
    # padded steps look like pad_packed_sequence output.
    out_ref[...] = jnp.zeros_like(out_ref)
    h_scr[...] = h0_ref[...]

    whh_r = whh_ref[0]
    whh_z = whh_ref[1]
    whh_n = whh_ref[2]
    b_hn = bhn_ref[...]
    lens = len_ref[...]                                          # [B, 1] i32
    tmax = tmax_ref[0]

    @pl.loop(0, tmax)
    def _(t):
        h = h_scr[...]
        hb = h.astype(jnp.bfloat16)
        gh_r = jnp.dot(hb, whh_r, preferred_element_type=jnp.float32)
        gh_z = jnp.dot(hb, whh_z, preferred_element_type=jnp.float32)
        gh_n = jnp.dot(hb, whh_n, preferred_element_type=jnp.float32) + b_hn
        r = jax.nn.sigmoid(gir_scr[t] + gh_r)
        z = jax.nn.sigmoid(giz_scr[t] + gh_z)
        n = jnp.tanh(gin_scr[t] + r * gh_n)
        h_new = (1.0 - z) * n + z * h
        valid = lens > t                                         # [B, 1]
        h_scr[...] = jnp.where(valid, h_new, h)
        out_ref[t] = jnp.where(valid, h_new, 0.0)

    hT_ref[...] = h_scr[...]


def gru_stack(x, h0, w_ih, w_hh, b_ih, b_hh, lengths):
    """Run D independent GRU directions in one pallas_call.

    x: [D,T,B,E] (time-major), h0: [D,B,H], w_ih: [D,3,E,H],
    w_hh: [D,3,H,H], b_ih/b_hh: [D,3,H], lengths: [D,B] int.
    Returns out [D,T,B,H] (zeros at padded steps) and hT [D,B,H].
    """
    D, T, B, E = x.shape
    H = h0.shape[-1]
    Bp = _round_up(B, 8)                      # fill the sublane dimension
    if Bp != B:
        x = jnp.pad(x, ((0, 0), (0, 0), (0, Bp - B), (0, 0)))
        h0 = jnp.pad(h0, ((0, 0), (0, Bp - B), (0, 0)))
        lengths_p = jnp.pad(lengths, ((0, 0), (0, Bp - B)))
    else:
        lengths_p = lengths

    # Fold biases: r,z get b_ih+b_hh; n gets b_ih (b_hh_n stays inside r*(...)).
    b_gi = jnp.stack([b_ih[:, 0] + b_hh[:, 0],
                      b_ih[:, 1] + b_hh[:, 1],
                      b_ih[:, 2]], axis=1).reshape(D, 3, 1, H).astype(jnp.float32)
    b_hn = b_hh[:, 2].reshape(D, 1, H).astype(jnp.float32)
    tmax = jnp.minimum(jnp.max(lengths), T).astype(jnp.int32).reshape(1)
    lens3 = lengths_p.astype(jnp.int32).reshape(D, Bp, 1)

    out, h_T = pl.pallas_call(
        _gru_kernel,
        grid=(D,),
        out_shape=(jax.ShapeDtypeStruct((D, T, Bp, H), jnp.float32),
                   jax.ShapeDtypeStruct((D, Bp, H), jnp.float32)),
        in_specs=[
            pl.BlockSpec(memory_space=pltpu.MemorySpace.SMEM),          # tmax
            pl.BlockSpec((None, T, Bp, E), lambda d: (d, 0, 0, 0)),     # x
            pl.BlockSpec((None, Bp, H), lambda d: (d, 0, 0)),           # h0
            pl.BlockSpec((None, 3, E, H), lambda d: (d, 0, 0, 0)),      # w_ih
            pl.BlockSpec((None, 3, H, H), lambda d: (d, 0, 0, 0)),      # w_hh
            pl.BlockSpec((None, 3, 1, H), lambda d: (d, 0, 0, 0)),      # b_gi
            pl.BlockSpec((None, 1, H), lambda d: (d, 0, 0)),            # b_hn
            pl.BlockSpec((None, Bp, 1), lambda d: (d, 0, 0)),           # lengths
        ],
        out_specs=(pl.BlockSpec((None, T, Bp, H), lambda d: (d, 0, 0, 0)),
                   pl.BlockSpec((None, Bp, H), lambda d: (d, 0, 0))),
        scratch_shapes=[pltpu.VMEM((Bp, H), jnp.float32),
                        pltpu.VMEM((T, Bp, H), jnp.float32),
                        pltpu.VMEM((T, Bp, H), jnp.float32),
                        pltpu.VMEM((T, Bp, H), jnp.float32)],
        compiler_params=pltpu.CompilerParams(
            dimension_semantics=("parallel",),
            vmem_limit_bytes=_VMEM_LIMIT),
    )(tmax, x.astype(jnp.bfloat16), h0.astype(jnp.float32),
      w_ih.astype(jnp.bfloat16), w_hh.astype(jnp.bfloat16),
      b_gi, b_hn, lens3)
    return out[:, :, :B], h_T[:, :B]


# ----------------------------------------------------------------------------
# Attention + output projection + log_softmax kernel.  Grid over batch
# ("parallel" -> shardable across TensorCores); lengths live in SMEM;
# linear_in is applied inside the kernel (no extra HBM round trip).
# ----------------------------------------------------------------------------
def _attn_out_kernel(xlen_ref, ylen_ref, dec_ref, ctx_ref,
                     win_ref, wctx_ref, wdec_ref, bout_ref, wv_ref, bv_ref,
                     logp_ref, attn_ref):
    # dec_ref:   [Ty, Hd]   bf16   decoder GRU outputs (one batch row)
    # ctx_ref:   [Tx, 2He]  bf16   encoder outputs
    # win_ref:   [2He, Hd]  bf16   attention linear_in
    # wctx_ref:  [2He, Hd]  bf16 ; wdec_ref: [Hd, Hd] bf16 ; bout_ref: [1, Hd] f32
    # wv_ref:    [Hd, Vp]   bf16 ; bv_ref: [1, Vp] f32 (padded cols biased -1e9)
    b = pl.program_id(0)
    xl = xlen_ref[b]
    yl = ylen_ref[b]

    dec = dec_ref[...]
    ctx = ctx_ref[...]
    # linear_in applied per batch row (same FLOPs as host-side einsum, no DMA).
    ctx_in = jnp.dot(ctx, win_ref[...],
                     preferred_element_type=jnp.float32)             # [Tx, Hd]
    scores = jnp.einsum('yd,xd->yx', dec, ctx_in.astype(jnp.bfloat16),
                        preferred_element_type=jnp.float32)          # [Ty, Tx]
    Ty, Tx = scores.shape
    tx = lax.broadcasted_iota(jnp.int32, (Ty, Tx), 1)
    ty = lax.broadcasted_iota(jnp.int32, (Ty, Tx), 0)
    scores = jnp.where((tx < xl) & (ty < yl), scores, -1e6)          # masked_fill

    # softmax (f32) with EUP reciprocal + one Newton refinement (no vdiv)
    m = jnp.max(scores, axis=-1, keepdims=True)
    e = jnp.exp(scores - m)
    s = jnp.sum(e, axis=-1, keepdims=True)
    r = pl.reciprocal(s, approx=True)
    r = r * (2.0 - s * r)
    attn = e * r
    attn_ref[...] = attn.astype(attn_ref.dtype)

    ctx_vec = jnp.dot(attn.astype(jnp.bfloat16), ctx,
                      preferred_element_type=jnp.float32)            # [Ty, 2He]
    pre = (jnp.dot(ctx_vec.astype(jnp.bfloat16), wctx_ref[...],
                   preferred_element_type=jnp.float32)
           + jnp.dot(dec, wdec_ref[...], preferred_element_type=jnp.float32)
           + bout_ref[...])
    out = jnp.tanh(pre)                                              # [Ty, Hd]

    logits = jnp.dot(out.astype(jnp.bfloat16), wv_ref[...],
                     preferred_element_type=jnp.float32) + bv_ref[...]
    m2 = jnp.max(logits, axis=-1, keepdims=True)
    lse = jnp.log(jnp.sum(jnp.exp(logits - m2), axis=-1, keepdims=True)) + m2
    logp_ref[...] = (logits - lse).astype(logp_ref.dtype)            # log_softmax


def attention_output(dec_out, ctx, x_lengths, y_lengths, params):
    B, Ty, Hd = dec_out.shape
    Tx, C2 = ctx.shape[1], ctx.shape[2]
    V = params['out_w'].shape[1]
    Vp = _round_up(V, 128)                       # lane-dense vocab projection

    wv = jnp.pad(params['out_w'], ((0, 0), (0, Vp - V)))
    bv = jnp.pad(params['out_b'], ((0, Vp - V),), constant_values=-1e9)

    logp, attn = pl.pallas_call(
        _attn_out_kernel,
        grid=(B,),
        out_shape=(jax.ShapeDtypeStruct((B, Ty, Vp), jnp.float32),
                   jax.ShapeDtypeStruct((B, Ty, Tx), jnp.float32)),
        in_specs=[
            pl.BlockSpec(memory_space=pltpu.MemorySpace.SMEM),       # xlen
            pl.BlockSpec(memory_space=pltpu.MemorySpace.SMEM),       # ylen
            pl.BlockSpec((None, Ty, Hd), lambda b: (b, 0, 0)),       # dec_out
            pl.BlockSpec((None, Tx, C2), lambda b: (b, 0, 0)),       # ctx
            pl.BlockSpec(memory_space=pltpu.MemorySpace.VMEM),       # w_in
            pl.BlockSpec(memory_space=pltpu.MemorySpace.VMEM),       # w_ctx
            pl.BlockSpec(memory_space=pltpu.MemorySpace.VMEM),       # w_dec
            pl.BlockSpec(memory_space=pltpu.MemorySpace.VMEM),       # b_out
            pl.BlockSpec(memory_space=pltpu.MemorySpace.VMEM),       # w_vocab
            pl.BlockSpec(memory_space=pltpu.MemorySpace.VMEM),       # b_vocab
        ],
        out_specs=(pl.BlockSpec((None, Ty, Vp), lambda b: (b, 0, 0)),
                   pl.BlockSpec((None, Ty, Tx), lambda b: (b, 0, 0))),
        compiler_params=pltpu.CompilerParams(
            dimension_semantics=("parallel",),
            vmem_limit_bytes=_VMEM_LIMIT),
    )(x_lengths.astype(jnp.int32), y_lengths.astype(jnp.int32),
      dec_out.astype(jnp.bfloat16), ctx.astype(jnp.bfloat16),
      params['attn_win'].astype(jnp.bfloat16),
      params['attn_w_ctx'].astype(jnp.bfloat16),
      params['attn_w_dec'].astype(jnp.bfloat16),
      params['attn_bout'].reshape(1, Hd).astype(jnp.float32),
      wv.astype(jnp.bfloat16), bv.reshape(1, Vp).astype(jnp.float32))
    return logp[:, :, :V], attn


# ----------------------------------------------------------------------------
# Glue (plain JAX): embedding gathers (directly into time-major layout),
# per-sequence reversal for the backward direction, tiny encoder fc.
# ----------------------------------------------------------------------------
def reverse_padded(x, lengths):
    """Reverse each sequence within its valid length (pads stay in place)."""
    T = x.shape[1]
    idx = jnp.arange(T)[None, :]
    rev = jnp.where(idx < lengths[:, None], lengths[:, None] - 1 - idx, idx)
    return jnp.take_along_axis(x, rev[:, :, None], axis=1)


def encoder_forward(params, x, x_lengths):
    B, Tx = x.shape
    He = params['enc_whh_f'].shape[-1]
    # embedding gather directly time-major: [Tx, B, E]
    emb_f = jnp.take(params['enc_embed'], x.T, axis=0)
    idx = jnp.arange(Tx)[None, :]
    rev = jnp.where(idx < x_lengths[:, None], x_lengths[:, None] - 1 - idx, idx)
    x_rev = jnp.take_along_axis(x, rev, axis=1)
    emb_b = jnp.take(params['enc_embed'], x_rev.T, axis=0)

    x_stack = jnp.stack([emb_f, emb_b], axis=0)                    # [2,Tx,B,E]
    h0 = jnp.zeros((2, B, He), jnp.float32)
    w_ih = jnp.stack([params['enc_wih_f'], params['enc_wih_b']], 0)
    w_hh = jnp.stack([params['enc_whh_f'], params['enc_whh_b']], 0)
    b_ih = jnp.stack([params['enc_bih_f'], params['enc_bih_b']], 0)
    b_hh = jnp.stack([params['enc_bhh_f'], params['enc_bhh_b']], 0)
    lens = jnp.stack([x_lengths, x_lengths], 0)

    out, h_T = gru_stack(x_stack, h0, w_ih, w_hh, b_ih, b_hh, lens)
    out_f = jnp.transpose(out[0], (1, 0, 2))                       # [B,Tx,He]
    out_b = reverse_padded(jnp.transpose(out[1], (1, 0, 2)), x_lengths)

    encoder_out = jnp.concatenate([out_f, out_b], axis=-1)         # [B,Tx,2He]
    hcat = jnp.concatenate([h_T[0], h_T[1]], axis=-1)              # [B,2He]
    hid = jnp.tanh(hcat @ params['enc_fc_w'] + params['enc_fc_b']) # [B,Hd]
    return encoder_out, hid


def decoder_forward(params, ctx, ctx_lengths, y, y_lengths, hid):
    emb = jnp.take(params['dec_embed'], y.T, axis=0)               # [Ty,B,E]
    out, h_T = gru_stack(emb[None], hid[None],
                         params['dec_wih'][None], params['dec_whh'][None],
                         params['dec_bih'][None], params['dec_bhh'][None],
                         y_lengths[None])
    dec_out = jnp.transpose(out[0], (1, 0, 2))                     # [B,Ty,Hd]
    logp, attn = attention_output(dec_out, ctx, ctx_lengths, y_lengths, params)
    return logp, h_T[0], attn


def seq2seq_forward(params, x, x_lengths, y, y_lengths):
    encoder_out, hid = encoder_forward(params, x, x_lengths)
    output, hid, attn = decoder_forward(params, encoder_out, x_lengths,
                                        y, y_lengths, hid)
    return output, attn


# ----------------------------------------------------------------------------
# Deterministic parameter init (gate-split layout: [3, in, out] with PyTorch
# gate order r, z, n; linear_out split into ctx / dec blocks).
# ----------------------------------------------------------------------------
def init_params(key, Vsrc, Vtgt, E, He, Hd):
    ks = jax.random.split(key, 21)
    s = 0.1

    def nrm(k, shape):
        return (s * jax.random.normal(k, shape)).astype(jnp.float32)

    return {
        # encoder
        'enc_embed': nrm(ks[0], (Vsrc, E)),
        'enc_wih_f': nrm(ks[1], (3, E, He)),
        'enc_whh_f': nrm(ks[2], (3, He, He)),
        'enc_bih_f': nrm(ks[3], (3, He)),
        'enc_bhh_f': nrm(ks[4], (3, He)),
        'enc_wih_b': nrm(ks[5], (3, E, He)),
        'enc_whh_b': nrm(ks[6], (3, He, He)),
        'enc_bih_b': nrm(ks[7], (3, He)),
        'enc_bhh_b': nrm(ks[8], (3, He)),
        'enc_fc_w': nrm(ks[9], (2 * He, Hd)),
        'enc_fc_b': nrm(ks[10], (Hd,)),
        # decoder
        'dec_embed': nrm(ks[11], (Vtgt, E)),
        'dec_wih': nrm(ks[12], (3, E, Hd)),
        'dec_whh': nrm(ks[13], (3, Hd, Hd)),
        'dec_bih': nrm(ks[14], (3, Hd)),
        'dec_bhh': nrm(ks[15], (3, Hd)),
        # attention
        'attn_win': nrm(ks[16], (2 * He, Hd)),
        'attn_w_ctx': nrm(ks[17], (2 * He, Hd)),
        'attn_w_dec': nrm(ks[18], (Hd, Hd)),
        'attn_bout': nrm(ks[19], (Hd,)),
        # output projection
        'out_w': nrm(ks[20], (Hd, Vtgt)),
        'out_b': jnp.zeros((Vtgt,), jnp.float32),
    }


if __name__ == "__main__":
    B, Tx, Ty = 2, 8, 8
    E, He, Hd = 16, 16, 32
    Vsrc, Vtgt = 50, 50

    key = jax.random.PRNGKey(0)
    kx, ky, kp = jax.random.split(key, 3)
    x = jax.random.randint(kx, (B, Tx), 0, Vsrc, dtype=jnp.int32)
    y = jax.random.randint(ky, (B, Ty), 0, Vtgt, dtype=jnp.int32)
    x_lengths = jnp.array([Tx, Tx - 2], dtype=jnp.int32)
    y_lengths = jnp.array([Ty, Ty - 3], dtype=jnp.int32)

    params = init_params(kp, Vsrc, Vtgt, E, He, Hd)

    fwd = jax.jit(seq2seq_forward)
    output, attn = fwd(params, x, x_lengths, y, y_lengths)
    jax.block_until_ready((output, attn))

    assert output.shape == (B, Ty, Vtgt)
    assert attn.shape == (B, Ty, Tx)
    assert bool(jnp.all(jnp.isfinite(output)))
    assert bool(jnp.all(jnp.isfinite(attn)))
    # attention rows sum to 1 over encoder positions
    assert bool(jnp.allclose(jnp.sum(attn, axis=-1), 1.0, atol=1e-3))
    print("KERNEL_OK")
</pallas_src>

<mosaic_0001>
module attributes {stable_mosaic.version = 11 : i64} {
  func.func @_gru_kernel(%arg0: i32, %arg1: memref<1xi32, #tpu.memory_space<smem>>, %arg2: memref<1x8x8x16xbf16, #tpu.memory_space<vmem>>, %arg3: memref<1x8x16xf32, #tpu.memory_space<vmem>>, %arg4: memref<1x3x16x16xbf16, #tpu.memory_space<vmem>>, %arg5: memref<1x3x16x16xbf16, #tpu.memory_space<vmem>>, %arg6: memref<1x3x1x16xf32, #tpu.memory_space<vmem>>, %arg7: memref<1x1x16xf32, #tpu.memory_space<vmem>>, %arg8: memref<1x8x1xi32, #tpu.memory_space<vmem>>, %arg9: memref<1x8x8x16xf32, #tpu.memory_space<vmem>>, %arg10: memref<1x8x16xf32, #tpu.memory_space<vmem>>, %arg11: memref<8x16xf32, #tpu.memory_space<vmem>>, %arg12: memref<8x8x16xf32, #tpu.memory_space<vmem>>, %arg13: memref<8x8x16xf32, #tpu.memory_space<vmem>>, %arg14: memref<8x8x16xf32, #tpu.memory_space<vmem>>) attributes {dimension_semantics = [#tpu.dimension_semantics<parallel>], iteration_bounds = array<i64: 2>, scalar_prefetch = 0 : i64, scratch_operands = 4 : i64, tpu.core_type = #tpu.core_type<tc>, window_params = [{transform_indices = @transform_0, window_bounds = array<i64: 1>}, {transform_indices = @transform_1, window_bounds = array<i64: 1, 8, 8, 16>}, {transform_indices = @transform_2, window_bounds = array<i64: 1, 8, 16>}, {transform_indices = @transform_3, window_bounds = array<i64: 1, 3, 16, 16>}, {transform_indices = @transform_4, window_bounds = array<i64: 1, 3, 16, 16>}, {transform_indices = @transform_5, window_bounds = array<i64: 1, 3, 1, 16>}, {transform_indices = @transform_6, window_bounds = array<i64: 1, 1, 16>}, {transform_indices = @transform_7, window_bounds = array<i64: 1, 8, 1>}, {transform_indices = @transform_8, window_bounds = array<i64: 1, 8, 8, 16>}, {transform_indices = @transform_9, window_bounds = array<i64: 1, 8, 16>}]} {
    %c0 = arith.constant 0 : index
    %c0_0 = arith.constant 0 : index
    %c0_1 = arith.constant 0 : index
    %c0_2 = arith.constant 0 : index
    %0 = vector.load %arg2[%c0, %c0_0, %c0_1, %c0_2] : memref<1x8x8x16xbf16, #tpu.memory_space<vmem>>, vector<1x8x8x16xbf16>
    %1 = vector.shape_cast %0 : vector<1x8x8x16xbf16> to vector<8x8x16xbf16>
    %2 = vector.shape_cast %1 : vector<8x8x16xbf16> to vector<64x16xbf16>
    %c0_3 = arith.constant 0 : index
    %c0_4 = arith.constant 0 : index
    %c0_5 = arith.constant 0 : index
    %c0_6 = arith.constant 0 : index
    %3 = vector.load %arg6[%c0_3, %c0_4, %c0_5, %c0_6] : memref<1x3x1x16xf32, #tpu.memory_space<vmem>>, vector<1x3x1x16xf32>
    %4 = vector.shape_cast %3 : vector<1x3x1x16xf32> to vector<3x1x16xf32>
    %c0_7 = arith.constant 0 : index
    %c0_8 = arith.constant 0 : index
    %c0_9 = arith.constant 0 : index
    %c0_10 = arith.constant 0 : index
    %5 = vector.load %arg4[%c0_7, %c0_8, %c0_9, %c0_10] : memref<1x3x16x16xbf16, #tpu.memory_space<vmem>>, vector<1x1x16x16xbf16>
    %6 = vector.shape_cast %5 : vector<1x1x16x16xbf16> to vector<16x16xbf16>
    %cst = arith.constant dense<0.000000e+00> : vector<64x16xf32>
    %7 = tpu.matmul %2, %6, %cst {dimension_numbers = #tpu.dot_dimension_numbers<[1], [0], [0], [1], [0, 0, 1, 1], [], []>} : vector<64x16xbf16>, vector<16x16xbf16>, vector<64x16xf32> -> vector<64x16xf32>
    %8 = vector.extract_strided_slice %4 {offsets = [0, 0, 0], sizes = [1, 1, 16], strides = [1, 1, 1]} : vector<3x1x16xf32> to vector<1x1x16xf32>
    %9 = vector.shape_cast %8 : vector<1x1x16xf32> to vector<1x16xf32>
    %10 = vector.broadcast %9 : vector<1x16xf32> to vector<64x16xf32>
    %11 = arith.addf %7, %10 : vector<64x16xf32>
    %12 = vector.shape_cast %11 : vector<64x16xf32> to vector<8x8x16xf32>
    %c0_11 = arith.constant 0 : index
    %c0_12 = arith.constant 0 : index
    %c0_13 = arith.constant 0 : index
    %13 = vector.load %arg12[%c0_11, %c0_12, %c0_13] : memref<8x8x16xf32, #tpu.memory_space<vmem>>, vector<8x8x16xf32>
    tpu.vector_store %arg12[%c0_11, %c0_12, %c0_13], %12 {strides = array<i32>} : memref<8x8x16xf32, #tpu.memory_space<vmem>>, vector<8x8x16xf32>,
    %c0_14 = arith.constant 0 : index
    %c1 = arith.constant 1 : index
    %c0_15 = arith.constant 0 : index
    %c0_16 = arith.constant 0 : index
    %14 = vector.load %arg4[%c0_14, %c1, %c0_15, %c0_16] : memref<1x3x16x16xbf16, #tpu.memory_space<vmem>>, vector<1x1x16x16xbf16>
    %15 = vector.shape_cast %14 : vector<1x1x16x16xbf16> to vector<16x16xbf16>
    %cst_17 = arith.constant dense<0.000000e+00> : vector<64x16xf32>
    %16 = tpu.matmul %2, %15, %cst_17 {dimension_numbers = #tpu.dot_dimension_numbers<[1], [0], [0], [1], [0, 0, 1, 1], [], []>} : vector<64x16xbf16>, vector<16x16xbf16>, vector<64x16xf32> -> vector<64x16xf32>
    %17 = vector.extract_strided_slice %4 {offsets = [1, 0, 0], sizes = [1, 1, 16], strides = [1, 1, 1]} : vector<3x1x16xf32> to vector<1x1x16xf32>
    %18 = vector.shape_cast %17 : vector<1x1x16xf32> to vector<1x16xf32>
    %19 = vector.broadcast %18 : vector<1x16xf32> to vector<64x16xf32>
    %20 = arith.addf %16, %19 : vector<64x16xf32>
    %21 = vector.shape_cast %20 : vector<64x16xf32> to vector<8x8x16xf32>
    %c0_18 = arith.constant 0 : index
    %c0_19 = arith.constant 0 : index
    %c0_20 = arith.constant 0 : index
    %22 = vector.load %arg13[%c0_18, %c0_19, %c0_20] : memref<8x8x16xf32, #tpu.memory_space<vmem>>, vector<8x8x16xf32>
    tpu.vector_store %arg13[%c0_18, %c0_19, %c0_20], %21 {strides = array<i32>} : memref<8x8x16xf32, #tpu.memory_space<vmem>>, vector<8x8x16xf32>,
    %c0_21 = arith.constant 0 : index
    %c2 = arith.constant 2 : index
    %c0_22 = arith.constant 0 : index
    %c0_23 = arith.constant 0 : index
    %23 = vector.load %arg4[%c0_21, %c2, %c0_22, %c0_23] : memref<1x3x16x16xbf16, #tpu.memory_space<vmem>>, vector<1x1x16x16xbf16>
    %24 = vector.shape_cast %23 : vector<1x1x16x16xbf16> to vector<16x16xbf16>
    %cst_24 = arith.constant dense<0.000000e+00> : vector<64x16xf32>
    %25 = tpu.matmul %2, %24, %cst_24 {dimension_numbers = #tpu.dot_dimension_numbers<[1], [0], [0], [1], [0, 0, 1, 1], [], []>} : vector<64x16xbf16>, vector<16x16xbf16>, vector<64x16xf32> -> vector<64x16xf32>
    %26 = vector.extract_strided_slice %4 {offsets = [2, 0, 0], sizes = [1, 1, 16], strides = [1, 1, 1]} : vector<3x1x16xf32> to vector<1x1x16xf32>
    %27 = vector.shape_cast %26 : vector<1x1x16xf32> to vector<1x16xf32>
    %28 = vector.broadcast %27 : vector<1x16xf32> to vector<64x16xf32>
    %29 = arith.addf %25, %28 : vector<64x16xf32>
    %30 = vector.shape_cast %29 : vector<64x16xf32> to vector<8x8x16xf32>
    %c0_25 = arith.constant 0 : index
    %c0_26 = arith.constant 0 : index
    %c0_27 = arith.constant 0 : index
    %31 = vector.load %arg14[%c0_25, %c0_26, %c0_27] : memref<8x8x16xf32, #tpu.memory_space<vmem>>, vector<8x8x16xf32>
    tpu.vector_store %arg14[%c0_25, %c0_26, %c0_27], %30 {strides = array<i32>} : memref<8x8x16xf32, #tpu.memory_space<vmem>>, vector<8x8x16xf32>,
    %cst_28 = arith.constant 0.000000e+00 : f32
    %32 = vector.broadcast %cst_28 : f32 to vector<8x8x16xf32>
    %c0_29 = arith.constant 0 : index
    %c0_30 = arith.constant 0 : index
    %c0_31 = arith.constant 0 : index
    %c0_32 = arith.constant 0 : index
    %33 = vector.load %arg9[%c0_29, %c0_30, %c0_31, %c0_32] : memref<1x8x8x16xf32, #tpu.memory_space<vmem>>, vector<1x8x8x16xf32>
    %34 = vector.shape_cast %33 : vector<1x8x8x16xf32> to vector<8x8x16xf32>
    %35 = vector.shape_cast %32 : vector<8x8x16xf32> to vector<1x8x8x16xf32>
    tpu.vector_store %arg9[%c0_29, %c0_30, %c0_31, %c0_32], %35 {strides = array<i32>} : memref<1x8x8x16xf32, #tpu.memory_space<vmem>>, vector<1x8x8x16xf32>,
    %c0_33 = arith.constant 0 : index
    %c0_34 = arith.constant 0 : index
    %c0_35 = arith.constant 0 : index
    %36 = vector.load %arg3[%c0_33, %c0_34, %c0_35] : memref<1x8x16xf32, #tpu.memory_space<vmem>>, vector<1x8x16xf32>
    %37 = vector.shape_cast %36 : vector<1x8x16xf32> to vector<8x16xf32>
    %c0_36 = arith.constant 0 : index
    %c0_37 = arith.constant 0 : index
    %38 = vector.load %arg11[%c0_36, %c0_37] : memref<8x16xf32, #tpu.memory_space<vmem>>, vector<8x16xf32>
    tpu.vector_store %arg11[%c0_36, %c0_37], %37 {strides = array<i32>} : memref<8x16xf32, #tpu.memory_space<vmem>>, vector<8x16xf32>,
    %c0_38 = arith.constant 0 : index
    %c0_39 = arith.constant 0 : index
    %c0_40 = arith.constant 0 : index
    %c0_41 = arith.constant 0 : index
    %39 = vector.load %arg5[%c0_38, %c0_39, %c0_40, %c0_41] : memref<1x3x16x16xbf16, #tpu.memory_space<vmem>>, vector<1x1x16x16xbf16>
    %40 = vector.shape_cast %39 : vector<1x1x16x16xbf16> to vector<16x16xbf16>
    %c0_42 = arith.constant 0 : index
    %c1_43 = arith.constant 1 : index
    %c0_44 = arith.constant 0 : index
    %c0_45 = arith.constant 0 : index
    %41 = vector.load %arg5[%c0_42, %c1_43, %c0_44, %c0_45] : memref<1x3x16x16xbf16, #tpu.memory_space<vmem>>, vector<1x1x16x16xbf16>
    %42 = vector.shape_cast %41 : vector<1x1x16x16xbf16> to vector<16x16xbf16>
    %c0_46 = arith.constant 0 : index
    %c2_47 = arith.constant 2 : index
    %c0_48 = arith.constant 0 : index
    %c0_49 = arith.constant 0 : index
    %43 = vector.load %arg5[%c0_46, %c2_47, %c0_48, %c0_49] : memref<1x3x16x16xbf16, #tpu.memory_space<vmem>>, vector<1x1x16x16xbf16>
    %44 = vector.shape_cast %43 : vector<1x1x16x16xbf16> to vector<16x16xbf16>
    %c0_50 = arith.constant 0 : index
    %c0_51 = arith.constant 0 : index
    %c0_52 = arith.constant 0 : index
    %45 = vector.load %arg7[%c0_50, %c0_51, %c0_52] : memref<1x1x16xf32, #tpu.memory_space<vmem>>, vector<1x1x16xf32>
    %46 = vector.shape_cast %45 : vector<1x1x16xf32> to vector<1x16xf32>
    %c0_53 = arith.constant 0 : index
    %c0_54 = arith.constant 0 : index
    %c0_55 = arith.constant 0 : index
    %47 = vector.load %arg8[%c0_53, %c0_54, %c0_55] : memref<1x8x1xi32, #tpu.memory_space<vmem>>, vector<1x8x1xi32>
    %48 = vector.shape_cast %47 : vector<1x8x1xi32> to vector<8x1xi32>
    %c0_56 = arith.constant 0 : index
    %49 = memref.load %arg1[%c0_56] : memref<1xi32, #tpu.memory_space<smem>>
    %c0_i32 = arith.constant 0 : i32
    %50 = arith.subi %49, %c0_i32 : i32
    %c1_i32 = arith.constant 1 : i32
    %c1_i32_57 = arith.constant 1 : i32
    %51 = arith.subi %c1_i32, %c1_i32_57 : i32
    %52 = arith.addi %50, %51 : i32
    %c1_i32_58 = arith.constant 1 : i32
    %53 = arith.divsi %52, %c1_i32_58 : i32
    %c1_i32_59 = arith.constant 1 : i32
    %c0_i32_60 = arith.constant 0 : i32
    %c0_i32_61 = arith.constant 0 : i32
    %54 = arith.subi %53, %c0_i32_61 : i32
    %55 = arith.addi %c0_i32_61, %54 : i32
    %c1_i32_62 = arith.constant 1 : i32
    scf.for %arg15 = %c0_i32_61 to %55 step %c1_i32_62  : i32 {
      %60 = arith.muli %arg15, %c1_i32_59 : i32
      %61 = arith.addi %c0_i32_60, %60 : i32
      %c0_68 = arith.constant 0 : index
      %c0_69 = arith.constant 0 : index
      %62 = vector.load %arg11[%c0_68, %c0_69] : memref<8x16xf32, #tpu.memory_space<vmem>>, vector<8x16xf32>
      %63 = arith.truncf %62 : vector<8x16xf32> to vector<8x16xbf16>
      %cst_70 = arith.constant dense<0.000000e+00> : vector<8x16xf32>
      %64 = tpu.matmul %63, %40, %cst_70 {dimension_numbers = #tpu.dot_dimension_numbers<[1], [0], [0], [1], [0, 0, 1, 1], [], []>} : vector<8x16xbf16>, vector<16x16xbf16>, vector<8x16xf32> -> vector<8x16xf32>
      %cst_71 = arith.constant dense<0.000000e+00> : vector<8x16xf32>
      %65 = tpu.matmul %63, %42, %cst_71 {dimension_numbers = #tpu.dot_dimension_numbers<[1], [0], [0], [1], [0, 0, 1, 1], [], []>} : vector<8x16xbf16>, vector<16x16xbf16>, vector<8x16xf32> -> vector<8x16xf32>
      %cst_72 = arith.constant dense<0.000000e+00> : vector<8x16xf32>
      %66 = tpu.matmul %63, %44, %cst_72 {dimension_numbers = #tpu.dot_dimension_numbers<[1], [0], [0], [1], [0, 0, 1, 1], [], []>} : vector<8x16xbf16>, vector<16x16xbf16>, vector<8x16xf32> -> vector<8x16xf32>
      %67 = vector.broadcast %46 : vector<1x16xf32> to vector<8x16xf32>
      %68 = arith.addf %66, %67 : vector<8x16xf32>
      %69 = arith.index_cast %61 : i32 to index
      %c0_73 = arith.constant 0 : index
      %c0_74 = arith.constant 0 : index
      %70 = vector.load %arg12[%69, %c0_73, %c0_74] : memref<8x8x16xf32, #tpu.memory_space<vmem>>, vector<1x8x16xf32>
      %71 = vector.shape_cast %70 : vector<1x8x16xf32> to vector<8x16xf32>
      %72 = arith.addf %71, %64 : vector<8x16xf32>
      %73 = arith.negf %72 : vector<8x16xf32>
      %74 = math.exp %73 : vector<8x16xf32>
      %cst_75 = arith.constant 1.000000e+00 : f32
      %75 = vector.broadcast %cst_75 : f32 to vector<8x16xf32>
      %76 = arith.addf %75, %74 : vector<8x16xf32>
      %77 = arith.divf %75, %76 : vector<8x16xf32>
      %78 = arith.index_cast %61 : i32 to index
      %c0_76 = arith.constant 0 : index
      %c0_77 = arith.constant 0 : index
      %79 = vector.load %arg13[%78, %c0_76, %c0_77] : memref<8x8x16xf32, #tpu.memory_space<vmem>>, vector<1x8x16xf32>
      %80 = vector.shape_cast %79 : vector<1x8x16xf32> to vector<8x16xf32>
      %81 = arith.addf %80, %65 : vector<8x16xf32>
      %82 = arith.negf %81 : vector<8x16xf32>
      %83 = math.exp %82 : vector<8x16xf32>
      %cst_78 = arith.constant 1.000000e+00 : f32
      %84 = vector.broadcast %cst_78 : f32 to vector<8x16xf32>
      %85 = arith.addf %84, %83 : vector<8x16xf32>
      %86 = arith.divf %84, %85 : vector<8x16xf32>
      %87 = arith.index_cast %61 : i32 to index
      %c0_79 = arith.constant 0 : index
      %c0_80 = arith.constant 0 : index
      %88 = vector.load %arg14[%87, %c0_79, %c0_80] : memref<8x8x16xf32, #tpu.memory_space<vmem>>, vector<1x8x16xf32>
      %89 = vector.shape_cast %88 : vector<1x8x16xf32> to vector<8x16xf32>
      %90 = arith.mulf %77, %68 : vector<8x16xf32>
      %91 = arith.addf %89, %90 : vector<8x16xf32>
      %92 = math.tanh %91 : vector<8x16xf32>
      %cst_81 = arith.constant 1.000000e+00 : f32
      %93 = vector.broadcast %cst_81 : f32 to vector<8x16xf32>
      %94 = arith.subf %93, %86 : vector<8x16xf32>
      %95 = arith.mulf %94, %92 : vector<8x16xf32>
      %96 = arith.mulf %86, %62 : vector<8x16xf32>
      %97 = arith.addf %95, %96 : vector<8x16xf32>
      %98 = vector.broadcast %61 : i32 to vector<8x1xi32>
      %99 = arith.cmpi sgt, %48, %98 : vector<8x1xi32>
      %100 = vector.shape_cast %99 : vector<8x1xi1> to vector<8x1xi1>
      %101 = vector.broadcast %100 : vector<8x1xi1> to vector<8x16xi1>
      %102 = arith.select %101, %97, %62 : vector<8x16xi1>, vector<8x16xf32>
      %c0_82 = arith.constant 0 : index
      %c0_83 = arith.constant 0 : index
      %103 = vector.load %arg11[%c0_82, %c0_83] : memref<8x16xf32, #tpu.memory_space<vmem>>, vector<8x16xf32>
      tpu.vector_store %arg11[%c0_82, %c0_83], %102 {strides = array<i32>} : memref<8x16xf32, #tpu.memory_space<vmem>>, vector<8x16xf32>,
      %cst_84 = arith.constant 0.000000e+00 : f32
      %104 = vector.shape_cast %99 : vector<8x1xi1> to vector<8x1xi1>
      %105 = vector.broadcast %104 : vector<8x1xi1> to vector<8x16xi1>
      %106 = vector.broadcast %cst_84 : f32 to vector<8x16xf32>
      %107 = arith.select %105, %97, %106 : vector<8x16xi1>, vector<8x16xf32>
      %c0_85 = arith.constant 0 : index
      %108 = arith.index_cast %61 : i32 to index
      %c0_86 = arith.constant 0 : index
      %c0_87 = arith.constant 0 : index
      %109 = vector.load %arg9[%c0_85, %108, %c0_86, %c0_87] : memref<1x8x8x16xf32, #tpu.memory_space<vmem>>, vector<1x1x8x16xf32>
      %110 = vector.shape_cast %109 : vector<1x1x8x16xf32> to vector<8x16xf32>
      %111 = vector.shape_cast %107 : vector<8x16xf32> to vector<1x1x8x16xf32>
      tpu.vector_store %arg9[%c0_85, %108, %c0_86, %c0_87], %111 {strides = array<i32>} : memref<1x8x8x16xf32, #tpu.memory_space<vmem>>, vector<1x1x8x16xf32>,
    }
    %c0_63 = arith.constant 0 : index
    %c0_64 = arith.constant 0 : index
    %56 = vector.load %arg11[%c0_63, %c0_64] : memref<8x16xf32, #tpu.memory_space<vmem>>, vector<8x16xf32>
    %c0_65 = arith.constant 0 : index
    %c0_66 = arith.constant 0 : index
    %c0_67 = arith.constant 0 : index
    %57 = vector.load %arg10[%c0_65, %c0_66, %c0_67] : memref<1x8x16xf32, #tpu.memory_space<vmem>>, vector<1x8x16xf32>
    %58 = vector.shape_cast %57 : vector<1x8x16xf32> to vector<8x16xf32>
    %59 = vector.shape_cast %56 : vector<8x16xf32> to vector<1x8x16xf32>
    tpu.vector_store %arg10[%c0_65, %c0_66, %c0_67], %59 {strides = array<i32>} : memref<1x8x16xf32, #tpu.memory_space<vmem>>, vector<1x8x16xf32>,
    return
  }
  func.func @transform_0(%arg0: i32) -> i32 {
    %c0_i32 = arith.constant 0 : i32
    %c0_i32_0 = arith.constant 0 : i32
    return %c0_i32 : i32
  }
  func.func @transform_1(%arg0: i32) -> (i32, i32, i32, i32) {
    %c0_i32 = arith.constant 0 : i32
    %c0_i32_0 = arith.constant 0 : i32
    %c0_i32_1 = arith.constant 0 : i32
    %c0_i32_2 = arith.constant 0 : i32
    return %arg0, %c0_i32, %c0_i32_0, %c0_i32_1 : i32, i32, i32, i32
  }
  func.func @transform_2(%arg0: i32) -> (i32, i32, i32) {
    %c0_i32 = arith.constant 0 : i32
    %c0_i32_0 = arith.constant 0 : i32
    %c0_i32_1 = arith.constant 0 : i32
    return %arg0, %c0_i32, %c0_i32_0 : i32, i32, i32
  }
  func.func @transform_3(%arg0: i32) -> (i32, i32, i32, i32) {
    %c0_i32 = arith.constant 0 : i32
    %c0_i32_0 = arith.constant 0 : i32
    %c0_i32_1 = arith.constant 0 : i32
    %c0_i32_2 = arith.constant 0 : i32
    return %arg0, %c0_i32, %c0_i32_0, %c0_i32_1 : i32, i32, i32, i32
  }
  func.func @transform_4(%arg0: i32) -> (i32, i32, i32, i32) {
    %c0_i32 = arith.constant 0 : i32
    %c0_i32_0 = arith.constant 0 : i32
    %c0_i32_1 = arith.constant 0 : i32
    %c0_i32_2 = arith.constant 0 : i32
    return %arg0, %c0_i32, %c0_i32_0, %c0_i32_1 : i32, i32, i32, i32
  }
  func.func @transform_5(%arg0: i32) -> (i32, i32, i32, i32) {
    %c0_i32 = arith.constant 0 : i32
    %c0_i32_0 = arith.constant 0 : i32
    %c0_i32_1 = arith.constant 0 : i32
    %c0_i32_2 = arith.constant 0 : i32
    return %arg0, %c0_i32, %c0_i32_0, %c0_i32_1 : i32, i32, i32, i32
  }
  func.func @transform_6(%arg0: i32) -> (i32, i32, i32) {
    %c0_i32 = arith.constant 0 : i32
    %c0_i32_0 = arith.constant 0 : i32
    %c0_i32_1 = arith.constant 0 : i32
    return %arg0, %c0_i32, %c0_i32_0 : i32, i32, i32
  }
  func.func @transform_7(%arg0: i32) -> (i32, i32, i32) {
    %c0_i32 = arith.constant 0 : i32
    %c0_i32_0 = arith.constant 0 : i32
    %c0_i32_1 = arith.constant 0 : i32
    return %arg0, %c0_i32, %c0_i32_0 : i32, i32, i32
  }
  func.func @transform_8(%arg0: i32) -> (i32, i32, i32, i32) {
    %c0_i32 = arith.constant 0 : i32
    %c0_i32_0 = arith.constant 0 : i32
    %c0_i32_1 = arith.constant 0 : i32
    %c0_i32_2 = arith.constant 0 : i32
    return %arg0, %c0_i32, %c0_i32_0, %c0_i32_1 : i32, i32, i32, i32
  }
  func.func @transform_9(%arg0: i32) -> (i32, i32, i32) {
    %c0_i32 = arith.constant 0 : i32
    %c0_i32_0 = arith.constant 0 : i32
    %c0_i32_1 = arith.constant 0 : i32
    return %arg0, %c0_i32, %c0_i32_0 : i32, i32, i32
  }
}

module attributes {stable_mosaic.version = 11 : i64} {
  func.func @_gru_kernel(%arg0: i32, %arg1: memref<1xi32, #tpu.memory_space<smem>>, %arg2: memref<1x8x8x16xbf16, #tpu.memory_space<vmem>>, %arg3: memref<1x8x32xf32, #tpu.memory_space<vmem>>, %arg4: memref<1x3x16x32xbf16, #tpu.memory_space<vmem>>, %arg5: memref<1x3x32x32xbf16, #tpu.memory_space<vmem>>, %arg6: memref<1x3x1x32xf32, #tpu.memory_space<vmem>>, %arg7: memref<1x1x32xf32, #tpu.memory_space<vmem>>, %arg8: memref<1x8x1xi32, #tpu.memory_space<vmem>>, %arg9: memref<1x8x8x32xf32, #tpu.memory_space<vmem>>, %arg10: memref<1x8x32xf32, #tpu.memory_space<vmem>>, %arg11: memref<8x32xf32, #tpu.memory_space<vmem>>, %arg12: memref<8x8x32xf32, #tpu.memory_space<vmem>>, %arg13: memref<8x8x32xf32, #tpu.memory_space<vmem>>, %arg14: memref<8x8x32xf32, #tpu.memory_space<vmem>>) attributes {dimension_semantics = [#tpu.dimension_semantics<parallel>], iteration_bounds = array<i64: 1>, scalar_prefetch = 0 : i64, scratch_operands = 4 : i64, tpu.core_type = #tpu.core_type<tc>, window_params = [{transform_indices = @transform_0, window_bounds = array<i64: 1>}, {transform_indices = @transform_1, window_bounds = array<i64: 1, 8, 8, 16>}, {transform_indices = @transform_2, window_bounds = array<i64: 1, 8, 32>}, {transform_indices = @transform_3, window_bounds = array<i64: 1, 3, 16, 32>}, {transform_indices = @transform_4, window_bounds = array<i64: 1, 3, 32, 32>}, {transform_indices = @transform_5, window_bounds = array<i64: 1, 3, 1, 32>}, {transform_indices = @transform_6, window_bounds = array<i64: 1, 1, 32>}, {transform_indices = @transform_7, window_bounds = array<i64: 1, 8, 1>}, {transform_indices = @transform_8, window_bounds = array<i64: 1, 8, 8, 32>}, {transform_indices = @transform_9, window_bounds = array<i64: 1, 8, 32>}]} {
    %c0 = arith.constant 0 : index
    %c0_0 = arith.constant 0 : index
    %c0_1 = arith.constant 0 : index
    %c0_2 = arith.constant 0 : index
    %0 = vector.load %arg2[%c0, %c0_0, %c0_1, %c0_2] : memref<1x8x8x16xbf16, #tpu.memory_space<vmem>>, vector<1x8x8x16xbf16>
    %1 = vector.shape_cast %0 : vector<1x8x8x16xbf16> to vector<8x8x16xbf16>
    %2 = vector.shape_cast %1 : vector<8x8x16xbf16> to vector<64x16xbf16>
    %c0_3 = arith.constant 0 : index
    %c0_4 = arith.constant 0 : index
    %c0_5 = arith.constant 0 : index
    %c0_6 = arith.constant 0 : index
    %3 = vector.load %arg6[%c0_3, %c0_4, %c0_5, %c0_6] : memref<1x3x1x32xf32, #tpu.memory_space<vmem>>, vector<1x3x1x32xf32>
    %4 = vector.shape_cast %3 : vector<1x3x1x32xf32> to vector<3x1x32xf32>
    %c0_7 = arith.constant 0 : index
    %c0_8 = arith.constant 0 : index
    %c0_9 = arith.constant 0 : index
    %c0_10 = arith.constant 0 : index
    %5 = vector.load %arg4[%c0_7, %c0_8, %c0_9, %c0_10] : memref<1x3x16x32xbf16, #tpu.memory_space<vmem>>, vector<1x1x16x32xbf16>
    %6 = vector.shape_cast %5 : vector<1x1x16x32xbf16> to vector<16x32xbf16>
    %cst = arith.constant dense<0.000000e+00> : vector<64x32xf32>
    %7 = tpu.matmul %2, %6, %cst {dimension_numbers = #tpu.dot_dimension_numbers<[1], [0], [0], [1], [0, 0, 1, 1], [], []>} : vector<64x16xbf16>, vector<16x32xbf16>, vector<64x32xf32> -> vector<64x32xf32>
    %8 = vector.extract_strided_slice %4 {offsets = [0, 0, 0], sizes = [1, 1, 32], strides = [1, 1, 1]} : vector<3x1x32xf32> to vector<1x1x32xf32>
    %9 = vector.shape_cast %8 : vector<1x1x32xf32> to vector<1x32xf32>
    %10 = vector.broadcast %9 : vector<1x32xf32> to vector<64x32xf32>
    %11 = arith.addf %7, %10 : vector<64x32xf32>
    %12 = vector.shape_cast %11 : vector<64x32xf32> to vector<8x8x32xf32>
    %c0_11 = arith.constant 0 : index
    %c0_12 = arith.constant 0 : index
    %c0_13 = arith.constant 0 : index
    %13 = vector.load %arg12[%c0_11, %c0_12, %c0_13] : memref<8x8x32xf32, #tpu.memory_space<vmem>>, vector<8x8x32xf32>
    tpu.vector_store %arg12[%c0_11, %c0_12, %c0_13], %12 {strides = array<i32>} : memref<8x8x32xf32, #tpu.memory_space<vmem>>, vector<8x8x32xf32>,
    %c0_14 = arith.constant 0 : index
    %c1 = arith.constant 1 : index
    %c0_15 = arith.constant 0 : index
    %c0_16 = arith.constant 0 : index
    %14 = vector.load %arg4[%c0_14, %c1, %c0_15, %c0_16] : memref<1x3x16x32xbf16, #tpu.memory_space<vmem>>, vector<1x1x16x32xbf16>
    %15 = vector.shape_cast %14 : vector<1x1x16x32xbf16> to vector<16x32xbf16>
    %cst_17 = arith.constant dense<0.000000e+00> : vector<64x32xf32>
    %16 = tpu.matmul %2, %15, %cst_17 {dimension_numbers = #tpu.dot_dimension_numbers<[1], [0], [0], [1], [0, 0, 1, 1], [], []>} : vector<64x16xbf16>, vector<16x32xbf16>, vector<64x32xf32> -> vector<64x32xf32>
    %17 = vector.extract_strided_slice %4 {offsets = [1, 0, 0], sizes = [1, 1, 32], strides = [1, 1, 1]} : vector<3x1x32xf32> to vector<1x1x32xf32>
    %18 = vector.shape_cast %17 : vector<1x1x32xf32> to vector<1x32xf32>
    %19 = vector.broadcast %18 : vector<1x32xf32> to vector<64x32xf32>
    %20 = arith.addf %16, %19 : vector<64x32xf32>
    %21 = vector.shape_cast %20 : vector<64x32xf32> to vector<8x8x32xf32>
    %c0_18 = arith.constant 0 : index
    %c0_19 = arith.constant 0 : index
    %c0_20 = arith.constant 0 : index
    %22 = vector.load %arg13[%c0_18, %c0_19, %c0_20] : memref<8x8x32xf32, #tpu.memory_space<vmem>>, vector<8x8x32xf32>
    tpu.vector_store %arg13[%c0_18, %c0_19, %c0_20], %21 {strides = array<i32>} : memref<8x8x32xf32, #tpu.memory_space<vmem>>, vector<8x8x32xf32>,
    %c0_21 = arith.constant 0 : index
    %c2 = arith.constant 2 : index
    %c0_22 = arith.constant 0 : index
    %c0_23 = arith.constant 0 : index
    %23 = vector.load %arg4[%c0_21, %c2, %c0_22, %c0_23] : memref<1x3x16x32xbf16, #tpu.memory_space<vmem>>, vector<1x1x16x32xbf16>
    %24 = vector.shape_cast %23 : vector<1x1x16x32xbf16> to vector<16x32xbf16>
    %cst_24 = arith.constant dense<0.000000e+00> : vector<64x32xf32>
    %25 = tpu.matmul %2, %24, %cst_24 {dimension_numbers = #tpu.dot_dimension_numbers<[1], [0], [0], [1], [0, 0, 1, 1], [], []>} : vector<64x16xbf16>, vector<16x32xbf16>, vector<64x32xf32> -> vector<64x32xf32>
    %26 = vector.extract_strided_slice %4 {offsets = [2, 0, 0], sizes = [1, 1, 32], strides = [1, 1, 1]} : vector<3x1x32xf32> to vector<1x1x32xf32>
    %27 = vector.shape_cast %26 : vector<1x1x32xf32> to vector<1x32xf32>
    %28 = vector.broadcast %27 : vector<1x32xf32> to vector<64x32xf32>
    %29 = arith.addf %25, %28 : vector<64x32xf32>
    %30 = vector.shape_cast %29 : vector<64x32xf32> to vector<8x8x32xf32>
    %c0_25 = arith.constant 0 : index
    %c0_26 = arith.constant 0 : index
    %c0_27 = arith.constant 0 : index
    %31 = vector.load %arg14[%c0_25, %c0_26, %c0_27] : memref<8x8x32xf32, #tpu.memory_space<vmem>>, vector<8x8x32xf32>
    tpu.vector_store %arg14[%c0_25, %c0_26, %c0_27], %30 {strides = array<i32>} : memref<8x8x32xf32, #tpu.memory_space<vmem>>, vector<8x8x32xf32>,
    %cst_28 = arith.constant 0.000000e+00 : f32
    %32 = vector.broadcast %cst_28 : f32 to vector<8x8x32xf32>
    %c0_29 = arith.constant 0 : index
    %c0_30 = arith.constant 0 : index
    %c0_31 = arith.constant 0 : index
    %c0_32 = arith.constant 0 : index
    %33 = vector.load %arg9[%c0_29, %c0_30, %c0_31, %c0_32] : memref<1x8x8x32xf32, #tpu.memory_space<vmem>>, vector<1x8x8x32xf32>
    %34 = vector.shape_cast %33 : vector<1x8x8x32xf32> to vector<8x8x32xf32>
    %35 = vector.shape_cast %32 : vector<8x8x32xf32> to vector<1x8x8x32xf32>
    tpu.vector_store %arg9[%c0_29, %c0_30, %c0_31, %c0_32], %35 {strides = array<i32>} : memref<1x8x8x32xf32, #tpu.memory_space<vmem>>, vector<1x8x8x32xf32>,
    %c0_33 = arith.constant 0 : index
    %c0_34 = arith.constant 0 : index
    %c0_35 = arith.constant 0 : index
    %36 = vector.load %arg3[%c0_33, %c0_34, %c0_35] : memref<1x8x32xf32, #tpu.memory_space<vmem>>, vector<1x8x32xf32>
    %37 = vector.shape_cast %36 : vector<1x8x32xf32> to vector<8x32xf32>
    %c0_36 = arith.constant 0 : index
    %c0_37 = arith.constant 0 : index
    %38 = vector.load %arg11[%c0_36, %c0_37] : memref<8x32xf32, #tpu.memory_space<vmem>>, vector<8x32xf32>
    tpu.vector_store %arg11[%c0_36, %c0_37], %37 {strides = array<i32>} : memref<8x32xf32, #tpu.memory_space<vmem>>, vector<8x32xf32>,
    %c0_38 = arith.constant 0 : index
    %c0_39 = arith.constant 0 : index
    %c0_40 = arith.constant 0 : index
    %c0_41 = arith.constant 0 : index
    %39 = vector.load %arg5[%c0_38, %c0_39, %c0_40, %c0_41] : memref<1x3x32x32xbf16, #tpu.memory_space<vmem>>, vector<1x1x32x32xbf16>
    %40 = vector.shape_cast %39 : vector<1x1x32x32xbf16> to vector<32x32xbf16>
    %c0_42 = arith.constant 0 : index
    %c1_43 = arith.constant 1 : index
    %c0_44 = arith.constant 0 : index
    %c0_45 = arith.constant 0 : index
    %41 = vector.load %arg5[%c0_42, %c1_43, %c0_44, %c0_45] : memref<1x3x32x32xbf16, #tpu.memory_space<vmem>>, vector<1x1x32x32xbf16>
    %42 = vector.shape_cast %41 : vector<1x1x32x32xbf16> to vector<32x32xbf16>
    %c0_46 = arith.constant 0 : index
    %c2_47 = arith.constant 2 : index
    %c0_48 = arith.constant 0 : index
    %c0_49 = arith.constant 0 : index
    %43 = vector.load %arg5[%c0_46, %c2_47, %c0_48, %c0_49] : memref<1x3x32x32xbf16, #tpu.memory_space<vmem>>, vector<1x1x32x32xbf16>
    %44 = vector.shape_cast %43 : vector<1x1x32x32xbf16> to vector<32x32xbf16>
    %c0_50 = arith.constant 0 : index
    %c0_51 = arith.constant 0 : index
    %c0_52 = arith.constant 0 : index
    %45 = vector.load %arg7[%c0_50, %c0_51, %c0_52] : memref<1x1x32xf32, #tpu.memory_space<vmem>>, vector<1x1x32xf32>
    %46 = vector.shape_cast %45 : vector<1x1x32xf32> to vector<1x32xf32>
    %c0_53 = arith.constant 0 : index
    %c0_54 = arith.constant 0 : index
    %c0_55 = arith.constant 0 : index
    %47 = vector.load %arg8[%c0_53, %c0_54, %c0_55] : memref<1x8x1xi32, #tpu.memory_space<vmem>>, vector<1x8x1xi32>
    %48 = vector.shape_cast %47 : vector<1x8x1xi32> to vector<8x1xi32>
    %c0_56 = arith.constant 0 : index
    %49 = memref.load %arg1[%c0_56] : memref<1xi32, #tpu.memory_space<smem>>
    %c0_i32 = arith.constant 0 : i32
    %50 = arith.subi %49, %c0_i32 : i32
    %c1_i32 = arith.constant 1 : i32
    %c1_i32_57 = arith.constant 1 : i32
    %51 = arith.subi %c1_i32, %c1_i32_57 : i32
    %52 = arith.addi %50, %51 : i32
    %c1_i32_58 = arith.constant 1 : i32
    %53 = arith.divsi %52, %c1_i32_58 : i32
    %c1_i32_59 = arith.constant 1 : i32
    %c0_i32_60 = arith.constant 0 : i32
    %c0_i32_61 = arith.constant 0 : i32
    %54 = arith.subi %53, %c0_i32_61 : i32
    %55 = arith.addi %c0_i32_61, %54 : i32
    %c1_i32_62 = arith.constant 1 : i32
    scf.for %arg15 = %c0_i32_61 to %55 step %c1_i32_62  : i32 {
      %60 = arith.muli %arg15, %c1_i32_59 : i32
      %61 = arith.addi %c0_i32_60, %60 : i32
      %c0_68 = arith.constant 0 : index
      %c0_69 = arith.constant 0 : index
      %62 = vector.load %arg11[%c0_68, %c0_69] : memref<8x32xf32, #tpu.memory_space<vmem>>, vector<8x32xf32>
      %63 = arith.truncf %62 : vector<8x32xf32> to vector<8x32xbf16>
      %cst_70 = arith.constant dense<0.000000e+00> : vector<8x32xf32>
      %64 = tpu.matmul %63, %40, %cst_70 {dimension_numbers = #tpu.dot_dimension_numbers<[1], [0], [0], [1], [0, 0, 1, 1], [], []>} : vector<8x32xbf16>, vector<32x32xbf16>, vector<8x32xf32> -> vector<8x32xf32>
      %cst_71 = arith.constant dense<0.000000e+00> : vector<8x32xf32>
      %65 = tpu.matmul %63, %42, %cst_71 {dimension_numbers = #tpu.dot_dimension_numbers<[1], [0], [0], [1], [0, 0, 1, 1], [], []>} : vector<8x32xbf16>, vector<32x32xbf16>, vector<8x32xf32> -> vector<8x32xf32>
      %cst_72 = arith.constant dense<0.000000e+00> : vector<8x32xf32>
      %66 = tpu.matmul %63, %44, %cst_72 {dimension_numbers = #tpu.dot_dimension_numbers<[1], [0], [0], [1], [0, 0, 1, 1], [], []>} : vector<8x32xbf16>, vector<32x32xbf16>, vector<8x32xf32> -> vector<8x32xf32>
      %67 = vector.broadcast %46 : vector<1x32xf32> to vector<8x32xf32>
      %68 = arith.addf %66, %67 : vector<8x32xf32>
      %69 = arith.index_cast %61 : i32 to index
      %c0_73 = arith.constant 0 : index
      %c0_74 = arith.constant 0 : index
      %70 = vector.load %arg12[%69, %c0_73, %c0_74] : memref<8x8x32xf32, #tpu.memory_space<vmem>>, vector<1x8x32xf32>
      %71 = vector.shape_cast %70 : vector<1x8x32xf32> to vector<8x32xf32>
      %72 = arith.addf %71, %64 : vector<8x32xf32>
      %73 = arith.negf %72 : vector<8x32xf32>
      %74 = math.exp %73 : vector<8x32xf32>
      %cst_75 = arith.constant 1.000000e+00 : f32
      %75 = vector.broadcast %cst_75 : f32 to vector<8x32xf32>
      %76 = arith.addf %75, %74 : vector<8x32xf32>
      %77 = arith.divf %75, %76 : vector<8x32xf32>
      %78 = arith.index_cast %61 : i32 to index
      %c0_76 = arith.constant 0 : index
      %c0_77 = arith.constant 0 : index
      %79 = vector.load %arg13[%78, %c0_76, %c0_77] : memref<8x8x32xf32, #tpu.memory_space<vmem>>, vector<1x8x32xf32>
      %80 = vector.shape_cast %79 : vector<1x8x32xf32> to vector<8x32xf32>
      %81 = arith.addf %80, %65 : vector<8x32xf32>
      %82 = arith.negf %81 : vector<8x32xf32>
      %83 = math.exp %82 : vector<8x32xf32>
      %cst_78 = arith.constant 1.000000e+00 : f32
      %84 = vector.broadcast %cst_78 : f32 to vector<8x32xf32>
      %85 = arith.addf %84, %83 : vector<8x32xf32>
      %86 = arith.divf %84, %85 : vector<8x32xf32>
      %87 = arith.index_cast %61 : i32 to index
      %c0_79 = arith.constant 0 : index
      %c0_80 = arith.constant 0 : index
      %88 = vector.load %arg14[%87, %c0_79, %c0_80] : memref<8x8x32xf32, #tpu.memory_space<vmem>>, vector<1x8x32xf32>
      %89 = vector.shape_cast %88 : vector<1x8x32xf32> to vector<8x32xf32>
      %90 = arith.mulf %77, %68 : vector<8x32xf32>
      %91 = arith.addf %89, %90 : vector<8x32xf32>
      %92 = math.tanh %91 : vector<8x32xf32>
      %cst_81 = arith.constant 1.000000e+00 : f32
      %93 = vector.broadcast %cst_81 : f32 to vector<8x32xf32>
      %94 = arith.subf %93, %86 : vector<8x32xf32>
      %95 = arith.mulf %94, %92 : vector<8x32xf32>
      %96 = arith.mulf %86, %62 : vector<8x32xf32>
      %97 = arith.addf %95, %96 : vector<8x32xf32>
      %98 = vector.broadcast %61 : i32 to vector<8x1xi32>
      %99 = arith.cmpi sgt, %48, %98 : vector<8x1xi32>
      %100 = vector.shape_cast %99 : vector<8x1xi1> to vector<8x1xi1>
      %101 = vector.broadcast %100 : vector<8x1xi1> to vector<8x32xi1>
      %102 = arith.select %101, %97, %62 : vector<8x32xi1>, vector<8x32xf32>
      %c0_82 = arith.constant 0 : index
      %c0_83 = arith.constant 0 : index
      %103 = vector.load %arg11[%c0_82, %c0_83] : memref<8x32xf32, #tpu.memory_space<vmem>>, vector<8x32xf32>
      tpu.vector_store %arg11[%c0_82, %c0_83], %102 {strides = array<i32>} : memref<8x32xf32, #tpu.memory_space<vmem>>, vector<8x32xf32>,
      %cst_84 = arith.constant 0.000000e+00 : f32
      %104 = vector.shape_cast %99 : vector<8x1xi1> to vector<8x1xi1>
      %105 = vector.broadcast %104 : vector<8x1xi1> to vector<8x32xi1>
      %106 = vector.broadcast %cst_84 : f32 to vector<8x32xf32>
      %107 = arith.select %105, %97, %106 : vector<8x32xi1>, vector<8x32xf32>
      %c0_85 = arith.constant 0 : index
      %108 = arith.index_cast %61 : i32 to index
      %c0_86 = arith.constant 0 : index
      %c0_87 = arith.constant 0 : index
      %109 = vector.load %arg9[%c0_85, %108, %c0_86, %c0_87] : memref<1x8x8x32xf32, #tpu.memory_space<vmem>>, vector<1x1x8x32xf32>
      %110 = vector.shape_cast %109 : vector<1x1x8x32xf32> to vector<8x32xf32>
      %111 = vector.shape_cast %107 : vector<8x32xf32> to vector<1x1x8x32xf32>
      tpu.vector_store %arg9[%c0_85, %108, %c0_86, %c0_87], %111 {strides = array<i32>} : memref<1x8x8x32xf32, #tpu.memory_space<vmem>>, vector<1x1x8x32xf32>,
    }
    %c0_63 = arith.constant 0 : index
    %c0_64 = arith.constant 0 : index
    %56 = vector.load %arg11[%c0_63, %c0_64] : memref<8x32xf32, #tpu.memory_space<vmem>>, vector<8x32xf32>
    %c0_65 = arith.constant 0 : index
    %c0_66 = arith.constant 0 : index
    %c0_67 = arith.constant 0 : index
    %57 = vector.load %arg10[%c0_65, %c0_66, %c0_67] : memref<1x8x32xf32, #tpu.memory_space<vmem>>, vector<1x8x32xf32>
    %58 = vector.shape_cast %57 : vector<1x8x32xf32> to vector<8x32xf32>
    %59 = vector.shape_cast %56 : vector<8x32xf32> to vector<1x8x32xf32>
    tpu.vector_store %arg10[%c0_65, %c0_66, %c0_67], %59 {strides = array<i32>} : memref<1x8x32xf32, #tpu.memory_space<vmem>>, vector<1x8x32xf32>,
    return
  }
  func.func @transform_0(%arg0: i32) -> i32 {
    %c0_i32 = arith.constant 0 : i32
    %c0_i32_0 = arith.constant 0 : i32
    return %c0_i32 : i32
  }
  func.func @transform_1(%arg0: i32) -> (i32, i32, i32, i32) {
    %c0_i32 = arith.constant 0 : i32
    %c0_i32_0 = arith.constant 0 : i32
    %c0_i32_1 = arith.constant 0 : i32
    %c0_i32_2 = arith.constant 0 : i32
    return %arg0, %c0_i32, %c0_i32_0, %c0_i32_1 : i32, i32, i32, i32
  }
  func.func @transform_2(%arg0: i32) -> (i32, i32, i32) {
    %c0_i32 = arith.constant 0 : i32
    %c0_i32_0 = arith.constant 0 : i32
    %c0_i32_1 = arith.constant 0 : i32
    return %arg0, %c0_i32, %c0_i32_0 : i32, i32, i32
  }
  func.func @transform_3(%arg0: i32) -> (i32, i32, i32, i32) {
    %c0_i32 = arith.constant 0 : i32
    %c0_i32_0 = arith.constant 0 : i32
    %c0_i32_1 = arith.constant 0 : i32
    %c0_i32_2 = arith.constant 0 : i32
    return %arg0, %c0_i32, %c0_i32_0, %c0_i32_1 : i32, i32, i32, i32
  }
  func.func @transform_4(%arg0: i32) -> (i32, i32, i32, i32) {
    %c0_i32 = arith.constant 0 : i32
    %c0_i32_0 = arith.constant 0 : i32
    %c0_i32_1 = arith.constant 0 : i32
    %c0_i32_2 = arith.constant 0 : i32
    return %arg0, %c0_i32, %c0_i32_0, %c0_i32_1 : i32, i32, i32, i32
  }
  func.func @transform_5(%arg0: i32) -> (i32, i32, i32, i32) {
    %c0_i32 = arith.constant 0 : i32
    %c0_i32_0 = arith.constant 0 : i32
    %c0_i32_1 = arith.constant 0 : i32
    %c0_i32_2 = arith.constant 0 : i32
    return %arg0, %c0_i32, %c0_i32_0, %c0_i32_1 : i32, i32, i32, i32
  }
  func.func @transform_6(%arg0: i32) -> (i32, i32, i32) {
    %c0_i32 = arith.constant 0 : i32
    %c0_i32_0 = arith.constant 0 : i32
    %c0_i32_1 = arith.constant 0 : i32
    return %arg0, %c0_i32, %c0_i32_0 : i32, i32, i32
  }
  func.func @transform_7(%arg0: i32) -> (i32, i32, i32) {
    %c0_i32 = arith.constant 0 : i32
    %c0_i32_0 = arith.constant 0 : i32
    %c0_i32_1 = arith.constant 0 : i32
    return %arg0, %c0_i32, %c0_i32_0 : i32, i32, i32
  }
  func.func @transform_8(%arg0: i32) -> (i32, i32, i32, i32) {
    %c0_i32 = arith.constant 0 : i32
    %c0_i32_0 = arith.constant 0 : i32
    %c0_i32_1 = arith.constant 0 : i32
    %c0_i32_2 = arith.constant 0 : i32
    return %arg0, %c0_i32, %c0_i32_0, %c0_i32_1 : i32, i32, i32, i32
  }
  func.func @transform_9(%arg0: i32) -> (i32, i32, i32) {
    %c0_i32 = arith.constant 0 : i32
    %c0_i32_0 = arith.constant 0 : i32
    %c0_i32_1 = arith.constant 0 : i32
    return %arg0, %c0_i32, %c0_i32_0 : i32, i32, i32
  }
}

module attributes {stable_mosaic.version = 11 : i64} {
  func.func @_attn_out_kernel(%arg0: i32, %arg1: memref<2xi32, #tpu.memory_space<smem>>, %arg2: memref<2xi32, #tpu.memory_space<smem>>, %arg3: memref<1x8x32xbf16, #tpu.memory_space<vmem>>, %arg4: memref<1x8x32xbf16, #tpu.memory_space<vmem>>, %arg5: memref<32x32xbf16, #tpu.memory_space<vmem>>, %arg6: memref<32x32xbf16, #tpu.memory_space<vmem>>, %arg7: memref<32x32xbf16, #tpu.memory_space<vmem>>, %arg8: memref<1x32xf32, #tpu.memory_space<vmem>>, %arg9: memref<32x128xbf16, #tpu.memory_space<vmem>>, %arg10: memref<1x128xf32, #tpu.memory_space<vmem>>, %arg11: memref<1x8x128xf32, #tpu.memory_space<vmem>>, %arg12: memref<1x8x8xf32, #tpu.memory_space<vmem>>) attributes {dimension_semantics = [#tpu.dimension_semantics<parallel>], iteration_bounds = array<i64: 2>, scalar_prefetch = 0 : i64, scratch_operands = 0 : i64, tpu.core_type = #tpu.core_type<tc>, window_params = [{transform_indices = @transform_0, window_bounds = array<i64: 2>}, {transform_indices = @transform_1, window_bounds = array<i64: 2>}, {transform_indices = @transform_2, window_bounds = array<i64: 1, 8, 32>}, {transform_indices = @transform_3, window_bounds = array<i64: 1, 8, 32>}, {pipeline_mode = #tpu.pipeline_mode<synchronous>, transform_indices = @transform_4, window_bounds = array<i64: 32, 32>}, {pipeline_mode = #tpu.pipeline_mode<synchronous>, transform_indices = @transform_5, window_bounds = array<i64: 32, 32>}, {pipeline_mode = #tpu.pipeline_mode<synchronous>, transform_indices = @transform_6, window_bounds = array<i64: 32, 32>}, {pipeline_mode = #tpu.pipeline_mode<synchronous>, transform_indices = @transform_7, window_bounds = array<i64: 1, 32>}, {pipeline_mode = #tpu.pipeline_mode<synchronous>, transform_indices = @transform_8, window_bounds = array<i64: 32, 128>}, {pipeline_mode = #tpu.pipeline_mode<synchronous>, transform_indices = @transform_9, window_bounds = array<i64: 1, 128>}, {transform_indices = @transform_10, window_bounds = array<i64: 1, 8, 128>}, {transform_indices = @transform_11, window_bounds = array<i64: 1, 8, 8>}]} {
    %0 = arith.index_cast %arg0 : i32 to index
    %1 = memref.load %arg1[%0] : memref<2xi32, #tpu.memory_space<smem>>
    %2 = arith.index_cast %arg0 : i32 to index
    %3 = memref.load %arg2[%2] : memref<2xi32, #tpu.memory_space<smem>>
    %c0 = arith.constant 0 : index
    %c0_0 = arith.constant 0 : index
    %c0_1 = arith.constant 0 : index
    %4 = vector.load %arg3[%c0, %c0_0, %c0_1] : memref<1x8x32xbf16, #tpu.memory_space<vmem>>, vector<1x8x32xbf16>
    %5 = vector.shape_cast %4 : vector<1x8x32xbf16> to vector<8x32xbf16>
    %c0_2 = arith.constant 0 : index
    %c0_3 = arith.constant 0 : index
    %c0_4 = arith.constant 0 : index
    %6 = vector.load %arg4[%c0_2, %c0_3, %c0_4] : memref<1x8x32xbf16, #tpu.memory_space<vmem>>, vector<1x8x32xbf16>
    %7 = vector.shape_cast %6 : vector<1x8x32xbf16> to vector<8x32xbf16>
    %c0_5 = arith.constant 0 : index
    %c0_6 = arith.constant 0 : index
    %8 = vector.load %arg5[%c0_5, %c0_6] : memref<32x32xbf16, #tpu.memory_space<vmem>>, vector<32x32xbf16>
    %cst = arith.constant dense<0.000000e+00> : vector<8x32xf32>
    %9 = tpu.matmul %7, %8, %cst {dimension_numbers = #tpu.dot_dimension_numbers<[1], [0], [0], [1], [0, 0, 1, 1], [], []>} : vector<8x32xbf16>, vector<32x32xbf16>, vector<8x32xf32> -> vector<8x32xf32>
    %10 = arith.truncf %9 : vector<8x32xf32> to vector<8x32xbf16>
    "tpu.trace_start"() <{level = 10 : i32, message = "yd,xd->yx"}> : () -> ()
    %cst_7 = arith.constant dense<0.000000e+00> : vector<8x8xf32>
    %11 = tpu.matmul %5, %10, %cst_7 {dimension_numbers = #tpu.dot_dimension_numbers<[1], [1], [0], [0], [0, 0, 1, 0], [], []>} : vector<8x32xbf16>, vector<8x32xbf16>, vector<8x8xf32> -> vector<8x8xf32>
    "tpu.trace_stop"() : () -> ()
    %12 = tpu.iota {dimensions = array<i32: 1>} : vector<8x8xi32>
    %13 = tpu.iota {dimensions = array<i32: 0>} : vector<8x8xi32>
    %14 = vector.broadcast %1 : i32 to vector<8x8xi32>
    %15 = arith.cmpi slt, %12, %14 : vector<8x8xi32>
    %16 = vector.broadcast %3 : i32 to vector<8x8xi32>
    %17 = arith.cmpi slt, %13, %16 : vector<8x8xi32>
    %18 = arith.andi %15, %17 : vector<8x8xi1>
    %cst_8 = arith.constant -1.000000e+06 : f32
    %19 = vector.broadcast %cst_8 : f32 to vector<8x8xf32>
    %20 = arith.select %18, %11, %19 : vector<8x8xi1>, vector<8x8xf32>
    %cst_9 = arith.constant dense<0xFF800000> : vector<8xf32>
    %21 = vector.multi_reduction <maximumf>, %20, %cst_9 [1] : vector<8x8xf32> to vector<8xf32>
    %22 = vector.shape_cast %21 : vector<8xf32> to vector<8x1xf32>
    %23 = vector.broadcast %22 : vector<8x1xf32> to vector<8x8xf32>
    %24 = arith.subf %20, %23 : vector<8x8xf32>
    %25 = math.exp %24 : vector<8x8xf32>
    %cst_10 = arith.constant dense<0.000000e+00> : vector<8xf32>
    %26 = vector.multi_reduction <add>, %25, %cst_10 [1] : vector<8x8xf32> to vector<8xf32>
    %27 = vector.shape_cast %26 : vector<8xf32> to vector<8x1xf32>
    %28 = tpu.reciprocal %27 {approx = true} : vector<8x1xf32> -> vector<8x1xf32>
    %29 = arith.mulf %27, %28 : vector<8x1xf32>
    %cst_11 = arith.constant 2.000000e+00 : f32
    %30 = vector.broadcast %cst_11 : f32 to vector<8x1xf32>
    %31 = arith.subf %30, %29 : vector<8x1xf32>
    %32 = arith.mulf %28, %31 : vector<8x1xf32>
    %33 = vector.broadcast %32 : vector<8x1xf32> to vector<8x8xf32>
    %34 = arith.mulf %25, %33 : vector<8x8xf32>
    %c0_12 = arith.constant 0 : index
    %c0_13 = arith.constant 0 : index
    %c0_14 = arith.constant 0 : index
    %35 = vector.load %arg12[%c0_12, %c0_13, %c0_14] : memref<1x8x8xf32, #tpu.memory_space<vmem>>, vector<1x8x8xf32>
    %36 = vector.shape_cast %35 : vector<1x8x8xf32> to vector<8x8xf32>
    %37 = vector.shape_cast %34 : vector<8x8xf32> to vector<1x8x8xf32>
    tpu.vector_store %arg12[%c0_12, %c0_13, %c0_14], %37 {strides = array<i32>} : memref<1x8x8xf32, #tpu.memory_space<vmem>>, vector<1x8x8xf32>,
    %38 = arith.truncf %34 : vector<8x8xf32> to vector<8x8xbf16>
    %cst_15 = arith.constant dense<0.000000e+00> : vector<8x32xf32>
    %39 = tpu.matmul %38, %7, %cst_15 {dimension_numbers = #tpu.dot_dimension_numbers<[1], [0], [0], [1], [0, 0, 1, 1], [], []>} : vector<8x8xbf16>, vector<8x32xbf16>, vector<8x32xf32> -> vector<8x32xf32>
    %40 = arith.truncf %39 : vector<8x32xf32> to vector<8x32xbf16>
    %c0_16 = arith.constant 0 : index
    %c0_17 = arith.constant 0 : index
    %41 = vector.load %arg6[%c0_16, %c0_17] : memref<32x32xbf16, #tpu.memory_space<vmem>>, vector<32x32xbf16>
    %cst_18 = arith.constant dense<0.000000e+00> : vector<8x32xf32>
    %42 = tpu.matmul %40, %41, %cst_18 {dimension_numbers = #tpu.dot_dimension_numbers<[1], [0], [0], [1], [0, 0, 1, 1], [], []>} : vector<8x32xbf16>, vector<32x32xbf16>, vector<8x32xf32> -> vector<8x32xf32>
    %c0_19 = arith.constant 0 : index
    %c0_20 = arith.constant 0 : index
    %43 = vector.load %arg7[%c0_19, %c0_20] : memref<32x32xbf16, #tpu.memory_space<vmem>>, vector<32x32xbf16>
    %cst_21 = arith.constant dense<0.000000e+00> : vector<8x32xf32>
    %44 = tpu.matmul %5, %43, %cst_21 {dimension_numbers = #tpu.dot_dimension_numbers<[1], [0], [0], [1], [0, 0, 1, 1], [], []>} : vector<8x32xbf16>, vector<32x32xbf16>, vector<8x32xf32> -> vector<8x32xf32>
    %45 = arith.addf %42, %44 : vector<8x32xf32>
    %c0_22 = arith.constant 0 : index
    %c0_23 = arith.constant 0 : index
    %46 = vector.load %arg8[%c0_22, %c0_23] : memref<1x32xf32, #tpu.memory_space<vmem>>, vector<1x32xf32>
    %47 = vector.broadcast %46 : vector<1x32xf32> to vector<8x32xf32>
    %48 = arith.addf %45, %47 : vector<8x32xf32>
    %49 = math.tanh %48 : vector<8x32xf32>
    %50 = arith.truncf %49 : vector<8x32xf32> to vector<8x32xbf16>
    %c0_24 = arith.constant 0 : index
    %c0_25 = arith.constant 0 : index
    %51 = vector.load %arg9[%c0_24, %c0_25] : memref<32x128xbf16, #tpu.memory_space<vmem>>, vector<32x128xbf16>
    %cst_26 = arith.constant dense<0.000000e+00> : vector<8x128xf32>
    %52 = tpu.matmul %50, %51, %cst_26 {dimension_numbers = #tpu.dot_dimension_numbers<[1], [0], [0], [1], [0, 0, 1, 1], [], []>} : vector<8x32xbf16>, vector<32x128xbf16>, vector<8x128xf32> -> vector<8x128xf32>
    %c0_27 = arith.constant 0 : index
    %c0_28 = arith.constant 0 : index
    %53 = vector.load %arg10[%c0_27, %c0_28] : memref<1x128xf32, #tpu.memory_space<vmem>>, vector<1x128xf32>
    %54 = vector.broadcast %53 : vector<1x128xf32> to vector<8x128xf32>
    %55 = arith.addf %52, %54 : vector<8x128xf32>
    %cst_29 = arith.constant dense<0xFF800000> : vector<8xf32>
    %56 = vector.multi_reduction <maximumf>, %55, %cst_29 [1] : vector<8x128xf32> to vector<8xf32>
    %57 = vector.shape_cast %56 : vector<8xf32> to vector<8x1xf32>
    %58 = vector.broadcast %57 : vector<8x1xf32> to vector<8x128xf32>
    %59 = arith.subf %55, %58 : vector<8x128xf32>
    %60 = math.exp %59 : vector<8x128xf32>
    %cst_30 = arith.constant dense<0.000000e+00> : vector<8xf32>
    %61 = vector.multi_reduction <add>, %60, %cst_30 [1] : vector<8x128xf32> to vector<8xf32>
    %62 = vector.shape_cast %61 : vector<8xf32> to vector<8x1xf32>
    %63 = math.log %62 : vector<8x1xf32>
    %64 = arith.addf %63, %57 : vector<8x1xf32>
    %65 = vector.broadcast %64 : vector<8x1xf32> to vector<8x128xf32>
    %66 = arith.subf %55, %65 : vector<8x128xf32>
    %c0_31 = arith.constant 0 : index
    %c0_32 = arith.constant 0 : index
    %c0_33 = arith.constant 0 : index
    %67 = vector.load %arg11[%c0_31, %c0_32, %c0_33] : memref<1x8x128xf32, #tpu.memory_space<vmem>>, vector<1x8x128xf32>
    %68 = vector.shape_cast %67 : vector<1x8x128xf32> to vector<8x128xf32>
    %69 = vector.shape_cast %66 : vector<8x128xf32> to vector<1x8x128xf32>
    tpu.vector_store %arg11[%c0_31, %c0_32, %c0_33], %69 {strides = array<i32>} : memref<1x8x128xf32, #tpu.memory_space<vmem>>, vector<1x8x128xf32>,
    return
  }
  func.func @transform_0(%arg0: i32) -> i32 {
    %c0_i32 = arith.constant 0 : i32
    %c0_i32_0 = arith.constant 0 : i32
    return %c0_i32 : i32
  }
  func.func @transform_1(%arg0: i32) -> i32 {
    %c0_i32 = arith.constant 0 : i32
    %c0_i32_0 = arith.constant 0 : i32
    return %c0_i32 : i32
  }
  func.func @transform_2(%arg0: i32) -> (i32, i32, i32) {
    %c0_i32 = arith.constant 0 : i32
    %c0_i32_0 = arith.constant 0 : i32
    %c0_i32_1 = arith.constant 0 : i32
    return %arg0, %c0_i32, %c0_i32_0 : i32, i32, i32
  }
  func.func @transform_3(%arg0: i32) -> (i32, i32, i32) {
    %c0_i32 = arith.constant 0 : i32
    %c0_i32_0 = arith.constant 0 : i32
    %c0_i32_1 = arith.constant 0 : i32
    return %arg0, %c0_i32, %c0_i32_0 : i32, i32, i32
  }
  func.func @transform_4(%arg0: i32) -> (i32, i32) {
    %c0_i32 = arith.constant 0 : i32
    %c0_i32_0 = arith.constant 0 : i32
    %c0_i32_1 = arith.constant 0 : i32
    return %c0_i32, %c0_i32_0 : i32, i32
  }
  func.func @transform_5(%arg0: i32) -> (i32, i32) {
    %c0_i32 = arith.constant 0 : i32
    %c0_i32_0 = arith.constant 0 : i32
    %c0_i32_1 = arith.constant 0 : i32
    return %c0_i32, %c0_i32_0 : i32, i32
  }
  func.func @transform_6(%arg0: i32) -> (i32, i32) {
    %c0_i32 = arith.constant 0 : i32
    %c0_i32_0 = arith.constant 0 : i32
    %c0_i32_1 = arith.constant 0 : i32
    return %c0_i32, %c0_i32_0 : i32, i32
  }
  func.func @transform_7(%arg0: i32) -> (i32, i32) {
    %c0_i32 = arith.constant 0 : i32
    %c0_i32_0 = arith.constant 0 : i32
    %c0_i32_1 = arith.constant 0 : i32
    return %c0_i32, %c0_i32_0 : i32, i32
  }
  func.func @transform_8(%arg0: i32) -> (i32, i32) {
    %c0_i32 = arith.constant 0 : i32
    %c0_i32_0 = arith.constant 0 : i32
    %c0_i32_1 = arith.constant 0 : i32
    return %c0_i32, %c0_i32_0 : i32, i32
  }
  func.func @transform_9(%arg0: i32) -> (i32, i32) {
    %c0_i32 = arith.constant 0 : i32
    %c0_i32_0 = arith.constant 0 : i32
    %c0_i32_1 = arith.constant 0 : i32
    return %c0_i32, %c0_i32_0 : i32, i32
  }
  func.func @transform_10(%arg0: i32) -> (i32, i32, i32) {
    %c0_i32 = arith.constant 0 : i32
    %c0_i32_0 = arith.constant 0 : i32
    %c0_i32_1 = arith.constant 0 : i32
    return %arg0, %c0_i32, %c0_i32_0 : i32, i32, i32
  }
  func.func @transform_11(%arg0: i32) -> (i32, i32, i32) {
    %c0_i32 = arith.constant 0 : i32
    %c0_i32_0 = arith.constant 0 : i32
    %c0_i32_1 = arith.constant 0 : i32
    return %arg0, %c0_i32, %c0_i32_0 : i32, i32, i32
  }
}

</mosaic_0001>

<llo_original>
// kernel: seq2seq_forward.3
$region0: #{seq2seq_forward.3}
  #allocation0 [shape = 'u32[]', space=smem, size = 0x4, offset = 0x4, fixed_abs, tag = 'smem constant byte address 0x4 - core index']
  #allocation1 [shape = 'u32[72,128]{1,0:T(1,128)}', space=vmem, size = 0x9000, scoped, tag = 'internal scratch']
  #allocation2 [shape = 'f32[8,16]{1,0:T(8,128)}', space=vmem, size = 0x1000, scoped, tag = 'scratch operand']
  #allocation3 [shape = 'f32[8,8,16]{2,1,0:T(8,128)}', space=vmem, size = 0x8000, scoped, tag = 'scratch operand']
  #allocation4 [shape = 'f32[8,8,16]{2,1,0:T(8,128)}', space=vmem, size = 0x8000, scoped, tag = 'scratch operand']
  #allocation5 [shape = 'f32[8,8,16]{2,1,0:T(8,128)}', space=vmem, size = 0x8000, scoped, tag = 'scratch operand']
  #allocation6 [shape = 's32[1]{0:T(128)S(6)}', space=smem, size = 0x200, scoped, tag = 'scoped memory for seq2seq_forward.3']
  %s0 = inlined_call_operand.<no memory space> [shape: s32[1], index: 0, kind: input, shape index: {}]
  %s1 = inlined_call_operand.vmem [shape: bf16[2,8,8,16], index: 1, kind: input, shape index: {}]
  %s2 = inlined_call_operand.vmem [shape: f32[2,8,16], index: 2, kind: input, shape index: {}]
  %s3 = inlined_call_operand.vmem [shape: bf16[2,3,16,16], index: 3, kind: input, shape index: {}]
  %s4 = inlined_call_operand.vmem [shape: bf16[2,3,16,16], index: 4, kind: input, shape index: {}]
  %s5 = inlined_call_operand.vmem [shape: f32[2,3,1,16], index: 5, kind: input, shape index: {}]
  %s6 = inlined_call_operand.vmem [shape: f32[2,1,16], index: 6, kind: input, shape index: {}]
  %s7 = inlined_call_operand.vmem [shape: s32[2,8,1], index: 7, kind: input, shape index: {}]
  %s8 = inlined_call_operand.vmem [shape: f32[2,8,8,16], index: 8, kind: output, shape index: {0}]
  %s9 = inlined_call_operand.vmem [shape: f32[2,8,16], index: 9, kind: output, shape index: {1}]
  %10 = xla_tuple %s8, %s9
  %s11 = sld [smem:[#allocation0]]
  $region80: #{seq2seq_forward.3} parent=0
    _
  %s13 = ssub.s32 1, %s11
  %s14 = scalar_select 0, %s13, %s11
  %15 = sst [smem:[#allocation6]] %s0
  loop: start=0, step=1, limit=4
  $region2: #{seq2seq_forward.3} parent=0 // loop_pre_header
    _
  $region3: #{seq2seq_forward.3} parent=0 // loop_header
    %s17 = sphi 0, %s21
    %p18 = scmp.ge.s32.totalorder %s17, 4
    %s25 = sphi 0, %s25
    %s27 = sphi 0, %s25
    %s28 = sphi 0, %s27
    %s42 = sphi 0, %s28
    %s48 = sphi 0, %s50
    %s51 = sphi 0, %s48
    %s52 = sphi 0, %s51
    %s68 = sphi 0, %s52
    %s74 = sphi 0, %s76
    %s77 = sphi 0, %s74
    %s78 = sphi 0, %s77
    %s94 = sphi 0, %s78
    %s100 = sphi 0, %s102
    %s103 = sphi 0, %s100
    %s104 = sphi 0, %s103
    %s120 = sphi 0, %s104
    %s126 = sphi 0, %s128
    %s129 = sphi 0, %s126
    %s130 = sphi 0, %s129
    %s146 = sphi 0, %s130
    %s152 = sphi 0, %s154
    %s155 = sphi 0, %s152
    %s156 = sphi 0, %s155
    %s172 = sphi 0, %s156
    %s178 = sphi 0, %s180
    %s181 = sphi 0, %s178
    %s182 = sphi 0, %s181
    %s198 = sphi 0, %s182
    %s204 = sphi 0, %s206
    %s207 = sphi 0, %s204
    %s208 = sphi 0, %s207
    %s224 = sphi 0, %s208
    %s230 = sphi 0, %s232
    %s233 = sphi 0, %s230
    %s234 = sphi 0, %s233
    %s250 = sphi 0, %s234
    %s256 = sphi 0, %s258
    %s259 = sphi 0, %s256
    %s260 = sphi 0, %s259
    %s276 = sphi 0, %s260
  $region4: #{seq2seq_forward.3} parent=0 // loop_header_branch
    %20 = sbr.rel (%p18) target = $region8
  $region5: #{seq2seq_forward.3} parent=0 // loop_body
    %s22 = ssub.s32 %s17, 1
    %s23 = ssub.s32 %s17, 2
    %s24 = sadd.s32 %s17, 1
    %s26 = sadd.s32 %s25, 1
    %p29 = scmp.eq.s32.totalorder %s17, 1
    %p30 = scmp.ne.s32.totalorder %s25, %s27
    %p31 = scmp.eq.s32.totalorder %s17, 0
    %p32 = por %p30, %p31
    %p33 = scmp.ne.s32.totalorder %s25, %s27
    %p34 = scmp.eq.s32.totalorder %s22, 1
    %p35 = por %p33, %p34
    %p36 = scmp.ne.s32.totalorder %s27, %s28
    %p37 = scmp.eq.s32.totalorder %s22, 0
    %p38 = por %p36, %p37
    %p39 = scmp.ne.s32.totalorder %s27, %s28
    %p40 = scmp.eq.s32.totalorder %s23, 1
    %p41 = por %p39, %p40
    %p43 = scmp.ne.s32.totalorder %s28, %s42
    %p44 = scmp.eq.s32.totalorder %s23, 0
    %p45 = por %p43, %p44
    %s46 = ssub.s32 %s17, %s24
    %p47 = scmp.eq.s32.totalorder %s46, 0
    %s49 = sadd.s32 %s48, 1
    %s50 = scalar_select %p47, %s48, %s49
    %p53 = pneg %p47
    %p54 = scmp.eq.s32.totalorder %s17, 1
    %p55 = por %p53, %p54
    %p56 = scmp.ne.s32.totalorder %s48, %s51
    %p57 = scmp.eq.s32.totalorder %s17, 0
    %p58 = por %p56, %p57
    %p59 = scmp.ne.s32.totalorder %s48, %s51
    %p60 = scmp.eq.s32.totalorder %s22, 1
    %p61 = por %p59, %p60
    %p62 = scmp.ne.s32.totalorder %s51, %s52
    %p63 = scmp.eq.s32.totalorder %s22, 0
    %p64 = por %p62, %p63
    %p65 = scmp.ne.s32.totalorder %s51, %s52
    %p66 = scmp.eq.s32.totalorder %s23, 1
    %p67 = por %p65, %p66
    %p69 = scmp.ne.s32.totalorder %s52, %s68
    %p70 = scmp.eq.s32.totalorder %s23, 0
    %p71 = por %p69, %p70
    %s72 = ssub.s32 %s17, %s24
    %p73 = scmp.eq.s32.totalorder %s72, 0
    %s75 = sadd.s32 %s74, 1
    %s76 = scalar_select %p73, %s74, %s75
    %p79 = pneg %p73
    %p80 = scmp.eq.s32.totalorder %s17, 1
    %p81 = por %p79, %p80
    %p82 = scmp.ne.s32.totalorder %s74, %s77
    %p83 = scmp.eq.s32.totalorder %s17, 0
    %p84 = por %p82, %p83
    %p85 = scmp.ne.s32.totalorder %s74, %s77
    %p86 = scmp.eq.s32.totalorder %s22, 1
    %p87 = por %p85, %p86
    %p88 = scmp.ne.s32.totalorder %s77, %s78
    %p89 = scmp.eq.s32.totalorder %s22, 0
    %p90 = por %p88, %p89
    %p91 = scmp.ne.s32.totalorder %s77, %s78
    %p92 = scmp.eq.s32.totalorder %s23, 1
    %p93 = por %p91, %p92
    %p95 = scmp.ne.s32.totalorder %s78, %s94
    %p96 = scmp.eq.s32.totalorder %s23, 0
    %p97 = por %p95, %p96
    %s98 = ssub.s32 %s17, %s24
    %p99 = scmp.eq.s32.totalorder %s98, 0
    %s101 = sadd.s32 %s100, 1
    %s102 = scalar_select %p99, %s100, %s101
    %p105 = pneg %p99
    %p106 = scmp.eq.s32.totalorder %s17, 1
    %p107 = por %p105, %p106
    %p108 = scmp.ne.s32.totalorder %s100, %s103
    %p109 = scmp.eq.s32.totalorder %s17, 0
    %p110 = por %p108, %p109
    %p111 = scmp.ne.s32.totalorder %s100, %s103
    %p112 = scmp.eq.s32.totalorder %s22, 1
    %p113 = por %p111, %p112
    %p114 = scmp.ne.s32.totalorder %s103, %s104
    %p115 = scmp.eq.s32.totalorder %s22, 0
    %p116 = por %p114, %p115
    %p117 = scmp.ne.s32.totalorder %s103, %s104
    %p118 = scmp.eq.s32.totalorder %s23, 1
    %p119 = por %p117, %p118
    %p121 = scmp.ne.s32.totalorder %s104, %s120
    %p122 = scmp.eq.s32.totalorder %s23, 0
    %p123 = por %p121, %p122
    %s124 = ssub.s32 %s17, %s24
    %p125 = scmp.eq.s32.totalorder %s124, 0
    %s127 = sadd.s32 %s126, 1
    %s128 = scalar_select %p125, %s126, %s127
    %p131 = pneg %p125
    %p132 = scmp.eq.s32.totalorder %s17, 1
    %p133 = por %p131, %p132
    %p134 = scmp.ne.s32.totalorder %s126, %s129
    %p135 = scmp.eq.s32.totalorder %s17, 0
    %p136 = por %p134, %p135
    %p137 = scmp.ne.s32.totalorder %s126, %s129
    %p138 = scmp.eq.s32.totalorder %s22, 1
    %p139 = por %p137, %p138
    %p140 = scmp.ne.s32.totalorder %s129, %s130
    %p141 = scmp.eq.s32.totalorder %s22, 0
    %p142 = por %p140, %p141
    %p143 = scmp.ne.s32.totalorder %s129, %s130
    %p144 = scmp.eq.s32.totalorder %s23, 1
    %p145 = por %p143, %p144
    %p147 = scmp.ne.s32.totalorder %s130, %s146
    %p148 = scmp.eq.s32.totalorder %s23, 0
    %p149 = por %p147, %p148
    %s150 = ssub.s32 %s17, %s24
    %p151 = scmp.eq.s32.totalorder %s150, 0
    %s153 = sadd.s32 %s152, 1
    %s154 = scalar_select %p151, %s152, %s153
    %p157 = pneg %p151
    %p158 = scmp.eq.s32.totalorder %s17, 1
    %p159 = por %p157, %p158
    %p160 = scmp.ne.s32.totalorder %s152, %s155
    %p161 = scmp.eq.s32.totalorder %s17, 0
    %p162 = por %p160, %p161
    %p163 = scmp.ne.s32.totalorder %s152, %s155
    %p164 = scmp.eq.s32.totalorder %s22, 1
    %p165 = por %p163, %p164
    %p166 = scmp.ne.s32.totalorder %s155, %s156
    %p167 = scmp.eq.s32.totalorder %s22, 0
    %p168 = por %p166, %p167
    %p169 = scmp.ne.s32.totalorder %s155, %s156
    %p170 = scmp.eq.s32.totalorder %s23, 1
    %p171 = por %p169, %p170
    %p173 = scmp.ne.s32.totalorder %s156, %s172
    %p174 = scmp.eq.s32.totalorder %s23, 0
    %p175 = por %p173, %p174
    %s176 = ssub.s32 %s17, %s24
    %p177 = scmp.eq.s32.totalorder %s176, 0
    %s179 = sadd.s32 %s178, 1
    %s180 = scalar_select %p177, %s178, %s179
    %p183 = pneg %p177
    %p184 = scmp.eq.s32.totalorder %s17, 1
    %p185 = por %p183, %p184
    %p186 = scmp.ne.s32.totalorder %s178, %s181
    %p187 = scmp.eq.s32.totalorder %s17, 0
    %p188 = por %p186, %p187
    %p189 = scmp.ne.s32.totalorder %s178, %s181
    %p190 = scmp.eq.s32.totalorder %s22, 1
    %p191 = por %p189, %p190
    %p192 = scmp.ne.s32.totalorder %s181, %s182
    %p193 = scmp.eq.s32.totalorder %s22, 0
    %p194 = por %p192, %p193
    %p195 = scmp.ne.s32.totalorder %s181, %s182
    %p196 = scmp.eq.s32.totalorder %s23, 1
    %p197 = por %p195, %p196
    %p199 = scmp.ne.s32.totalorder %s182, %s198
    %p200 = scmp.eq.s32.totalorder %s23, 0
    %p201 = por %p199, %p200
    %s202 = ssub.s32 %s17, %s24
    %p203 = scmp.eq.s32.totalorder %s202, 0
    %s205 = sadd.s32 %s204, 1
    %s206 = scalar_select %p203, %s204, %s205
    %p209 = pneg %p203
    %p210 = scmp.eq.s32.totalorder %s17, 1
    %p211 = por %p209, %p210
    %p212 = scmp.ne.s32.totalorder %s204, %s207
    %p213 = scmp.eq.s32.totalorder %s17, 0
    %p214 = por %p212, %p213
    %p215 = scmp.ne.s32.totalorder %s204, %s207
    %p216 = scmp.eq.s32.totalorder %s22, 1
    %p217 = por %p215, %p216
    %p218 = scmp.ne.s32.totalorder %s207, %s208
    %p219 = scmp.eq.s32.totalorder %s22, 0
    %p220 = por %p218, %p219
    %p221 = scmp.ne.s32.totalorder %s207, %s208
    %p222 = scmp.eq.s32.totalorder %s23, 1
    %p223 = por %p221, %p222
    %p225 = scmp.ne.s32.totalorder %s208, %s224
    %p226 = scmp.eq.s32.totalorder %s23, 0
    %p227 = por %p225, %p226
    %s228 = ssub.s32 %s17, %s24
    %p229 = scmp.eq.s32.totalorder %s228, 0
    %s231 = sadd.s32 %s230, 1
    %s232 = scalar_select %p229, %s230, %s231
    %p235 = pneg %p229
    %p236 = scmp.eq.s32.totalorder %s17, 1
    %p237 = por %p235, %p236
    %p238 = scmp.ne.s32.totalorder %s230, %s233
    %p239 = scmp.eq.s32.totalorder %s17, 0
    %p240 = por %p238, %p239
    %p241 = scmp.ne.s32.totalorder %s230, %s233
    %p242 = scmp.eq.s32.totalorder %s22, 1
    %p243 = por %p241, %p242
    %p244 = scmp.ne.s32.totalorder %s233, %s234
    %p245 = scmp.eq.s32.totalorder %s22, 0
    %p246 = por %p244, %p245
    %p247 = scmp.ne.s32.totalorder %s233, %s234
    %p248 = scmp.eq.s32.totalorder %s23, 1
    %p249 = por %p247, %p248
    %p251 = scmp.ne.s32.totalorder %s234, %s250
    %p252 = scmp.eq.s32.totalorder %s23, 0
    %p253 = por %p251, %p252
    %s254 = ssub.s32 %s17, %s24
    %p255 = scmp.eq.s32.totalorder %s254, 0
    %s257 = sadd.s32 %s256, 1
    %s258 = scalar_select %p255, %s256, %s257
    %p261 = pneg %p255
    %p262 = scmp.eq.s32.totalorder %s17, 1
    %p263 = por %p261, %p262
    %p264 = scmp.ne.s32.totalorder %s256, %s259
    %p265 = scmp.eq.s32.totalorder %s17, 0
    %p266 = por %p264, %p265
    %p267 = scmp.ne.s32.totalorder %s256, %s259
    %p268 = scmp.eq.s32.totalorder %s22, 1
    %p269 = por %p267, %p268
    %p270 = scmp.ne.s32.totalorder %s259, %s260
    %p271 = scmp.eq.s32.totalorder %s22, 0
    %p272 = por %p270, %p271
    %p273 = scmp.ne.s32.totalorder %s259, %s260
    %p274 = scmp.eq.s32.totalorder %s23, 1
    %p275 = por %p273, %p274
    %p277 = scmp.ne.s32.totalorder %s260, %s276
    %p278 = scmp.eq.s32.totalorder %s23, 0
    %p279 = por %p277, %p278
    %p280 = scmp.le.s32.totalorder 1, %s17
    %p281 = scmp.lt.s32.totalorder %s17, 3
    %p282 = pnand %p280, %p281
    %p283 = pneg %p282
    // Predicated region
    $region9: #{seq2seq_forward.3} parent=5 // pred_check
      _
    $region10: #{seq2seq_forward.3} parent=5 // pred_check_branch
      %285 = sbr.rel (%p282) target = $region12
    $region11: #{seq2seq_forward.3} parent=5 // pred_region
      %s286 = ssub.s32 %s17, 1
      // Predicated region
      $region13: #{seq2seq_forward.3} parent=11 // pred_check
        %p287 = pneg %p38
      $region14: #{seq2seq_forward.3} parent=11 // pred_check_branch
        %289 = sbr.rel (%p287) target = $region16
      $region15: #{seq2seq_forward.3} parent=11 // pred_region
        _
      $region16: #{seq2seq_forward.3} parent=11 // pred_fallthru
        _
    $region12: #{seq2seq_forward.3} parent=5 // pred_fallthru
      _
    %p290 = scmp.lt.s32.totalorder %s17, 2
    // Predicated region
    $region17: #{seq2seq_forward.3} parent=5 // pred_check
      %p291 = pneg %p290
    $region18: #{seq2seq_forward.3} parent=5 // pred_check_branch
      %293 = sbr.rel (%p291) target = $region20
    $region19: #{seq2seq_forward.3} parent=5 // pred_region
      // Predicated region
      $region21: #{seq2seq_forward.3} parent=19 // pred_check
        %p294 = pneg %p58
      $region22: #{seq2seq_forward.3} parent=19 // pred_check_branch
        %296 = sbr.rel (%p294) target = $region24
      $region23: #{seq2seq_forward.3} parent=19 // pred_region
        %p297 = scmp.lt.s32.totalorder %s17, 1
        %s298 = scalar_select %p297, %s17, 1
        %s299 = smul.addr %s298, 8
        %s300 = smul.addr %s299, 4
        %s301 = scalar_lea.vmem %s1, %s300
      $region24: #{seq2seq_forward.3} parent=19 // pred_fallthru
        _
      // Predicated region
      $region25: #{seq2seq_forward.3} parent=19 // pred_check
        %p302 = pneg %p84
      $region26: #{seq2seq_forward.3} parent=19 // pred_check_branch
        %304 = sbr.rel (%p302) target = $region28
      $region27: #{seq2seq_forward.3} parent=19 // pred_region
        %p305 = scmp.lt.s32.totalorder %s17, 1
        %s306 = scalar_select %p305, %s17, 1
        %s307 = smul.addr %s306, 8
        %s308 = scalar_lea.vmem %s2, %s307
      $region28: #{seq2seq_forward.3} parent=19 // pred_fallthru
        _
      // Predicated region
      $region29: #{seq2seq_forward.3} parent=19 // pred_check
        %p309 = pneg %p110
      $region30: #{seq2seq_forward.3} parent=19 // pred_check_branch
        %311 = sbr.rel (%p309) target = $region32
      $region31: #{seq2seq_forward.3} parent=19 // pred_region
        %p312 = scmp.lt.s32.totalorder %s17, 1
        %s313 = scalar_select %p312, %s17, 1
        %s314 = smul.addr %s313, 6
        %s315 = smul.addr %s314, 4
        %s316 = scalar_lea.vmem %s3, %s315
      $region32: #{seq2seq_forward.3} parent=19 // pred_fallthru
        _
      // Predicated region
      $region33: #{seq2seq_forward.3} parent=19 // pred_check
        %p317 = pneg %p136
      $region34: #{seq2seq_forward.3} parent=19 // pred_check_branch
        %319 = sbr.rel (%p317) target = $region36
      $region35: #{seq2seq_forward.3} parent=19 // pred_region
        %p320 = scmp.lt.s32.totalorder %s17, 1
        %s321 = scalar_select %p320, %s17, 1
        %s322 = smul.addr %s321, 6
        %s323 = smul.addr %s322, 4
        %s324 = scalar_lea.vmem %s4, %s323
      $region36: #{seq2seq_forward.3} parent=19 // pred_fallthru
        _
      // Predicated region
      $region37: #{seq2seq_forward.3} parent=19 // pred_check
        %p325 = pneg %p162
      $region38: #{seq2seq_forward.3} parent=19 // pred_check_branch
        %327 = sbr.rel (%p325) target = $region40
      $region39: #{seq2seq_forward.3} parent=19 // pred_region
        %p328 = scmp.lt.s32.totalorder %s17, 1
        %s329 = scalar_select %p328, %s17, 1
        %s330 = smul.addr %s329, 3
        %s331 = scalar_lea.vmem %s5, %s330
      $region40: #{seq2seq_forward.3} parent=19 // pred_fallthru
        _
      // Predicated region
      $region41: #{seq2seq_forward.3} parent=19 // pred_check
        %p332 = pneg %p188
      $region42: #{seq2seq_forward.3} parent=19 // pred_check_branch
        %334 = sbr.rel (%p332) target = $region44
      $region43: #{seq2seq_forward.3} parent=19 // pred_region
        %p335 = scmp.lt.s32.totalorder %s17, 1
        %s336 = scalar_select %p335, %s17, 1
        %s337 = scalar_lea.vmem %s6, %s336
      $region44: #{seq2seq_forward.3} parent=19 // pred_fallthru
        _
      // Predicated region
      $region45: #{seq2seq_forward.3} parent=19 // pred_check
        %p338 = pneg %p214
      $region46: #{seq2seq_forward.3} parent=19 // pred_check_branch
        %340 = sbr.rel (%p338) target = $region48
      $region47: #{seq2seq_forward.3} parent=19 // pred_region
        %p341 = scmp.lt.s32.totalorder %s17, 1
        %s342 = scalar_select %p341, %s17, 1
        %s343 = smul.addr %s342, 8
        %s344 = scalar_lea.vmem %s7, %s343
      $region48: #{seq2seq_forward.3} parent=19 // pred_fallthru
        _
    $region20: #{seq2seq_forward.3} parent=5 // pred_fallthru
      _
    %p345 = scmp.le.s32.totalorder 1, %s17
    %p346 = scmp.lt.s32.totalorder %s17, 3
    %p347 = pnand %p345, %p346
    %p348 = pneg %p347
    // Predicated region
    $region49: #{seq2seq_forward.3} parent=5 // pred_check
      _
    $region50: #{seq2seq_forward.3} parent=5 // pred_check_branch
      %350 = sbr.rel (%p347) target = $region52
    $region51: #{seq2seq_forward.3} parent=5 // pred_region
      %s351 = ssub.s32 %s17, 1
      %p352 = pneg %p38
      %p353 = pneg %p35
      %p354 = scmp.lt.s32.totalorder %s22, 1
      %s355 = scalar_select %p354, %s22, 1
      %s356 = smul.addr %s355, 8
      %s357 = smul.addr %s356, 4
      %s358 = scalar_lea.vmem %s1, %s357
      %p359 = pneg %p64
      %p360 = pneg %p61
      %p361 = scmp.lt.s32.totalorder %s22, 1
      %s362 = scalar_select %p361, %s22, 1
      %s363 = smul.addr %s362, 8
      %s364 = scalar_lea.vmem %s2, %s363
      %p365 = pneg %p90
      %p366 = pneg %p87
      %p367 = scmp.lt.s32.totalorder %s22, 1
      %s368 = scalar_select %p367, %s22, 1
      %s369 = smul.addr %s368, 6
      %s370 = smul.addr %s369, 4
      %s371 = scalar_lea.vmem %s3, %s370
      %p372 = pneg %p116
      %p373 = pneg %p113
      %p374 = scmp.lt.s32.totalorder %s22, 1
      %s375 = scalar_select %p374, %s22, 1
      %s376 = smul.addr %s375, 6
      %s377 = smul.addr %s376, 4
      %s378 = scalar_lea.vmem %s4, %s377
      %p379 = pneg %p142
      %p380 = pneg %p139
      %p381 = scmp.lt.s32.totalorder %s22, 1
      %s382 = scalar_select %p381, %s22, 1
      %s383 = smul.addr %s382, 3
      %s384 = scalar_lea.vmem %s5, %s383
      %p385 = pneg %p168
      %p386 = pneg %p165
      %p387 = scmp.lt.s32.totalorder %s22, 1
      %s388 = scalar_select %p387, %s22, 1
      %s389 = scalar_lea.vmem %s6, %s388
      %p390 = pneg %p194
      %p391 = pneg %p191
      %p392 = scmp.lt.s32.totalorder %s22, 1
      %s393 = scalar_select %p392, %s22, 1
      %s394 = smul.addr %s393, 8
      %s395 = scalar_lea.vmem %s7, %s394
      %p396 = pneg %p220
      %p397 = pneg %p217
      %p398 = pneg %p246
      %p399 = pneg %p243
      %p400 = scmp.lt.s32.totalorder %s22, 1
      %s401 = scalar_select %p400, %s22, 1
      %s402 = smul.addr %s401, 8
      %s403 = smul.addr %s402, 8
      %s404 = scalar_lea.vmem %s8, %s403
      %p405 = pneg %p272
      %p406 = pneg %p269
      %p407 = scmp.lt.s32.totalorder %s22, 1
      %s408 = scalar_select %p407, %s22, 1
      %s409 = smul.addr %s408, 8
      %s410 = scalar_lea.vmem %s9, %s409
      %p411 = scmp.lt.s32.totalorder %s22, 1
      %s412 = scalar_select %p411, %s22, 1
      %s413 = smul.addr %s412, 8
      %s414 = smul.addr %s413, 4
      %s415 = scalar_lea.vmem %s1, %s414
      %p416 = scmp.lt.s32.totalorder %s22, 1
      %s417 = scalar_select %p416, %s22, 1
      %s418 = smul.addr %s417, 8
      %s419 = scalar_lea.vmem %s2, %s418
      %p420 = scmp.lt.s32.totalorder %s22, 1
      %s421 = scalar_select %p420, %s22, 1
      %s422 = smul.addr %s421, 6
      %s423 = smul.addr %s422, 4
      %s424 = scalar_lea.vmem %s3, %s423
      %p425 = scmp.lt.s32.totalorder %s22, 1
      %s426 = scalar_select %p425, %s22, 1
      %s427 = smul.addr %s426, 6
      %s428 = smul.addr %s427, 4
      %s429 = scalar_lea.vmem %s4, %s428
      %p430 = scmp.lt.s32.totalorder %s22, 1
      %s431 = scalar_select %p430, %s22, 1
      %s432 = smul.addr %s431, 3
      %s433 = scalar_lea.vmem %s5, %s432
      %p434 = scmp.lt.s32.totalorder %s22, 1
      %s435 = scalar_select %p434, %s22, 1
      %s436 = scalar_lea.vmem %s6, %s435
      %p437 = scmp.lt.s32.totalorder %s22, 1
      %s438 = scalar_select %p437, %s22, 1
      %s439 = smul.addr %s438, 8
      %s440 = scalar_lea.vmem %s7, %s439
      %p441 = scmp.lt.s32.totalorder %s22, 1
      %s442 = scalar_select %p441, %s22, 1
      %s443 = smul.addr %s442, 8
      %s444 = smul.addr %s443, 8
      %s445 = scalar_lea.vmem %s8, %s444
      %p446 = scmp.lt.s32.totalorder %s22, 1
      %s447 = scalar_select %p446, %s22, 1
      %s448 = smul.addr %s447, 8
      %s449 = scalar_lea.vmem %s9, %s448
      %v451 = vld [vmem:[%s415] sm:$0xf]
      %v452 = vld [vmem:[%s415 + $0x4] sm:$0xf]
      %v453 = vld [vmem:[%s415 + $0x8] sm:$0xf]
      %v454 = vld [vmem:[%s415 + $0xc] sm:$0xf]
      %v455 = vld [vmem:[%s415 + $0x10] sm:$0xf]
      %v456 = vld [vmem:[%s415 + $0x14] sm:$0xf]
      %v457 = vld [vmem:[%s415 + $0x18] sm:$0xf]
      %v458 = vld [vmem:[%s415 + $0x1c] sm:$0xf]
      %v459 = vld [vmem:[%s433] sm:$0x1]
      %v460 = vld [vmem:[%s433 + $0x1] sm:$0x1]
      %v461 = vld [vmem:[%s433 + $0x2] sm:$0x1]
      %v462 = vld [vmem:[%s424] sm:$0xf]
      %v463 = vld [vmem:[%s424 + $0x4] sm:$0xf]
      %v465 = vperm.slane %v459, 0
      %v475 = vunpack.c.l.b16 %v451
      %v476 = vunpack.c.l.b16 %v452
      %v477 = vunpack.c.l.b16 %v453
      %v478 = vunpack.c.l.b16 %v454
      %v479 = vunpack.c.l.b16 %v455
      %v480 = vunpack.c.l.b16 %v456
      %v481 = vunpack.c.l.b16 %v457
      %v482 = vunpack.c.l.b16 %v458
      %v483 = vpack.c.b16 %v476, %v475
      %v484 = vpack.c.b16 %v478, %v477
      %v485 = vpack.c.b16 %v480, %v479
      %v486 = vpack.c.b16 %v482, %v481
      %v489 = vunpack.c.l.b16 %v462
      %v490 = vunpack.c.l.b16 %v463
      %v491 = vpack.c.b16 %v490, %v489
      %vm493 = vcmask 130048
      %v495 = vsel %vm493, %v483, 0
      %v498 = vsel %vm493, %v484, 0
      %v501 = vsel %vm493, %v485, 0
      %v504 = vsel %vm493, %v486, 0
      %506 = vmatpush.bf16.msra.mxu0 0
      %507 = vmatpush.bf16.msra.mxu0 0
      %508 = vmatpush.bf16.msra.mxu0 0
      %509 = vmatpush.bf16.msra.mxu0 0
      %510 = vmatpush.bf16.msra.mxu0 0
      %511 = vmatpush.bf16.msra.mxu0 0
      %512 = vmatpush.bf16.msra.mxu0 0
      %513 = vmatpush.bf16.msra.mxu0 %v491
      %514 = vmatmul.bf16.gmra.mxu0 %v495
      %v515 = vpop.f32.mrf.mxu0
      %v516 = vadd.f32 %v465, %v515
      %v517 = vpop.f32.mrf.mxu0
      %v518 = vadd.f32 %v465, %v517
      %519 = vmatmul.bf16.gmra.mxu0 %v498
      %v520 = vpop.f32.mrf.mxu0
      %v521 = vadd.f32 %v465, %v520
      %v522 = vpop.f32.mrf.mxu0
      %v523 = vadd.f32 %v465, %v522
      %524 = vmatmul.bf16.gmra.mxu0 %v501
      %v525 = vpop.f32.mrf.mxu0
      %v526 = vadd.f32 %v465, %v525
      %v527 = vpop.f32.mrf.mxu0
      %v528 = vadd.f32 %v465, %v527
      %529 = vmatmul.bf16.gmra.mxu0 %v504
      %v530 = vpop.f32.mrf.mxu0
      %v531 = vadd.f32 %v465, %v530
      %v532 = vpop.f32.mrf.mxu0
      %v533 = vadd.f32 %v465, %v532
      %534 = vdwg.mxu0
      %535 = vst.msk [vmem:[#allocation3] sm:$0xff] %vm493, %v516
      %536 = vst.msk [vmem:[#allocation3 + $0x8] sm:$0xff] %vm493, %v518
      %537 = vst.msk [vmem:[#allocation3 + $0x10] sm:$0xff] %vm493, %v521
      %538 = vst.msk [vmem:[#allocation3 + $0x18] sm:$0xff] %vm493, %v523
      %539 = vst.msk [vmem:[#allocation3 + $0x20] sm:$0xff] %vm493, %v526
      %540 = vst.msk [vmem:[#allocation3 + $0x28] sm:$0xff] %vm493, %v528
      %541 = vst.msk [vmem:[#allocation3 + $0x30] sm:$0xff] %vm493, %v531
      %542 = vst.msk [vmem:[#allocation3 + $0x38] sm:$0xff] %vm493, %v533
      %s543 = scalar_lea.vmem %s424, 8
      %v544 = vld [vmem:[%s543] sm:$0xf]
      %v545 = vld [vmem:[%s543 + $0x4] sm:$0xf]
      %v547 = vperm.slane %v460, 0
      %v551 = vunpack.c.l.b16 %v544
      %v552 = vunpack.c.l.b16 %v545
      %v553 = vpack.c.b16 %v552, %v551
      %555 = vmatpush.bf16.msra.mxu0 0
      %556 = vmatpush.bf16.msra.mxu0 0
      %557 = vmatpush.bf16.msra.mxu0 0
      %558 = vmatpush.bf16.msra.mxu0 0
      %559 = vmatpush.bf16.msra.mxu0 0
      %560 = vmatpush.bf16.msra.mxu0 0
      %561 = vmatpush.bf16.msra.mxu0 0
      %562 = vmatpush.bf16.msra.mxu0 %v553
      %563 = vmatmul.bf16.gmra.mxu0 %v495
      %v564 = vpop.f32.mrf.mxu0
      %v565 = vadd.f32 %v547, %v564
      %v566 = vpop.f32.mrf.mxu0
      %v567 = vadd.f32 %v547, %v566
      %568 = vmatmul.bf16.gmra.mxu0 %v498
      %v569 = vpop.f32.mrf.mxu0
      %v570 = vadd.f32 %v547, %v569
      %v571 = vpop.f32.mrf.mxu0
      %v572 = vadd.f32 %v547, %v571
      %573 = vmatmul.bf16.gmra.mxu0 %v501
      %v574 = vpop.f32.mrf.mxu0
      %v575 = vadd.f32 %v547, %v574
      %v576 = vpop.f32.mrf.mxu0
      %v577 = vadd.f32 %v547, %v576
      %578 = vmatmul.bf16.gmra.mxu0 %v504
      %v579 = vpop.f32.mrf.mxu0
      %v580 = vadd.f32 %v547, %v579
      %v581 = vpop.f32.mrf.mxu0
      %v582 = vadd.f32 %v547, %v581
      %583 = vdwg.mxu0
      %584 = vst.msk [vmem:[#allocation4] sm:$0xff] %vm493, %v565
      %585 = vst.msk [vmem:[#allocation4 + $0x8] sm:$0xff] %vm493, %v567
      %586 = vst.msk [vmem:[#allocation4 + $0x10] sm:$0xff] %vm493, %v570
      %587 = vst.msk [vmem:[#allocation4 + $0x18] sm:$0xff] %vm493, %v572
      %588 = vst.msk [vmem:[#allocation4 + $0x20] sm:$0xff] %vm493, %v575
      %589 = vst.msk [vmem:[#allocation4 + $0x28] sm:$0xff] %vm493, %v577
      %590 = vst.msk [vmem:[#allocation4 + $0x30] sm:$0xff] %vm493, %v580
      %591 = vst.msk [vmem:[#allocation4 + $0x38] sm:$0xff] %vm493, %v582
      %s592 = scalar_lea.vmem %s424, 16
      %v593 = vld [vmem:[%s592] sm:$0xf]
      %v594 = vld [vmem:[%s592 + $0x4] sm:$0xf]
      %v596 = vperm.slane %v461, 0
      %v600 = vunpack.c.l.b16 %v593
      %v601 = vunpack.c.l.b16 %v594
      %v602 = vpack.c.b16 %v601, %v600
      %604 = vmatpush.bf16.msra.mxu0 0
      %605 = vmatpush.bf16.msra.mxu0 0
      %606 = vmatpush.bf16.msra.mxu0 0
      %607 = vmatpush.bf16.msra.mxu0 0
      %608 = vmatpush.bf16.msra.mxu0 0
      %609 = vmatpush.bf16.msra.mxu0 0
      %610 = vmatpush.bf16.msra.mxu0 0
      %611 = vmatpush.bf16.msra.mxu0 %v602
      %612 = vmatmul.bf16.gmra.mxu0 %v495
      %v613 = vpop.f32.mrf.mxu0
      %v614 = vadd.f32 %v596, %v613
      %v615 = vpop.f32.mrf.mxu0
      %v616 = vadd.f32 %v596, %v615
      %617 = vmatmul.bf16.gmra.mxu0 %v498
      %v618 = vpop.f32.mrf.mxu0
      %v619 = vadd.f32 %v596, %v618
      %v620 = vpop.f32.mrf.mxu0
      %v621 = vadd.f32 %v596, %v620
      %622 = vmatmul.bf16.gmra.mxu0 %v501
      %v623 = vpop.f32.mrf.mxu0
      %v624 = vadd.f32 %v596, %v623
      %v625 = vpop.f32.mrf.mxu0
      %v626 = vadd.f32 %v596, %v625
      %627 = vmatmul.bf16.gmra.mxu0 %v504
      %v628 = vpop.f32.mrf.mxu0
      %v629 = vadd.f32 %v596, %v628
      %v630 = vpop.f32.mrf.mxu0
      %v631 = vadd.f32 %v596, %v630
      %632 = vdwg.mxu0
      %633 = vst.msk [vmem:[#allocation5] sm:$0xff] %vm493, %v614
      %634 = vst.msk [vmem:[#allocation5 + $0x8] sm:$0xff] %vm493, %v616
      %635 = vst.msk [vmem:[#allocation5 + $0x10] sm:$0xff] %vm493, %v619
      %636 = vst.msk [vmem:[#allocation5 + $0x18] sm:$0xff] %vm493, %v621
      %637 = vst.msk [vmem:[#allocation5 + $0x20] sm:$0xff] %vm493, %v624
      %638 = vst.msk [vmem:[#allocation5 + $0x28] sm:$0xff] %vm493, %v626
      %639 = vst.msk [vmem:[#allocation5 + $0x30] sm:$0xff] %vm493, %v629
      %640 = vst.msk [vmem:[#allocation5 + $0x38] sm:$0xff] %vm493, %v631
      %641 = vst.msk [vmem:[%s445] sm:$0xff] %vm493, 0.0
      %642 = vst.msk [vmem:[%s445 + $0x8] sm:$0xff] %vm493, 0.0
      %643 = vst.msk [vmem:[%s445 + $0x10] sm:$0xff] %vm493, 0.0
      %644 = vst.msk [vmem:[%s445 + $0x18] sm:$0xff] %vm493, 0.0
      %645 = vst.msk [vmem:[%s445 + $0x20] sm:$0xff] %vm493, 0.0
      %646 = vst.msk [vmem:[%s445 + $0x28] sm:$0xff] %vm493, 0.0
      %647 = vst.msk [vmem:[%s445 + $0x30] sm:$0xff] %vm493, 0.0
      %648 = vst.msk [vmem:[%s445 + $0x38] sm:$0xff] %vm493, 0.0
      %v649 = vld [vmem:[%s419] sm:$0xff]
      %650 = vst.msk [vmem:[#allocation2] sm:$0xff] %vm493, %v649
      %v651 = vld [vmem:[%s429] sm:$0xf]
      %v652 = vld [vmem:[%s429 + $0x4] sm:$0xf]
      %s653 = scalar_lea.vmem %s429, 8
      %v654 = vld [vmem:[%s653] sm:$0xf]
      %v655 = vld [vmem:[%s653 + $0x4] sm:$0xf]
      %s656 = scalar_lea.vmem %s429, 16
      %v657 = vld [vmem:[%s656] sm:$0xf]
      %v658 = vld [vmem:[%s656 + $0x4] sm:$0xf]
      %v659 = vld [vmem:[%s436] sm:$0x1]
      %v660 = vld [vmem:[%s440] sm:$0xff]
      %s661 = sld [smem:[#allocation6]]
      // While loop
      $region53: #{seq2seq_forward.3} parent=51 // loop_pre_header
        _
      $region54: #{seq2seq_forward.3} parent=51 // loop_header
        %s663 = sphi 0, %s665
        %p664 = scmp.ge.s32.totalorder %s663, %s661
      $region55: #{seq2seq_forward.3} parent=51 // loop_header_branch
        %667 = sbr.rel (%p664) target = $region59
      $region56: #{seq2seq_forward.3} parent=51 // loop_body
        %v668 = vld [vmem:[#allocation2] sm:$0xff]
        %v669 = vpack.c.bf16 %v668, %v668
        %v672 = vunpack.c.l.b16 %v651
        %v673 = vunpack.c.l.b16 %v652
        %v674 = vpack.c.b16 %v673, %v672
        %v677 = vsel %vm493, %v669, 0
        %679 = vmatpush.bf16.msra.mxu0 0
        %680 = vmatpush.bf16.msra.mxu0 0
        %681 = vmatpush.bf16.msra.mxu0 0
        %682 = vmatpush.bf16.msra.mxu0 0
        %683 = vmatpush.bf16.msra.mxu0 0
        %684 = vmatpush.bf16.msra.mxu0 0
        %685 = vmatpush.bf16.msra.mxu0 0
        %686 = vmatpush.bf16.msra.mxu0 %v674
        %687 = vmatmul.bf16.gmra.mxu0 %v677
        %v688 = vpop.f32.mrf.mxu0
        %v689 = vadd.f32 0.0, %v688
        %v690 = vpop.f32.mrf.mxu0
        %691 = vdwg.mxu0
        %v694 = vunpack.c.l.b16 %v654
        %v695 = vunpack.c.l.b16 %v655
        %v696 = vpack.c.b16 %v695, %v694
        %698 = vmatpush.bf16.msra.mxu0 0
        %699 = vmatpush.bf16.msra.mxu0 0
        %700 = vmatpush.bf16.msra.mxu0 0
        %701 = vmatpush.bf16.msra.mxu0 0
        %702 = vmatpush.bf16.msra.mxu0 0
        %703 = vmatpush.bf16.msra.mxu0 0
        %704 = vmatpush.bf16.msra.mxu0 0
        %705 = vmatpush.bf16.msra.mxu0 %v696
        %706 = vmatmul.bf16.gmra.mxu0 %v677
        %v707 = vpop.f32.mrf.mxu0
        %v708 = vadd.f32 0.0, %v707
        %v709 = vpop.f32.mrf.mxu0
        %710 = vdwg.mxu0
        %v712 = vperm.slane %v659, 0
        %v716 = vunpack.c.l.b16 %v657
        %v717 = vunpack.c.l.b16 %v658
        %v718 = vpack.c.b16 %v717, %v716
        %720 = vmatpush.bf16.msra.mxu0 0
        %721 = vmatpush.bf16.msra.mxu0 0
        %722 = vmatpush.bf16.msra.mxu0 0
        %723 = vmatpush.bf16.msra.mxu0 0
        %724 = vmatpush.bf16.msra.mxu0 0
        %725 = vmatpush.bf16.msra.mxu0 0
        %726 = vmatpush.bf16.msra.mxu0 0
        %727 = vmatpush.bf16.msra.mxu0 %v718
        %728 = vmatmul.bf16.gmra.mxu0 %v677
        %v729 = vpop.f32.mrf.mxu0
        %v730 = vadd.f32 %v712, %v729
        %v731 = vpop.f32.mrf.mxu0
        %732 = vdwg.mxu0
        %s733 = smul.u32 %s663, 8
        %s734 = scalar_lea.vmem [#allocation3], %s733
        %v735 = vld [vmem:[%s734] sm:$0xff]
        %v736 = vadd.f32 %v735, %v689
        %v737 = vxor.u32 %v736, 2147483648
        %v738 = vmul.f32 %v737, 1.442695
        %v739 = vpow.pop %v738
        %v740 = vadd.f32 %v739, 1.0
        %v741 = vrcp.pop %v740
        %v742 = vmul.f32 %v740, %v741
        %v743 = vsub.f32 1.0, %v742
        %v744 = vmul.f32 %v741, %v743
        %v745 = vadd.f32 %v741, %v744
        %vm746 = vweird.f32 %v740
        %vm747 = vweird.f32 %v741
        %vm748 = vmor %vm746, %vm747
        %v749 = vsel %vm748, %v741, %v745
        %v750 = vand.u32 2147483647, %v740
        %vm751 = vcmp.eq.f32.partialorder %v750, 8.507059e+37
        %v752 = vand.u32 %v740, 2147483648
        %v753 = vor.u32 1.1754944e-38, %v752
        %v754 = vsel %vm751, %v753, %v749
        %v755 = vmul.f32 1.0, %v754
        %s756 = scalar_lea.vmem [#allocation4], %s733
        %v757 = vld [vmem:[%s756] sm:$0xff]
        %v758 = vadd.f32 %v757, %v708
        %v759 = vxor.u32 %v758, 2147483648
        %v760 = vmul.f32 %v759, 1.442695
        %v761 = vpow.pop %v760
        %v762 = vadd.f32 %v761, 1.0
        %v763 = vrcp.pop %v762
        %v764 = vmul.f32 %v762, %v763
        %v765 = vsub.f32 1.0, %v764
        %v766 = vmul.f32 %v763, %v765
        %v767 = vadd.f32 %v763, %v766
        %vm768 = vweird.f32 %v762
        %vm769 = vweird.f32 %v763
        %vm770 = vmor %vm768, %vm769
        %v771 = vsel %vm770, %v763, %v767
        %v772 = vand.u32 2147483647, %v762
        %vm773 = vcmp.eq.f32.partialorder %v772, 8.507059e+37
        %v774 = vand.u32 %v762, 2147483648
        %v775 = vor.u32 1.1754944e-38, %v774
        %v776 = vsel %vm773, %v775, %v771
        %v777 = vmul.f32 1.0, %v776
        %s778 = scalar_lea.vmem [#allocation5], %s733
        %v779 = vld [vmem:[%s778] sm:$0xff]
        %v780 = vmul.f32 %v755, %v730
        %v781 = vadd.f32 %v779, %v780
        %v782 = vtanh.pop %v781
        %v783 = vsub.f32 1.0, %v777
        %v784 = vmul.f32 %v783, %v782
        %v785 = vmul.f32 %v777, %v668
        %v786 = vadd.f32 %v784, %v785
        %v787 = vstv %s663
        %vm788 = vcmp.gt.s32.totalorder %v660, %v787
        %v789 = vsel %vm788, 1, 0
        %790 = vset.pattern.permute.xlu0 0
        %791 = vperm.xlu0 %790, %v789
        %v792 = vpop.permute.xlu0 %791
        %vm793 = vcmp.eq.s32.totalorder %v792, 1
        %v794 = vsel %vm793, %v786, %v668
        %795 = vst.msk [vmem:[#allocation2] sm:$0xff] %vm493, %v794
        %v796 = vsel %vm793, %v786, 0.0
        %s797 = scalar_lea.vmem %s445, %s733
        %798 = vst.msk [vmem:[%s797] sm:$0xff] %vm493, %v796
      $region57: #{seq2seq_forward.3} parent=51 // loop_footer
        %s665 = sadd.s32 %s663, 1
      $region58: #{seq2seq_forward.3} parent=51 // loop_footer_branch
        %662 = sbr.rel target = $region54
      $region59: #{seq2seq_forward.3} parent=51 // loop_exit
        _
      %v799 = vld [vmem:[#allocation2] sm:$0xff]
      %800 = vst.msk [vmem:[%s449] sm:$0xff] %vm493, %v799
      %p801 = scmp.lt.s32.totalorder %s22, 1
      %s802 = scalar_select %p801, %s22, 1
      %s803 = smul.addr %s802, 8
      %s804 = smul.addr %s803, 8
      %s805 = scalar_lea.vmem %s8, %s804
      %p806 = scmp.lt.s32.totalorder %s22, 1
      %s807 = scalar_select %p806, %s22, 1
      %s808 = smul.addr %s807, 8
      %s809 = scalar_lea.vmem %s9, %s808
      // Predicated region
      $region60: #{seq2seq_forward.3} parent=51 // pred_check
        %p810 = pneg %p243
      $region61: #{seq2seq_forward.3} parent=51 // pred_check_branch
        %812 = sbr.rel (%p810) target = $region63
      $region62: #{seq2seq_forward.3} parent=51 // pred_region
        _
      $region63: #{seq2seq_forward.3} parent=51 // pred_fallthru
        _
      // Predicated region
      $region64: #{seq2seq_forward.3} parent=51 // pred_check
        %p813 = pneg %p269
      $region65: #{seq2seq_forward.3} parent=51 // pred_check_branch
        %815 = sbr.rel (%p813) target = $region67
      $region66: #{seq2seq_forward.3} parent=51 // pred_region
        _
      $region67: #{seq2seq_forward.3} parent=51 // pred_fallthru
        _
    $region52: #{seq2seq_forward.3} parent=5 // pred_fallthru
      _
    %p816 = scmp.le.s32.totalorder 2, %s17
    // Predicated region
    $region68: #{seq2seq_forward.3} parent=5 // pred_check
      %p817 = pneg %p816
    $region69: #{seq2seq_forward.3} parent=5 // pred_check_branch
      %819 = sbr.rel (%p817) target = $region71
    $region70: #{seq2seq_forward.3} parent=5 // pred_region
      %s820 = ssub.s32 %s17, 2
      // Predicated region
      $region72: #{seq2seq_forward.3} parent=70 // pred_check
        %p821 = pneg %p249
      $region73: #{seq2seq_forward.3} parent=70 // pred_check_branch
        %823 = sbr.rel (%p821) target = $region75
      $region74: #{seq2seq_forward.3} parent=70 // pred_region
        %p824 = scmp.lt.s32.totalorder %s23, 1
        %s825 = scalar_select %p824, %s23, 1
        %s826 = smul.addr %s825, 8
        %s827 = smul.addr %s826, 8
        %s828 = scalar_lea.vmem %s8, %s827
      $region75: #{seq2seq_forward.3} parent=70 // pred_fallthru
        _
      // Predicated region
      $region76: #{seq2seq_forward.3} parent=70 // pred_check
        %p829 = pneg %p275
      $region77: #{seq2seq_forward.3} parent=70 // pred_check_branch
        %831 = sbr.rel (%p829) target = $region79
      $region78: #{seq2seq_forward.3} parent=70 // pred_region
        %p832 = scmp.lt.s32.totalorder %s23, 1
        %s833 = scalar_select %p832, %s23, 1
        %s834 = smul.addr %s833, 8
        %s835 = scalar_lea.vmem %s9, %s834
      $region79: #{seq2seq_forward.3} parent=70 // pred_fallthru
        _
    $region71: #{seq2seq_forward.3} parent=5 // pred_fallthru
      _
  $region6: #{seq2seq_forward.3} parent=0 // loop_footer
    %s21 = sadd.s32 1, %s17
  $region7: #{seq2seq_forward.3} parent=0 // loop_footer_branch
    %16 = sbr.rel target = $region3
  $region8: #{seq2seq_forward.3} parent=0 // loop_exit
    _

// kernel: seq2seq_forward.5
$region0: #{seq2seq_forward.5}
  #allocation0 [shape = 'u32[]', space=smem, size = 0x4, offset = 0x4, fixed_abs, tag = 'smem constant byte address 0x4 - core index']
  #allocation1 [shape = 'u32[72,128]{1,0:T(1,128)}', space=vmem, size = 0x9000, scoped, tag = 'internal scratch']
  %s0 = inlined_call_operand.vmem [shape: s32[2], index: 0, kind: input, shape index: {}]
  %s1 = inlined_call_operand.vmem [shape: s32[2], index: 1, kind: input, shape index: {}]
  %s2 = inlined_call_operand.vmem [shape: bf16[2,8,32], index: 2, kind: input, shape index: {}]
  %s3 = inlined_call_operand.vmem [shape: bf16[2,8,32], index: 3, kind: input, shape index: {}]
  %s4 = inlined_call_operand.vmem [shape: bf16[32,32], index: 4, kind: input, shape index: {}]
  %s5 = inlined_call_operand.vmem [shape: bf16[32,32], index: 5, kind: input, shape index: {}]
  %s6 = inlined_call_operand.vmem [shape: bf16[32,32], index: 6, kind: input, shape index: {}]
  %s7 = inlined_call_operand.vmem [shape: f32[1,32], index: 7, kind: input, shape index: {}]
  %s8 = inlined_call_operand.vmem [shape: bf16[32,128], index: 8, kind: input, shape index: {}]
  %s9 = inlined_call_operand.vmem [shape: f32[1,128], index: 9, kind: input, shape index: {}]
  %s10 = inlined_call_operand.hbm [shape: f32[2,8,128], index: 10, kind: output, shape index: {0}]
  %s11 = inlined_call_operand.hbm [shape: f32[2,8,8], index: 11, kind: output, shape index: {1}]
  %12 = xla_tuple %s10, %s11
  %s13 = sld [smem:[#allocation0]]
  $region89: #{seq2seq_forward.5} parent=0
    _
  %s15 = ssub.s32 1, %s13
  %s16 = scalar_select 0, %s15, %s13
  $region1: #{seq2seq_forward.5} parent=0
    #allocation2 [shape = 'u8[512]{0}', space=smem, size = 0x200, scoped, tag = 'input window, operand 0, single buffered']
    #allocation3 [shape = 's32[2]{0}', space=sflag, size = 0x8, scoped, tag = 'scoped memory for seq2seq_forward.5']
    #allocation4 [shape = 's32[2]{0}', space=sflag, size = 0x8, scoped, tag = 'scoped memory for seq2seq_forward.5']
    #allocation5 [shape = 'u8[512]{0}', space=smem, size = 0x200, scoped, tag = 'input window, operand 1, single buffered']
    #allocation6 [shape = 's32[1]{0}', space=sflag, size = 0x4, scoped, tag = 'scoped memory for seq2seq_forward.5']
    #allocation7 [shape = 'u8[8192]{0}', space=vmem, size = 0x2000, scoped, tag = 'output window, operand 0']
    #allocation8 [shape = 'u8[8192]{0}', space=vmem, size = 0x2000, scoped, tag = 'output window, operand 1']
    #allocation9 [shape = 's32[2]{0}', space=sflag, size = 0x8, scoped, tag = 'scoped memory for seq2seq_forward.5']
    %17 = vsyncpa [#allocation4], 0
    %18 = vsyncpa [#allocation6], 0
    %19 = vsyncpa [#allocation3], 0
    %s20 = scalar_lea.sflag [#allocation3], 1
    %21 = vsyncpa %s20, 0
    %22 = vsyncpa [#allocation9], 0
    %s23 = scalar_lea.sflag [#allocation9], 1
    %24 = vsyncpa %s23, 0
    loop: start=0, step=1, limit=4
    $region2: #{seq2seq_forward.5} parent=1 // loop_pre_header
      _
    $region3: #{seq2seq_forward.5} parent=1 // loop_header
      %s26 = sphi 0, %s30
      %p27 = scmp.ge.s32.totalorder %s26, 4
      %s34 = sphi 0, %s34
      %s36 = sphi 0, %s34
      %s37 = sphi 0, %s36
      %s51 = sphi 0, %s37
      %s55 = sphi 0, %s55
      %s57 = sphi 0, %s55
      %s58 = sphi 0, %s57
      %s72 = sphi 0, %s58
      %s78 = sphi 0, %s80
      %s81 = sphi 0, %s78
      %s82 = sphi 0, %s81
      %s98 = sphi 0, %s82
      %s104 = sphi 0, %s106
      %s107 = sphi 0, %s104
      %s108 = sphi 0, %s107
      %s124 = sphi 0, %s108
      %s128 = sphi 0, %s128
      %s130 = sphi 0, %s128
      %s131 = sphi 0, %s130
      %s145 = sphi 0, %s131
      %s149 = sphi 0, %s149
      %s151 = sphi 0, %s149
      %s152 = sphi 0, %s151
      %s166 = sphi 0, %s152
      %s170 = sphi 0, %s170
      %s172 = sphi 0, %s170
      %s173 = sphi 0, %s172
      %s187 = sphi 0, %s173
      %s191 = sphi 0, %s191
      %s193 = sphi 0, %s191
      %s194 = sphi 0, %s193
      %s208 = sphi 0, %s194
      %s212 = sphi 0, %s212
      %s214 = sphi 0, %s212
      %s215 = sphi 0, %s214
      %s229 = sphi 0, %s215
      %s233 = sphi 0, %s233
      %s235 = sphi 0, %s233
      %s236 = sphi 0, %s235
      %s250 = sphi 0, %s236
      %s256 = sphi 0, %s258
      %s259 = sphi 0, %s256
      %s260 = sphi 0, %s259
      %s276 = sphi 0, %s260
      %s282 = sphi 0, %s284
      %s285 = sphi 0, %s282
      %s286 = sphi 0, %s285
      %s302 = sphi 0, %s286
    $region4: #{seq2seq_forward.5} parent=1 // loop_header_branch
      %29 = sbr.rel (%p27) target = $region8
    $region5: #{seq2seq_forward.5} parent=1 // loop_body
      %s31 = ssub.s32 %s26, 1
      %s32 = ssub.s32 %s26, 2
      %s33 = sadd.s32 %s26, 1
      %s35 = sadd.s32 %s34, 1
      %p38 = scmp.eq.s32.totalorder %s26, 1
      %p39 = scmp.ne.s32.totalorder %s34, %s36
      %p40 = scmp.eq.s32.totalorder %s26, 0
      %p41 = por %p39, %p40
      %p42 = scmp.ne.s32.totalorder %s34, %s36
      %p43 = scmp.eq.s32.totalorder %s31, 1
      %p44 = por %p42, %p43
      %p45 = scmp.ne.s32.totalorder %s36, %s37
      %p46 = scmp.eq.s32.totalorder %s31, 0
      %p47 = por %p45, %p46
      %p48 = scmp.ne.s32.totalorder %s36, %s37
      %p49 = scmp.eq.s32.totalorder %s32, 1
      %p50 = por %p48, %p49
      %p52 = scmp.ne.s32.totalorder %s37, %s51
      %p53 = scmp.eq.s32.totalorder %s32, 0
      %p54 = por %p52, %p53
      %s56 = sadd.s32 %s55, 1
      %p59 = scmp.eq.s32.totalorder %s26, 1
      %p60 = scmp.ne.s32.totalorder %s55, %s57
      %p61 = scmp.eq.s32.totalorder %s26, 0
      %p62 = por %p60, %p61
      %p63 = scmp.ne.s32.totalorder %s55, %s57
      %p64 = scmp.eq.s32.totalorder %s31, 1
      %p65 = por %p63, %p64
      %p66 = scmp.ne.s32.totalorder %s57, %s58
      %p67 = scmp.eq.s32.totalorder %s31, 0
      %p68 = por %p66, %p67
      %p69 = scmp.ne.s32.totalorder %s57, %s58
      %p70 = scmp.eq.s32.totalorder %s32, 1
      %p71 = por %p69, %p70
      %p73 = scmp.ne.s32.totalorder %s58, %s72
      %p74 = scmp.eq.s32.totalorder %s32, 0
      %p75 = por %p73, %p74
      %s76 = ssub.s32 %s26, %s33
      %p77 = scmp.eq.s32.totalorder %s76, 0
      %s79 = sadd.s32 %s78, 1
      %s80 = scalar_select %p77, %s78, %s79
      %p83 = pneg %p77
      %p84 = scmp.eq.s32.totalorder %s26, 1
      %p85 = por %p83, %p84
      %p86 = scmp.ne.s32.totalorder %s78, %s81
      %p87 = scmp.eq.s32.totalorder %s26, 0
      %p88 = por %p86, %p87
      %p89 = scmp.ne.s32.totalorder %s78, %s81
      %p90 = scmp.eq.s32.totalorder %s31, 1
      %p91 = por %p89, %p90
      %p92 = scmp.ne.s32.totalorder %s81, %s82
      %p93 = scmp.eq.s32.totalorder %s31, 0
      %p94 = por %p92, %p93
      %p95 = scmp.ne.s32.totalorder %s81, %s82
      %p96 = scmp.eq.s32.totalorder %s32, 1
      %p97 = por %p95, %p96
      %p99 = scmp.ne.s32.totalorder %s82, %s98
      %p100 = scmp.eq.s32.totalorder %s32, 0
      %p101 = por %p99, %p100
      %s102 = ssub.s32 %s26, %s33
      %p103 = scmp.eq.s32.totalorder %s102, 0
      %s105 = sadd.s32 %s104, 1
      %s106 = scalar_select %p103, %s104, %s105
      %p109 = pneg %p103
      %p110 = scmp.eq.s32.totalorder %s26, 1
      %p111 = por %p109, %p110
      %p112 = scmp.ne.s32.totalorder %s104, %s107
      %p113 = scmp.eq.s32.totalorder %s26, 0
      %p114 = por %p112, %p113
      %p115 = scmp.ne.s32.totalorder %s104, %s107
      %p116 = scmp.eq.s32.totalorder %s31, 1
      %p117 = por %p115, %p116
      %p118 = scmp.ne.s32.totalorder %s107, %s108
      %p119 = scmp.eq.s32.totalorder %s31, 0
      %p120 = por %p118, %p119
      %p121 = scmp.ne.s32.totalorder %s107, %s108
      %p122 = scmp.eq.s32.totalorder %s32, 1
      %p123 = por %p121, %p122
      %p125 = scmp.ne.s32.totalorder %s108, %s124
      %p126 = scmp.eq.s32.totalorder %s32, 0
      %p127 = por %p125, %p126
      %s129 = sadd.s32 %s128, 1
      %p132 = scmp.eq.s32.totalorder %s26, 1
      %p133 = scmp.ne.s32.totalorder %s128, %s130
      %p134 = scmp.eq.s32.totalorder %s26, 0
      %p135 = por %p133, %p134
      %p136 = scmp.ne.s32.totalorder %s128, %s130
      %p137 = scmp.eq.s32.totalorder %s31, 1
      %p138 = por %p136, %p137
      %p139 = scmp.ne.s32.totalorder %s130, %s131
      %p140 = scmp.eq.s32.totalorder %s31, 0
      %p141 = por %p139, %p140
      %p142 = scmp.ne.s32.totalorder %s130, %s131
      %p143 = scmp.eq.s32.totalorder %s32, 1
      %p144 = por %p142, %p143
      %p146 = scmp.ne.s32.totalorder %s131, %s145
      %p147 = scmp.eq.s32.totalorder %s32, 0
      %p148 = por %p146, %p147
      %s150 = sadd.s32 %s149, 1
      %p153 = scmp.eq.s32.totalorder %s26, 1
      %p154 = scmp.ne.s32.totalorder %s149, %s151
      %p155 = scmp.eq.s32.totalorder %s26, 0
      %p156 = por %p154, %p155
      %p157 = scmp.ne.s32.totalorder %s149, %s151
      %p158 = scmp.eq.s32.totalorder %s31, 1
      %p159 = por %p157, %p158
      %p160 = scmp.ne.s32.totalorder %s151, %s152
      %p161 = scmp.eq.s32.totalorder %s31, 0
      %p162 = por %p160, %p161
      %p163 = scmp.ne.s32.totalorder %s151, %s152
      %p164 = scmp.eq.s32.totalorder %s32, 1
      %p165 = por %p163, %p164
      %p167 = scmp.ne.s32.totalorder %s152, %s166
      %p168 = scmp.eq.s32.totalorder %s32, 0
      %p169 = por %p167, %p168
      %s171 = sadd.s32 %s170, 1
      %p174 = scmp.eq.s32.totalorder %s26, 1
      %p175 = scmp.ne.s32.totalorder %s170, %s172
      %p176 = scmp.eq.s32.totalorder %s26, 0
      %p177 = por %p175, %p176
      %p178 = scmp.ne.s32.totalorder %s170, %s172
      %p179 = scmp.eq.s32.totalorder %s31, 1
      %p180 = por %p178, %p179
      %p181 = scmp.ne.s32.totalorder %s172, %s173
      %p182 = scmp.eq.s32.totalorder %s31, 0
      %p183 = por %p181, %p182
      %p184 = scmp.ne.s32.totalorder %s172, %s173
      %p185 = scmp.eq.s32.totalorder %s32, 1
      %p186 = por %p184, %p185
      %p188 = scmp.ne.s32.totalorder %s173, %s187
      %p189 = scmp.eq.s32.totalorder %s32, 0
      %p190 = por %p188, %p189
      %s192 = sadd.s32 %s191, 1
      %p195 = scmp.eq.s32.totalorder %s26, 1
      %p196 = scmp.ne.s32.totalorder %s191, %s193
      %p197 = scmp.eq.s32.totalorder %s26, 0
      %p198 = por %p196, %p197
      %p199 = scmp.ne.s32.totalorder %s191, %s193
      %p200 = scmp.eq.s32.totalorder %s31, 1
      %p201 = por %p199, %p200
      %p202 = scmp.ne.s32.totalorder %s193, %s194
      %p203 = scmp.eq.s32.totalorder %s31, 0
      %p204 = por %p202, %p203
      %p205 = scmp.ne.s32.totalorder %s193, %s194
      %p206 = scmp.eq.s32.totalorder %s32, 1
      %p207 = por %p205, %p206
      %p209 = scmp.ne.s32.totalorder %s194, %s208
      %p210 = scmp.eq.s32.totalorder %s32, 0
      %p211 = por %p209, %p210
      %s213 = sadd.s32 %s212, 1
      %p216 = scmp.eq.s32.totalorder %s26, 1
      %p217 = scmp.ne.s32.totalorder %s212, %s214
      %p218 = scmp.eq.s32.totalorder %s26, 0
      %p219 = por %p217, %p218
      %p220 = scmp.ne.s32.totalorder %s212, %s214
      %p221 = scmp.eq.s32.totalorder %s31, 1
      %p222 = por %p220, %p221
      %p223 = scmp.ne.s32.totalorder %s214, %s215
      %p224 = scmp.eq.s32.totalorder %s31, 0
      %p225 = por %p223, %p224
      %p226 = scmp.ne.s32.totalorder %s214, %s215
      %p227 = scmp.eq.s32.totalorder %s32, 1
      %p228 = por %p226, %p227
      %p230 = scmp.ne.s32.totalorder %s215, %s229
      %p231 = scmp.eq.s32.totalorder %s32, 0
      %p232 = por %p230, %p231
      %s234 = sadd.s32 %s233, 1
      %p237 = scmp.eq.s32.totalorder %s26, 1
      %p238 = scmp.ne.s32.totalorder %s233, %s235
      %p239 = scmp.eq.s32.totalorder %s26, 0
      %p240 = por %p238, %p239
      %p241 = scmp.ne.s32.totalorder %s233, %s235
      %p242 = scmp.eq.s32.totalorder %s31, 1
      %p243 = por %p241, %p242
      %p244 = scmp.ne.s32.totalorder %s235, %s236
      %p245 = scmp.eq.s32.totalorder %s31, 0
      %p246 = por %p244, %p245
      %p247 = scmp.ne.s32.totalorder %s235, %s236
      %p248 = scmp.eq.s32.totalorder %s32, 1
      %p249 = por %p247, %p248
      %p251 = scmp.ne.s32.totalorder %s236, %s250
      %p252 = scmp.eq.s32.totalorder %s32, 0
      %p253 = por %p251, %p252
      %s254 = ssub.s32 %s26, %s33
      %p255 = scmp.eq.s32.totalorder %s254, 0
      %s257 = sadd.s32 %s256, 1
      %s258 = scalar_select %p255, %s256, %s257
      %p261 = pneg %p255
      %p262 = scmp.eq.s32.totalorder %s26, 1
      %p263 = por %p261, %p262
      %p264 = scmp.ne.s32.totalorder %s256, %s259
      %p265 = scmp.eq.s32.totalorder %s26, 0
      %p266 = por %p264, %p265
      %p267 = scmp.ne.s32.totalorder %s256, %s259
      %p268 = scmp.eq.s32.totalorder %s31, 1
      %p269 = por %p267, %p268
      %p270 = scmp.ne.s32.totalorder %s259, %s260
      %p271 = scmp.eq.s32.totalorder %s31, 0
      %p272 = por %p270, %p271
      %p273 = scmp.ne.s32.totalorder %s259, %s260
      %p274 = scmp.eq.s32.totalorder %s32, 1
      %p275 = por %p273, %p274
      %p277 = scmp.ne.s32.totalorder %s260, %s276
      %p278 = scmp.eq.s32.totalorder %s32, 0
      %p279 = por %p277, %p278
      %s280 = ssub.s32 %s26, %s33
      %p281 = scmp.eq.s32.totalorder %s280, 0
      %s283 = sadd.s32 %s282, 1
      %s284 = scalar_select %p281, %s282, %s283
      %p287 = pneg %p281
      %p288 = scmp.eq.s32.totalorder %s26, 1
      %p289 = por %p287, %p288
      %p290 = scmp.ne.s32.totalorder %s282, %s285
      %p291 = scmp.eq.s32.totalorder %s26, 0
      %p292 = por %p290, %p291
      %p293 = scmp.ne.s32.totalorder %s282, %s285
      %p294 = scmp.eq.s32.totalorder %s31, 1
      %p295 = por %p293, %p294
      %p296 = scmp.ne.s32.totalorder %s285, %s286
      %p297 = scmp.eq.s32.totalorder %s31, 0
      %p298 = por %p296, %p297
      %p299 = scmp.ne.s32.totalorder %s285, %s286
      %p300 = scmp.eq.s32.totalorder %s32, 1
      %p301 = por %p299, %p300
      %p303 = scmp.ne.s32.totalorder %s286, %s302
      %p304 = scmp.eq.s32.totalorder %s32, 0
      %p305 = por %p303, %p304
      %p306 = scmp.le.s32.totalorder 1, %s26
      %p307 = scmp.lt.s32.totalorder %s26, 3
      %p308 = pnand %p306, %p307
      %p309 = pneg %p308
      // Predicated region
      $region9: #{seq2seq_forward.5} parent=5 // pred_check
        _
      $region10: #{seq2seq_forward.5} parent=5 // pred_check_branch
        %311 = sbr.rel (%p308) target = $region12
      $region11: #{seq2seq_forward.5} parent=5 // pred_region
        %s312 = ssub.s32 %s26, 1
        // Predicated region
        $region13: #{seq2seq_forward.5} parent=11 // pred_check
          %p313 = pneg %p47
        $region14: #{seq2seq_forward.5} parent=11 // pred_check_branch
          %315 = sbr.rel (%p313) target = $region16
        $region15: #{seq2seq_forward.5} parent=11 // pred_region
          %317 = vsyncadd [#allocation4], 0
          %s319 = sshll.u32 %s0, 4
          %s320 = int_to_ptr.vmem [resolvable:$true] %s319
          %322 = dma.vmem_to_smem %s320, 16, [#allocation2], [#allocation4]
        $region16: #{seq2seq_forward.5} parent=11 // pred_fallthru
          _
        // Predicated region
        $region17: #{seq2seq_forward.5} parent=11 // pred_check
          %p323 = pneg %p68
        $region18: #{seq2seq_forward.5} parent=11 // pred_check_branch
          %325 = sbr.rel (%p323) target = $region20
        $region19: #{seq2seq_forward.5} parent=11 // pred_region
          %327 = vsyncadd [#allocation6], 0
          %s329 = sshll.u32 %s1, 4
          %s330 = int_to_ptr.vmem [resolvable:$true] %s329
          %332 = dma.vmem_to_smem %s330, 16, [#allocation5], [#allocation6]
        $region20: #{seq2seq_forward.5} parent=11 // pred_fallthru
          _
        // Predicated region
        $region21: #{seq2seq_forward.5} parent=11 // pred_check
          %p333 = pneg %p141
        $region22: #{seq2seq_forward.5} parent=11 // pred_check_branch
          %335 = sbr.rel (%p333) target = $region24
        $region23: #{seq2seq_forward.5} parent=11 // pred_region
          _
        $region24: #{seq2seq_forward.5} parent=11 // pred_fallthru
          _
        // Predicated region
        $region25: #{seq2seq_forward.5} parent=11 // pred_check
          %p336 = pneg %p162
        $region26: #{seq2seq_forward.5} parent=11 // pred_check_branch
          %338 = sbr.rel (%p336) target = $region28
        $region27: #{seq2seq_forward.5} parent=11 // pred_region
          _
        $region28: #{seq2seq_forward.5} parent=11 // pred_fallthru
          _
        // Predicated region
        $region29: #{seq2seq_forward.5} parent=11 // pred_check
          %p339 = pneg %p183
        $region30: #{seq2seq_forward.5} parent=11 // pred_check_branch
          %341 = sbr.rel (%p339) target = $region32
        $region31: #{seq2seq_forward.5} parent=11 // pred_region
          _
        $region32: #{seq2seq_forward.5} parent=11 // pred_fallthru
          _
        // Predicated region
        $region33: #{seq2seq_forward.5} parent=11 // pred_check
          %p342 = pneg %p204
        $region34: #{seq2seq_forward.5} parent=11 // pred_check_branch
          %344 = sbr.rel (%p342) target = $region36
        $region35: #{seq2seq_forward.5} parent=11 // pred_region
          _
        $region36: #{seq2seq_forward.5} parent=11 // pred_fallthru
          _
        // Predicated region
        $region37: #{seq2seq_forward.5} parent=11 // pred_check
          %p345 = pneg %p225
        $region38: #{seq2seq_forward.5} parent=11 // pred_check_branch
          %347 = sbr.rel (%p345) target = $region40
        $region39: #{seq2seq_forward.5} parent=11 // pred_region
          _
        $region40: #{seq2seq_forward.5} parent=11 // pred_fallthru
          _
        // Predicated region
        $region41: #{seq2seq_forward.5} parent=11 // pred_check
          %p348 = pneg %p246
        $region42: #{seq2seq_forward.5} parent=11 // pred_check_branch
          %350 = sbr.rel (%p348) target = $region44
        $region43: #{seq2seq_forward.5} parent=11 // pred_region
          _
        $region44: #{seq2seq_forward.5} parent=11 // pred_fallthru
          _
      $region12: #{seq2seq_forward.5} parent=5 // pred_fallthru
        _
      %p351 = scmp.lt.s32.totalorder %s26, 2
      // Predicated region
      $region45: #{seq2seq_forward.5} parent=5 // pred_check
        %p352 = pneg %p351
      $region46: #{seq2seq_forward.5} parent=5 // pred_check_branch
        %354 = sbr.rel (%p352) target = $region48
      $region47: #{seq2seq_forward.5} parent=5 // pred_region
        // Predicated region
        $region49: #{seq2seq_forward.5} parent=47 // pred_check
          %p355 = pneg %p88
        $region50: #{seq2seq_forward.5} parent=47 // pred_check_branch
          %357 = sbr.rel (%p355) target = $region52
        $region51: #{seq2seq_forward.5} parent=47 // pred_region
          %p358 = scmp.lt.s32.totalorder %s26, 1
          %s359 = scalar_select %p358, %s26, 1
          %s360 = smul.addr %s359, 4
          %s361 = scalar_lea.vmem %s2, %s360
        $region52: #{seq2seq_forward.5} parent=47 // pred_fallthru
          _
        // Predicated region
        $region53: #{seq2seq_forward.5} parent=47 // pred_check
          %p362 = pneg %p114
        $region54: #{seq2seq_forward.5} parent=47 // pred_check_branch
          %364 = sbr.rel (%p362) target = $region56
        $region55: #{seq2seq_forward.5} parent=47 // pred_region
          %p365 = scmp.lt.s32.totalorder %s26, 1
          %s366 = scalar_select %p365, %s26, 1
          %s367 = smul.addr %s366, 4
          %s368 = scalar_lea.vmem %s3, %s367
        $region56: #{seq2seq_forward.5} parent=47 // pred_fallthru
          _
      $region48: #{seq2seq_forward.5} parent=5 // pred_fallthru
        _
      %p369 = scmp.le.s32.totalorder 1, %s26
      %p370 = scmp.lt.s32.totalorder %s26, 3
      %p371 = pnand %p369, %p370
      %p372 = pneg %p371
      // Predicated region
      $region57: #{seq2seq_forward.5} parent=5 // pred_check
        _
      $region58: #{seq2seq_forward.5} parent=5 // pred_check_branch
        %374 = sbr.rel (%p371) target = $region60
      $region59: #{seq2seq_forward.5} parent=5 // pred_region
        %s375 = ssub.s32 %s26, 1
        // Predicated region
        $region61: #{seq2seq_forward.5} parent=59 // pred_check
          %p376 = pneg %p47
        $region62: #{seq2seq_forward.5} parent=59 // pred_check_branch
          %378 = sbr.rel (%p376) target = $region64
        $region63: #{seq2seq_forward.5} parent=59 // pred_region
          %380 = dma.done [#allocation4], 16
        $region64: #{seq2seq_forward.5} parent=59 // pred_fallthru
          _
        // Predicated region
        $region65: #{seq2seq_forward.5} parent=59 // pred_check
          %p381 = pneg %p68
        $region66: #{seq2seq_forward.5} parent=59 // pred_check_branch
          %383 = sbr.rel (%p381) target = $region68
        $region67: #{seq2seq_forward.5} parent=59 // pred_region
          %385 = dma.done [#allocation6], 16
        $region68: #{seq2seq_forward.5} parent=59 // pred_fallthru
          _
        %386 = sfence
        %p387 = pneg %p47
        %p388 = pneg %p44
        %p389 = pneg %p68
        %p390 = pneg %p65
        %p391 = scmp.lt.s32.totalorder %s31, 1
        %s392 = scalar_select %p391, %s31, 1
        %s393 = smul.addr %s392, 4
        %s394 = scalar_lea.vmem %s2, %s393
        %p395 = pneg %p94
        %p396 = pneg %p91
        %p397 = scmp.lt.s32.totalorder %s31, 1
        %s398 = scalar_select %p397, %s31, 1
        %s399 = smul.addr %s398, 4
        %s400 = scalar_lea.vmem %s3, %s399
        %p401 = pneg %p120
        %p402 = pneg %p117
        %p403 = pneg %p141
        %p404 = pneg %p138
        %p405 = pneg %p162
        %p406 = pneg %p159
        %p407 = pneg %p183
        %p408 = pneg %p180
        %p409 = pneg %p204
        %p410 = pneg %p201
        %p411 = pneg %p225
        %p412 = pneg %p222
        %p413 = pneg %p246
        %p414 = pneg %p243
        %p415 = pneg %p272
        %p416 = pneg %p269
        %s417 = sand.u32 %s259, 1
        %s418 = scalar_lea.sflag [#allocation3], %s417
        %s419 = sand.u32 %s259, 1
        %s420 = smul.addr %s419, 8
        %s421 = scalar_lea.vmem [#allocation7], %s420
        %p422 = pneg %p298
        %p423 = pneg %p295
        %s424 = sand.u32 %s285, 1
        %s425 = scalar_lea.sflag [#allocation9], %s424
        %s426 = sand.u32 %s285, 1
        %s427 = smul.addr %s426, 8
        %s428 = scalar_lea.vmem [#allocation8], %s427
        %p429 = scmp.lt.s32.totalorder %s31, 1
        %s430 = scalar_select %p429, %s31, 1
        %s431 = smul.addr %s430, 4
        %s432 = scalar_lea.vmem %s2, %s431
        %p433 = scmp.lt.s32.totalorder %s31, 1
        %s434 = scalar_select %p433, %s31, 1
        %s435 = smul.addr %s434, 4
        %s436 = scalar_lea.vmem %s3, %s435
        %s438 = sld [smem:[#allocation2 + %s31]]
        %s439 = sld [smem:[#allocation5 + %s31]]
        %v440 = vld [vmem:[%s432] sm:$0xf]
        %v441 = vld [vmem:[%s436] sm:$0xf]
        %v442 = vld [vmem:[%s4] sm:$0xf]
        %v443 = vld [vmem:[%s4 + $0x4] sm:$0xf]
        %v444 = vld [vmem:[%s4 + $0x8] sm:$0xf]
        %v445 = vld [vmem:[%s4 + $0xc] sm:$0xf]
        %v450 = vunpack.c.l.b16 %v442
        %v451 = vunpack.c.l.b16 %v443
        %v452 = vunpack.c.l.b16 %v444
        %v453 = vunpack.c.l.b16 %v445
        %v454 = vpack.c.b16 %v451, %v450
        %v455 = vpack.c.b16 %v453, %v452
        %vm458 = vcmask 261120
        %v460 = vsel %vm458, %v441, 0
        %462 = vmatpush.bf16.msra.mxu0 0
        %463 = vmatpush.bf16.msra.mxu0 0
        %464 = vmatpush.bf16.msra.mxu0 0
        %465 = vmatpush.bf16.msra.mxu0 0
        %466 = vmatpush.bf16.msra.mxu0 0
        %467 = vmatpush.bf16.msra.mxu0 0
        %468 = vmatpush.bf16.msra.mxu0 %v455
        %469 = vmatpush.bf16.msra.mxu0 %v454
        %470 = vmatmul.bf16.gmra.mxu0 %v460
        %v471 = vpop.f32.mrf.mxu0
        %v472 = vadd.f32 0.0, %v471
        %v473 = vpop.f32.mrf.mxu0
        %474 = vdwg.mxu0
        %v475 = vpack.c.bf16 %v472, %v472
        %v477 = vsel %vm458, %v440, 0
        %v480 = vsel %vm458, %v475, 0
        %482 = vmatpush.bf16.xpose.msra.mxu0 0
        %483 = vmatpush.bf16.xpose.msra.mxu0 0
        %484 = vmatpush.bf16.xpose.msra.mxu0 0
        %485 = vmatpush.bf16.xpose.msra.mxu0 0
        %486 = vmatpush.bf16.xpose.msra.mxu0 0
        %487 = vmatpush.bf16.xpose.msra.mxu0 0
        %488 = vmatpush.bf16.xpose.msra.mxu0 0
        %489 = vmatpush.bf16.xpose.msra.mxu0 %v480
        %490 = vmatmul.bf16.gmra.mxu0 %v477
        %v491 = vpop.f32.mrf.mxu0
        %v492 = vadd.f32 0.0, %v491
        %v493 = vpop.f32.mrf.mxu0
        %494 = vdwg.mxu0
        %v495 = vlaneseq
        %v496 = vand.u32 %v495, 127
        %v497 = vlaneseq
        %v498 = vshrl.u32 %v497, 7
        %v499 = vstv %s438
        %vm500 = vcmp.lt.s32.totalorder %v496, %v499
        %v501 = vstv %s439
        %vm502 = vcmp.lt.s32.totalorder %v498, %v501
        %vm503 = vmand %vm500, %vm502
        %v504 = vsel %vm503, %v492, -1000000.0
        %vm505 = vcmask 64512
        %v506 = vsel %vm505, %v504, -inf
        %507 = vmax.xlane.f32.xlu0 %v506
        %v508 = vpop.xlane.xlu0 %507
        %v509 = vsub.f32 %v504, %v508
        %v510 = vmul.f32 %v509, 1.442695
        %v511 = vpow.pop %v510
        %v512 = vsel %vm505, %v511, 0.0
        %513 = vadd.xlane.f32.xlu0 %v512
        %v514 = vpop.xlane.xlu0 %513
        %v515 = vrcp.pop %v514
        %v516 = vmul.f32 %v514, %v515
        %v517 = vsub.f32 2.0, %v516
        %v518 = vmul.f32 %v515, %v517
        %v519 = vmul.f32 %v511, %v518
        %520 = vst.msk [vmem:[%s428] sm:$0xff] %vm505, %v519
        %v521 = vpack.c.bf16 %v519, %v519
        %v523 = vsel %vm505, %v521, 0
        %vm525 = vcmask 1043456
        %v526 = vsel %vm525, %v441, 0
        %528 = vmatpush.bf16.msra.mxu0 0
        %529 = vmatpush.bf16.msra.mxu0 0
        %530 = vmatpush.bf16.msra.mxu0 0
        %531 = vmatpush.bf16.msra.mxu0 0
        %532 = vmatpush.bf16.msra.mxu0 0
        %533 = vmatpush.bf16.msra.mxu0 0
        %534 = vmatpush.bf16.msra.mxu0 0
        %535 = vmatpush.bf16.msra.mxu0 %v526
        %536 = vmatmul.bf16.gmra.mxu0 %v523
        %v537 = vpop.f32.mrf.mxu0
        %v538 = vadd.f32 0.0, %v537
        %v539 = vpop.f32.mrf.mxu0
        %540 = vdwg.mxu0
        %v541 = vpack.c.bf16 %v538, %v538
        %v542 = vld [vmem:[%s5] sm:$0xf]
        %v543 = vld [vmem:[%s5 + $0x4] sm:$0xf]
        %v544 = vld [vmem:[%s5 + $0x8] sm:$0xf]
        %v545 = vld [vmem:[%s5 + $0xc] sm:$0xf]
        %v546 = vld [vmem:[%s6] sm:$0xf]
        %v547 = vld [vmem:[%s6 + $0x4] sm:$0xf]
        %v548 = vld [vmem:[%s6 + $0x8] sm:$0xf]
        %v549 = vld [vmem:[%s6 + $0xc] sm:$0xf]
        %v554 = vunpack.c.l.b16 %v546
        %v555 = vunpack.c.l.b16 %v547
        %v556 = vunpack.c.l.b16 %v548
        %v557 = vunpack.c.l.b16 %v549
        %v558 = vpack.c.b16 %v555, %v554
        %v559 = vpack.c.b16 %v557, %v556
        %562 = vmatpush.bf16.msra.mxu0 0
        %563 = vmatpush.bf16.msra.mxu0 0
        %564 = vmatpush.bf16.msra.mxu0 0
        %565 = vmatpush.bf16.msra.mxu0 0
        %566 = vmatpush.bf16.msra.mxu0 0
        %567 = vmatpush.bf16.msra.mxu0 0
        %568 = vmatpush.bf16.msra.mxu0 %v559
        %569 = vmatpush.bf16.msra.mxu0 %v558
        %570 = vmatmul.bf16.gmra.mxu0 %v477
        %v571 = vpop.f32.mrf.mxu0
        %v572 = vadd.f32 0.0, %v571
        %v573 = vpop.f32.mrf.mxu0
        %574 = vdwg.mxu0
        %v579 = vunpack.c.l.b16 %v542
        %v580 = vunpack.c.l.b16 %v543
        %v581 = vunpack.c.l.b16 %v544
        %v582 = vunpack.c.l.b16 %v545
        %v583 = vpack.c.b16 %v580, %v579
        %v584 = vpack.c.b16 %v582, %v581
        %v588 = vsel %vm458, %v541, 0
        %590 = vmatpush.bf16.msra.mxu0 0
        %591 = vmatpush.bf16.msra.mxu0 0
        %592 = vmatpush.bf16.msra.mxu0 0
        %593 = vmatpush.bf16.msra.mxu0 0
        %594 = vmatpush.bf16.msra.mxu0 0
        %595 = vmatpush.bf16.msra.mxu0 0
        %596 = vmatpush.bf16.msra.mxu0 %v584
        %597 = vmatpush.bf16.msra.mxu0 %v583
        %598 = vmatmul.bf16.gmra.mxu0 %v588
        %v599 = vpop.f32.mrf.mxu0
        %v600 = vadd.f32 %v572, %v599
        %v601 = vpop.f32.mrf.mxu0
        %602 = vdwg.mxu0
        %v603 = vld [vmem:[%s7] sm:$0x1]
        %v605 = vperm.slane %v603, 0
        %v607 = vadd.f32 %v600, %v605
        %v608 = vtanh.pop %v607
        %v609 = vpack.c.bf16 %v608, %v608
        %v610 = vld [vmem:[%s8] sm:$0xf]
        %v611 = vld [vmem:[%s8 + $0x4] sm:$0xf]
        %v612 = vld [vmem:[%s8 + $0x8] sm:$0xf]
        %v613 = vld [vmem:[%s8 + $0xc] sm:$0xf]
        %v614 = vld [vmem:[%s9] sm:$0x1]
        %v616 = vperm.slane %v614, 0
        %v622 = vunpack.c.l.b16 %v610
        %v623 = vunpack.c.l.b16 %v611
        %v624 = vunpack.c.l.b16 %v612
        %v625 = vunpack.c.l.b16 %v613
        %v626 = vpack.c.b16 %v623, %v622
        %v627 = vpack.c.b16 %v625, %v624
        %v631 = vsel %vm458, %v609, 0
        %633 = vmatpush.bf16.msra.mxu0 0
        %634 = vmatpush.bf16.msra.mxu0 0
        %635 = vmatpush.bf16.msra.mxu0 0
        %636 = vmatpush.bf16.msra.mxu0 0
        %637 = vmatpush.bf16.msra.mxu0 0
        %638 = vmatpush.bf16.msra.mxu0 0
        %639 = vmatpush.bf16.msra.mxu0 %v627
        %640 = vmatpush.bf16.msra.mxu0 %v626
        %641 = vmatmul.bf16.gmra.mxu0 %v631
        %v642 = vpop.f32.mrf.mxu0
        %v643 = vadd.f32 %v616, %v642
        %v644 = vpop.f32.mrf.mxu0
        %645 = vdwg.mxu0
        %646 = vmax.xlane.f32.xlu0 %v643
        %v647 = vpop.xlane.xlu0 %646
        %v648 = vsub.f32 %v643, %v647
        %v649 = vmul.f32 %v648, 1.442695
        %v650 = vpow.pop %v649
        %651 = vadd.xlane.f32.xlu0 %v650
        %v652 = vpop.xlane.xlu0 %651
        %v653 = vlog2.pop %v652
        %v654 = vmul.f32 %v653, 0.6931472
        %v655 = vadd.f32 %v654, %v647
        %v656 = vsub.f32 %v643, %v655
        %657 = vst [vmem:[%s421] sm:$0xff] %v656
        %s658 = sand.u32 %s259, 1
        %s659 = scalar_lea.sflag [#allocation3], %s658
        %s660 = sand.u32 %s259, 1
        %s661 = smul.addr %s660, 8
        %s662 = scalar_lea.vmem [#allocation7], %s661
        %s663 = sand.u32 %s285, 1
        %s664 = scalar_lea.sflag [#allocation9], %s663
        %s665 = sand.u32 %s285, 1
        %s666 = smul.addr %s665, 8
        %s667 = scalar_lea.vmem [#allocation8], %s666
        // Predicated region
        $region69: #{seq2seq_forward.5} parent=59 // pred_check
          %p668 = pneg %p269
        $region70: #{seq2seq_forward.5} parent=59 // pred_check_branch
          %670 = sbr.rel (%p668) target = $region72
        $region71: #{seq2seq_forward.5} parent=59 // pred_region
          %672 = vsyncadd %s659, 0
          %s673 = smul.addr %s31, 8
          %s674 = scalar_lea.hbm %s10, %s673
          %s676 = sshll.u32 %s662, 4
          %s677 = int_to_ptr.vmem [resolvable:$true] %s676
          %s678 = sshll.u32 %s674, 4
          %s679 = int_to_ptr.hbm [resolvable:$true] %s678
          %681 = dma.vmem_to_hbm [thread:$0]  %s677, 128, %s679, %s659
        $region72: #{seq2seq_forward.5} parent=59 // pred_fallthru
          _
        // Predicated region
        $region73: #{seq2seq_forward.5} parent=59 // pred_check
          %p682 = pneg %p295
        $region74: #{seq2seq_forward.5} parent=59 // pred_check_branch
          %684 = sbr.rel (%p682) target = $region76
        $region75: #{seq2seq_forward.5} parent=59 // pred_region
          %686 = vsyncadd %s664, 0
          %s687 = smul.addr %s31, 8
          %s688 = scalar_lea.hbm %s11, %s687
          %s690 = sshll.u32 %s667, 4
          %s691 = int_to_ptr.vmem [resolvable:$true] %s690
          %s692 = sshll.u32 %s688, 4
          %s693 = int_to_ptr.hbm [resolvable:$true] %s692
          %695 = dma.vmem_to_hbm [thread:$0]  %s691, 128, %s693, %s664
        $region76: #{seq2seq_forward.5} parent=59 // pred_fallthru
          _
      $region60: #{seq2seq_forward.5} parent=5 // pred_fallthru
        _
      %p696 = scmp.le.s32.totalorder 2, %s26
      // Predicated region
      $region77: #{seq2seq_forward.5} parent=5 // pred_check
        %p697 = pneg %p696
      $region78: #{seq2seq_forward.5} parent=5 // pred_check_branch
        %699 = sbr.rel (%p697) target = $region80
      $region79: #{seq2seq_forward.5} parent=5 // pred_region
        %s700 = ssub.s32 %s26, 2
        // Predicated region
        $region81: #{seq2seq_forward.5} parent=79 // pred_check
          %p701 = pneg %p275
        $region82: #{seq2seq_forward.5} parent=79 // pred_check_branch
          %703 = sbr.rel (%p701) target = $region84
        $region83: #{seq2seq_forward.5} parent=79 // pred_region
          %s704 = sand.u32 %s260, 1
          %s705 = scalar_lea.sflag [#allocation3], %s704
          %s706 = sand.u32 %s260, 1
          %s707 = smul.addr %s706, 8
          %s708 = scalar_lea.vmem [#allocation7], %s707
          %710 = dma.done %s705, 128
        $region84: #{seq2seq_forward.5} parent=79 // pred_fallthru
          _
        // Predicated region
        $region85: #{seq2seq_forward.5} parent=79 // pred_check
          %p711 = pneg %p301
        $region86: #{seq2seq_forward.5} parent=79 // pred_check_branch
          %713 = sbr.rel (%p711) target = $region88
        $region87: #{seq2seq_forward.5} parent=79 // pred_region
          %s714 = sand.u32 %s286, 1
          %s715 = scalar_lea.sflag [#allocation9], %s714
          %s716 = sand.u32 %s286, 1
          %s717 = smul.addr %s716, 8
          %s718 = scalar_lea.vmem [#allocation8], %s717
          %720 = dma.done %s715, 128
        $region88: #{seq2seq_forward.5} parent=79 // pred_fallthru
          _
      $region80: #{seq2seq_forward.5} parent=5 // pred_fallthru
        _
    $region6: #{seq2seq_forward.5} parent=1 // loop_footer
      %s30 = sadd.s32 1, %s26
    $region7: #{seq2seq_forward.5} parent=1 // loop_footer_branch
      %25 = sbr.rel target = $region3
    $region8: #{seq2seq_forward.5} parent=1 // loop_exit
      _
    %721 = vsyncpa [#allocation3], 1
    %s722 = scalar_lea.sflag [#allocation3], 1
    %723 = vsyncpa %s722, 1
    %724 = vsyncpa [#allocation9], 1
    %s725 = scalar_lea.sflag [#allocation9], 1
    %726 = vsyncpa %s725, 1
    %727 = vsyncpa [#allocation4], 1
    %s728 = scalar_lea.sflag [#allocation4], 1
    %729 = vsyncpa %s728, 1
    %730 = vsyncpa [#allocation6], 1

// kernel: seq2seq_forward.4
$region0: #{seq2seq_forward.4}
  #allocation0 [shape = 'u32[]', space=smem, size = 0x4, offset = 0x4, fixed_abs, tag = 'smem constant byte address 0x4 - core index']
  #allocation1 [shape = 'u32[72,128]{1,0:T(1,128)}', space=vmem, size = 0x9000, scoped, tag = 'internal scratch']
  #allocation2 [shape = 'f32[8,32]{1,0:T(8,128)}', space=vmem, size = 0x1000, scoped, tag = 'scratch operand']
  #allocation3 [shape = 'f32[8,8,32]{2,1,0:T(8,128)}', space=vmem, size = 0x8000, scoped, tag = 'scratch operand']
  #allocation4 [shape = 'f32[8,8,32]{2,1,0:T(8,128)}', space=vmem, size = 0x8000, scoped, tag = 'scratch operand']
  #allocation5 [shape = 'f32[8,8,32]{2,1,0:T(8,128)}', space=vmem, size = 0x8000, scoped, tag = 'scratch operand']
  #allocation6 [shape = 's32[1]{0:T(128)S(6)}', space=smem, size = 0x200, scoped, tag = 'scoped memory for seq2seq_forward.4']
  %s0 = inlined_call_operand.<no memory space> [shape: s32[1], index: 0, kind: input, shape index: {}]
  %s1 = inlined_call_operand.vmem [shape: bf16[1,8,8,16], index: 1, kind: input, shape index: {}]
  %s2 = inlined_call_operand.vmem [shape: f32[1,8,32], index: 2, kind: input, shape index: {}]
  %s3 = inlined_call_operand.vmem [shape: bf16[1,3,16,32], index: 3, kind: input, shape index: {}]
  %s4 = inlined_call_operand.vmem [shape: bf16[1,3,32,32], index: 4, kind: input, shape index: {}]
  %s5 = inlined_call_operand.vmem [shape: f32[1,3,1,32], index: 5, kind: input, shape index: {}]
  %s6 = inlined_call_operand.vmem [shape: f32[1,1,32], index: 6, kind: input, shape index: {}]
  %s7 = inlined_call_operand.vmem [shape: s32[1,8,1], index: 7, kind: input, shape index: {}]
  %s8 = inlined_call_operand.vmem [shape: f32[1,8,8,32], index: 8, kind: output, shape index: {0}]
  %s9 = inlined_call_operand.hbm [shape: f32[1,8,32], index: 9, kind: output, shape index: {1}]
  %10 = xla_tuple %s8, %s9
  %s11 = sld [smem:[#allocation0]]
  $region57: #{seq2seq_forward.4} parent=0
    _
  %s13 = ssub.s32 1, %s11
  %s14 = scalar_select 0, %s13, %s11
  %15 = sst [smem:[#allocation6]] %s0
  $region1: #{seq2seq_forward.4} parent=0
    #allocation7 [shape = 'u8[4096]{0}', space=vmem, size = 0x1000, scoped, tag = 'output window, operand 1, single buffered']
    #allocation8 [shape = 's32[1]{0}', space=sflag, size = 0x4, scoped, tag = 'scoped memory for seq2seq_forward.4']
    %16 = vsyncpa [#allocation8], 0
    // Predicated region
    $region2: #{seq2seq_forward.4} parent=1 // pred_check
      _
    $region3: #{seq2seq_forward.4} parent=1 // pred_check_branch
      %18 = sbr.rel (0) target = $region5
    $region4: #{seq2seq_forward.4} parent=1 // pred_region
      _
    $region5: #{seq2seq_forward.4} parent=1 // pred_fallthru
      _
    // Predicated region
    $region6: #{seq2seq_forward.4} parent=1 // pred_check
      _
    $region7: #{seq2seq_forward.4} parent=1 // pred_check_branch
      %20 = sbr.rel (0) target = $region9
    $region8: #{seq2seq_forward.4} parent=1 // pred_region
      _
    $region9: #{seq2seq_forward.4} parent=1 // pred_fallthru
      _
    // Predicated region
    $region10: #{seq2seq_forward.4} parent=1 // pred_check
      _
    $region11: #{seq2seq_forward.4} parent=1 // pred_check_branch
      %22 = sbr.rel (0) target = $region13
    $region12: #{seq2seq_forward.4} parent=1 // pred_region
      _
    $region13: #{seq2seq_forward.4} parent=1 // pred_fallthru
      _
    // Predicated region
    $region14: #{seq2seq_forward.4} parent=1 // pred_check
      _
    $region15: #{seq2seq_forward.4} parent=1 // pred_check_branch
      %24 = sbr.rel (0) target = $region17
    $region16: #{seq2seq_forward.4} parent=1 // pred_region
      _
    $region17: #{seq2seq_forward.4} parent=1 // pred_fallthru
      _
    // Predicated region
    $region18: #{seq2seq_forward.4} parent=1 // pred_check
      _
    $region19: #{seq2seq_forward.4} parent=1 // pred_check_branch
      %26 = sbr.rel (0) target = $region21
    $region20: #{seq2seq_forward.4} parent=1 // pred_region
      _
    $region21: #{seq2seq_forward.4} parent=1 // pred_fallthru
      _
    // Predicated region
    $region22: #{seq2seq_forward.4} parent=1 // pred_check
      _
    $region23: #{seq2seq_forward.4} parent=1 // pred_check_branch
      %28 = sbr.rel (0) target = $region25
    $region24: #{seq2seq_forward.4} parent=1 // pred_region
      _
    $region25: #{seq2seq_forward.4} parent=1 // pred_fallthru
      _
    // Predicated region
    $region26: #{seq2seq_forward.4} parent=1 // pred_check
      _
    $region27: #{seq2seq_forward.4} parent=1 // pred_check_branch
      %30 = sbr.rel (0) target = $region29
    $region28: #{seq2seq_forward.4} parent=1 // pred_region
      _
    $region29: #{seq2seq_forward.4} parent=1 // pred_fallthru
      _
    // Predicated region
    $region30: #{seq2seq_forward.4} parent=1 // pred_check
      _
    $region31: #{seq2seq_forward.4} parent=1 // pred_check_branch
      %32 = sbr.rel (0) target = $region33
    $region32: #{seq2seq_forward.4} parent=1 // pred_region
      _
    $region33: #{seq2seq_forward.4} parent=1 // pred_fallthru
      _
    %v34 = vld [vmem:[%s1] sm:$0xf]
    %v35 = vld [vmem:[%s1 + $0x4] sm:$0xf]
    %v36 = vld [vmem:[%s1 + $0x8] sm:$0xf]
    %v37 = vld [vmem:[%s1 + $0xc] sm:$0xf]
    %v38 = vld [vmem:[%s1 + $0x10] sm:$0xf]
    %v39 = vld [vmem:[%s1 + $0x14] sm:$0xf]
    %v40 = vld [vmem:[%s1 + $0x18] sm:$0xf]
    %v41 = vld [vmem:[%s1 + $0x1c] sm:$0xf]
    %v42 = vld [vmem:[%s5] sm:$0x1]
    %v43 = vld [vmem:[%s5 + $0x1] sm:$0x1]
    %v44 = vld [vmem:[%s5 + $0x2] sm:$0x1]
    %v45 = vld [vmem:[%s3] sm:$0xf]
    %v46 = vld [vmem:[%s3 + $0x4] sm:$0xf]
    %v48 = vperm.slane %v42, 0
    %v58 = vunpack.c.l.b16 %v34
    %v59 = vunpack.c.l.b16 %v35
    %v60 = vunpack.c.l.b16 %v36
    %v61 = vunpack.c.l.b16 %v37
    %v62 = vunpack.c.l.b16 %v38
    %v63 = vunpack.c.l.b16 %v39
    %v64 = vunpack.c.l.b16 %v40
    %v65 = vunpack.c.l.b16 %v41
    %v66 = vpack.c.b16 %v59, %v58
    %v67 = vpack.c.b16 %v61, %v60
    %v68 = vpack.c.b16 %v63, %v62
    %v69 = vpack.c.b16 %v65, %v64
    %v72 = vunpack.c.l.b16 %v45
    %v73 = vunpack.c.l.b16 %v46
    %v74 = vpack.c.b16 %v73, %v72
    %vm76 = vcmask 130048
    %v78 = vsel %vm76, %v66, 0
    %v81 = vsel %vm76, %v67, 0
    %v84 = vsel %vm76, %v68, 0
    %v87 = vsel %vm76, %v69, 0
    %89 = vmatpush.bf16.msra.mxu0 0
    %90 = vmatpush.bf16.msra.mxu0 0
    %91 = vmatpush.bf16.msra.mxu0 0
    %92 = vmatpush.bf16.msra.mxu0 0
    %93 = vmatpush.bf16.msra.mxu0 0
    %94 = vmatpush.bf16.msra.mxu0 0
    %95 = vmatpush.bf16.msra.mxu0 0
    %96 = vmatpush.bf16.msra.mxu0 %v74
    %97 = vmatmul.bf16.gmra.mxu0 %v78
    %v98 = vpop.f32.mrf.mxu0
    %v99 = vadd.f32 %v48, %v98
    %v100 = vpop.f32.mrf.mxu0
    %v101 = vadd.f32 %v48, %v100
    %102 = vmatmul.bf16.gmra.mxu0 %v81
    %v103 = vpop.f32.mrf.mxu0
    %v104 = vadd.f32 %v48, %v103
    %v105 = vpop.f32.mrf.mxu0
    %v106 = vadd.f32 %v48, %v105
    %107 = vmatmul.bf16.gmra.mxu0 %v84
    %v108 = vpop.f32.mrf.mxu0
    %v109 = vadd.f32 %v48, %v108
    %v110 = vpop.f32.mrf.mxu0
    %v111 = vadd.f32 %v48, %v110
    %112 = vmatmul.bf16.gmra.mxu0 %v87
    %v113 = vpop.f32.mrf.mxu0
    %v114 = vadd.f32 %v48, %v113
    %v115 = vpop.f32.mrf.mxu0
    %v116 = vadd.f32 %v48, %v115
    %117 = vdwg.mxu0
    %vm118 = vcmask 261120
    %119 = vst.msk [vmem:[#allocation3] sm:$0xff] %vm118, %v99
    %120 = vst.msk [vmem:[#allocation3 + $0x8] sm:$0xff] %vm118, %v101
    %121 = vst.msk [vmem:[#allocation3 + $0x10] sm:$0xff] %vm118, %v104
    %122 = vst.msk [vmem:[#allocation3 + $0x18] sm:$0xff] %vm118, %v106
    %123 = vst.msk [vmem:[#allocation3 + $0x20] sm:$0xff] %vm118, %v109
    %124 = vst.msk [vmem:[#allocation3 + $0x28] sm:$0xff] %vm118, %v111
    %125 = vst.msk [vmem:[#allocation3 + $0x30] sm:$0xff] %vm118, %v114
    %126 = vst.msk [vmem:[#allocation3 + $0x38] sm:$0xff] %vm118, %v116
    %s127 = scalar_lea.vmem %s3, 8
    %v128 = vld [vmem:[%s127] sm:$0xf]
    %v129 = vld [vmem:[%s127 + $0x4] sm:$0xf]
    %v131 = vperm.slane %v43, 0
    %v135 = vunpack.c.l.b16 %v128
    %v136 = vunpack.c.l.b16 %v129
    %v137 = vpack.c.b16 %v136, %v135
    %139 = vmatpush.bf16.msra.mxu0 0
    %140 = vmatpush.bf16.msra.mxu0 0
    %141 = vmatpush.bf16.msra.mxu0 0
    %142 = vmatpush.bf16.msra.mxu0 0
    %143 = vmatpush.bf16.msra.mxu0 0
    %144 = vmatpush.bf16.msra.mxu0 0
    %145 = vmatpush.bf16.msra.mxu0 0
    %146 = vmatpush.bf16.msra.mxu0 %v137
    %147 = vmatmul.bf16.gmra.mxu0 %v78
    %v148 = vpop.f32.mrf.mxu0
    %v149 = vadd.f32 %v131, %v148
    %v150 = vpop.f32.mrf.mxu0
    %v151 = vadd.f32 %v131, %v150
    %152 = vmatmul.bf16.gmra.mxu0 %v81
    %v153 = vpop.f32.mrf.mxu0
    %v154 = vadd.f32 %v131, %v153
    %v155 = vpop.f32.mrf.mxu0
    %v156 = vadd.f32 %v131, %v155
    %157 = vmatmul.bf16.gmra.mxu0 %v84
    %v158 = vpop.f32.mrf.mxu0
    %v159 = vadd.f32 %v131, %v158
    %v160 = vpop.f32.mrf.mxu0
    %v161 = vadd.f32 %v131, %v160
    %162 = vmatmul.bf16.gmra.mxu0 %v87
    %v163 = vpop.f32.mrf.mxu0
    %v164 = vadd.f32 %v131, %v163
    %v165 = vpop.f32.mrf.mxu0
    %v166 = vadd.f32 %v131, %v165
    %167 = vdwg.mxu0
    %168 = vst.msk [vmem:[#allocation4] sm:$0xff] %vm118, %v149
    %169 = vst.msk [vmem:[#allocation4 + $0x8] sm:$0xff] %vm118, %v151
    %170 = vst.msk [vmem:[#allocation4 + $0x10] sm:$0xff] %vm118, %v154
    %171 = vst.msk [vmem:[#allocation4 + $0x18] sm:$0xff] %vm118, %v156
    %172 = vst.msk [vmem:[#allocation4 + $0x20] sm:$0xff] %vm118, %v159
    %173 = vst.msk [vmem:[#allocation4 + $0x28] sm:$0xff] %vm118, %v161
    %174 = vst.msk [vmem:[#allocation4 + $0x30] sm:$0xff] %vm118, %v164
    %175 = vst.msk [vmem:[#allocation4 + $0x38] sm:$0xff] %vm118, %v166
    %s176 = scalar_lea.vmem %s3, 16
    %v177 = vld [vmem:[%s176] sm:$0xf]
    %v178 = vld [vmem:[%s176 + $0x4] sm:$0xf]
    %v180 = vperm.slane %v44, 0
    %v184 = vunpack.c.l.b16 %v177
    %v185 = vunpack.c.l.b16 %v178
    %v186 = vpack.c.b16 %v185, %v184
    %188 = vmatpush.bf16.msra.mxu0 0
    %189 = vmatpush.bf16.msra.mxu0 0
    %190 = vmatpush.bf16.msra.mxu0 0
    %191 = vmatpush.bf16.msra.mxu0 0
    %192 = vmatpush.bf16.msra.mxu0 0
    %193 = vmatpush.bf16.msra.mxu0 0
    %194 = vmatpush.bf16.msra.mxu0 0
    %195 = vmatpush.bf16.msra.mxu0 %v186
    %196 = vmatmul.bf16.gmra.mxu0 %v78
    %v197 = vpop.f32.mrf.mxu0
    %v198 = vadd.f32 %v180, %v197
    %v199 = vpop.f32.mrf.mxu0
    %v200 = vadd.f32 %v180, %v199
    %201 = vmatmul.bf16.gmra.mxu0 %v81
    %v202 = vpop.f32.mrf.mxu0
    %v203 = vadd.f32 %v180, %v202
    %v204 = vpop.f32.mrf.mxu0
    %v205 = vadd.f32 %v180, %v204
    %206 = vmatmul.bf16.gmra.mxu0 %v84
    %v207 = vpop.f32.mrf.mxu0
    %v208 = vadd.f32 %v180, %v207
    %v209 = vpop.f32.mrf.mxu0
    %v210 = vadd.f32 %v180, %v209
    %211 = vmatmul.bf16.gmra.mxu0 %v87
    %v212 = vpop.f32.mrf.mxu0
    %v213 = vadd.f32 %v180, %v212
    %v214 = vpop.f32.mrf.mxu0
    %v215 = vadd.f32 %v180, %v214
    %216 = vdwg.mxu0
    %217 = vst.msk [vmem:[#allocation5] sm:$0xff] %vm118, %v198
    %218 = vst.msk [vmem:[#allocation5 + $0x8] sm:$0xff] %vm118, %v200
    %219 = vst.msk [vmem:[#allocation5 + $0x10] sm:$0xff] %vm118, %v203
    %220 = vst.msk [vmem:[#allocation5 + $0x18] sm:$0xff] %vm118, %v205
    %221 = vst.msk [vmem:[#allocation5 + $0x20] sm:$0xff] %vm118, %v208
    %222 = vst.msk [vmem:[#allocation5 + $0x28] sm:$0xff] %vm118, %v210
    %223 = vst.msk [vmem:[#allocation5 + $0x30] sm:$0xff] %vm118, %v213
    %224 = vst.msk [vmem:[#allocation5 + $0x38] sm:$0xff] %vm118, %v215
    %225 = vst.msk [vmem:[%s8] sm:$0xff] %vm118, 0.0
    %226 = vst.msk [vmem:[%s8 + $0x8] sm:$0xff] %vm118, 0.0
    %227 = vst.msk [vmem:[%s8 + $0x10] sm:$0xff] %vm118, 0.0
    %228 = vst.msk [vmem:[%s8 + $0x18] sm:$0xff] %vm118, 0.0
    %229 = vst.msk [vmem:[%s8 + $0x20] sm:$0xff] %vm118, 0.0
    %230 = vst.msk [vmem:[%s8 + $0x28] sm:$0xff] %vm118, 0.0
    %231 = vst.msk [vmem:[%s8 + $0x30] sm:$0xff] %vm118, 0.0
    %232 = vst.msk [vmem:[%s8 + $0x38] sm:$0xff] %vm118, 0.0
    %v233 = vld [vmem:[%s2] sm:$0xff]
    %234 = vst.msk [vmem:[#allocation2] sm:$0xff] %vm118, %v233
    %v235 = vld [vmem:[%s4] sm:$0xf]
    %v236 = vld [vmem:[%s4 + $0x4] sm:$0xf]
    %v237 = vld [vmem:[%s4 + $0x8] sm:$0xf]
    %v238 = vld [vmem:[%s4 + $0xc] sm:$0xf]
    %s239 = scalar_lea.vmem %s4, 16
    %v240 = vld [vmem:[%s239] sm:$0xf]
    %v241 = vld [vmem:[%s239 + $0x4] sm:$0xf]
    %v242 = vld [vmem:[%s239 + $0x8] sm:$0xf]
    %v243 = vld [vmem:[%s239 + $0xc] sm:$0xf]
    %s244 = scalar_lea.vmem %s4, 32
    %v245 = vld [vmem:[%s244] sm:$0xf]
    %v246 = vld [vmem:[%s244 + $0x4] sm:$0xf]
    %v247 = vld [vmem:[%s244 + $0x8] sm:$0xf]
    %v248 = vld [vmem:[%s244 + $0xc] sm:$0xf]
    %v249 = vld [vmem:[%s6] sm:$0x1]
    %v250 = vld [vmem:[%s7] sm:$0xff]
    %s251 = sld [smem:[#allocation6]]
    // While loop
    $region34: #{seq2seq_forward.4} parent=1 // loop_pre_header
      _
    $region35: #{seq2seq_forward.4} parent=1 // loop_header
      %s253 = sphi 0, %s255
      %p254 = scmp.ge.s32.totalorder %s253, %s251
    $region36: #{seq2seq_forward.4} parent=1 // loop_header_branch
      %257 = sbr.rel (%p254) target = $region40
    $region37: #{seq2seq_forward.4} parent=1 // loop_body
      %v258 = vld [vmem:[#allocation2] sm:$0xff]
      %v259 = vpack.c.bf16 %v258, %v258
      %v264 = vunpack.c.l.b16 %v235
      %v265 = vunpack.c.l.b16 %v236
      %v266 = vunpack.c.l.b16 %v237
      %v267 = vunpack.c.l.b16 %v238
      %v268 = vpack.c.b16 %v265, %v264
      %v269 = vpack.c.b16 %v267, %v266
      %v273 = vsel %vm118, %v259, 0
      %275 = vmatpush.bf16.msra.mxu0 0
      %276 = vmatpush.bf16.msra.mxu0 0
      %277 = vmatpush.bf16.msra.mxu0 0
      %278 = vmatpush.bf16.msra.mxu0 0
      %279 = vmatpush.bf16.msra.mxu0 0
      %280 = vmatpush.bf16.msra.mxu0 0
      %281 = vmatpush.bf16.msra.mxu0 %v269
      %282 = vmatpush.bf16.msra.mxu0 %v268
      %283 = vmatmul.bf16.gmra.mxu0 %v273
      %v284 = vpop.f32.mrf.mxu0
      %v285 = vadd.f32 0.0, %v284
      %v286 = vpop.f32.mrf.mxu0
      %287 = vdwg.mxu0
      %v292 = vunpack.c.l.b16 %v240
      %v293 = vunpack.c.l.b16 %v241
      %v294 = vunpack.c.l.b16 %v242
      %v295 = vunpack.c.l.b16 %v243
      %v296 = vpack.c.b16 %v293, %v292
      %v297 = vpack.c.b16 %v295, %v294
      %300 = vmatpush.bf16.msra.mxu0 0
      %301 = vmatpush.bf16.msra.mxu0 0
      %302 = vmatpush.bf16.msra.mxu0 0
      %303 = vmatpush.bf16.msra.mxu0 0
      %304 = vmatpush.bf16.msra.mxu0 0
      %305 = vmatpush.bf16.msra.mxu0 0
      %306 = vmatpush.bf16.msra.mxu0 %v297
      %307 = vmatpush.bf16.msra.mxu0 %v296
      %308 = vmatmul.bf16.gmra.mxu0 %v273
      %v309 = vpop.f32.mrf.mxu0
      %v310 = vadd.f32 0.0, %v309
      %v311 = vpop.f32.mrf.mxu0
      %312 = vdwg.mxu0
      %v314 = vperm.slane %v249, 0
      %v320 = vunpack.c.l.b16 %v245
      %v321 = vunpack.c.l.b16 %v246
      %v322 = vunpack.c.l.b16 %v247
      %v323 = vunpack.c.l.b16 %v248
      %v324 = vpack.c.b16 %v321, %v320
      %v325 = vpack.c.b16 %v323, %v322
      %328 = vmatpush.bf16.msra.mxu0 0
      %329 = vmatpush.bf16.msra.mxu0 0
      %330 = vmatpush.bf16.msra.mxu0 0
      %331 = vmatpush.bf16.msra.mxu0 0
      %332 = vmatpush.bf16.msra.mxu0 0
      %333 = vmatpush.bf16.msra.mxu0 0
      %334 = vmatpush.bf16.msra.mxu0 %v325
      %335 = vmatpush.bf16.msra.mxu0 %v324
      %336 = vmatmul.bf16.gmra.mxu0 %v273
      %v337 = vpop.f32.mrf.mxu0
      %v338 = vadd.f32 %v314, %v337
      %v339 = vpop.f32.mrf.mxu0
      %340 = vdwg.mxu0
      %s341 = smul.u32 %s253, 8
      %s342 = scalar_lea.vmem [#allocation3], %s341
      %v343 = vld [vmem:[%s342] sm:$0xff]
      %v344 = vadd.f32 %v343, %v285
      %v345 = vxor.u32 %v344, 2147483648
      %v346 = vmul.f32 %v345, 1.442695
      %v347 = vpow.pop %v346
      %v348 = vadd.f32 %v347, 1.0
      %v349 = vrcp.pop %v348
      %v350 = vmul.f32 %v348, %v349
      %v351 = vsub.f32 1.0, %v350
      %v352 = vmul.f32 %v349, %v351
      %v353 = vadd.f32 %v349, %v352
      %vm354 = vweird.f32 %v348
      %vm355 = vweird.f32 %v349
      %vm356 = vmor %vm354, %vm355
      %v357 = vsel %vm356, %v349, %v353
      %v358 = vand.u32 2147483647, %v348
      %vm359 = vcmp.eq.f32.partialorder %v358, 8.507059e+37
      %v360 = vand.u32 %v348, 2147483648
      %v361 = vor.u32 1.1754944e-38, %v360
      %v362 = vsel %vm359, %v361, %v357
      %v363 = vmul.f32 1.0, %v362
      %s364 = scalar_lea.vmem [#allocation4], %s341
      %v365 = vld [vmem:[%s364] sm:$0xff]
      %v366 = vadd.f32 %v365, %v310
      %v367 = vxor.u32 %v366, 2147483648
      %v368 = vmul.f32 %v367, 1.442695
      %v369 = vpow.pop %v368
      %v370 = vadd.f32 %v369, 1.0
      %v371 = vrcp.pop %v370
      %v372 = vmul.f32 %v370, %v371
      %v373 = vsub.f32 1.0, %v372
      %v374 = vmul.f32 %v371, %v373
      %v375 = vadd.f32 %v371, %v374
      %vm376 = vweird.f32 %v370
      %vm377 = vweird.f32 %v371
      %vm378 = vmor %vm376, %vm377
      %v379 = vsel %vm378, %v371, %v375
      %v380 = vand.u32 2147483647, %v370
      %vm381 = vcmp.eq.f32.partialorder %v380, 8.507059e+37
      %v382 = vand.u32 %v370, 2147483648
      %v383 = vor.u32 1.1754944e-38, %v382
      %v384 = vsel %vm381, %v383, %v379
      %v385 = vmul.f32 1.0, %v384
      %s386 = scalar_lea.vmem [#allocation5], %s341
      %v387 = vld [vmem:[%s386] sm:$0xff]
      %v388 = vmul.f32 %v363, %v338
      %v389 = vadd.f32 %v387, %v388
      %v390 = vtanh.pop %v389
      %v391 = vsub.f32 1.0, %v385
      %v392 = vmul.f32 %v391, %v390
      %v393 = vmul.f32 %v385, %v258
      %v394 = vadd.f32 %v392, %v393
      %v395 = vstv %s253
      %vm396 = vcmp.gt.s32.totalorder %v250, %v395
      %v397 = vsel %vm396, 1, 0
      %398 = vset.pattern.permute.xlu0 0
      %399 = vperm.xlu0 %398, %v397
      %v400 = vpop.permute.xlu0 %399
      %vm401 = vcmp.eq.s32.totalorder %v400, 1
      %v402 = vsel %vm401, %v394, %v258
      %403 = vst.msk [vmem:[#allocation2] sm:$0xff] %vm118, %v402
      %v404 = vsel %vm401, %v394, 0.0
      %s405 = scalar_lea.vmem %s8, %s341
      %406 = vst.msk [vmem:[%s405] sm:$0xff] %vm118, %v404
    $region38: #{seq2seq_forward.4} parent=1 // loop_footer
      %s255 = sadd.s32 %s253, 1
    $region39: #{seq2seq_forward.4} parent=1 // loop_footer_branch
      %252 = sbr.rel target = $region35
    $region40: #{seq2seq_forward.4} parent=1 // loop_exit
      _
    %v407 = vld [vmem:[#allocation2] sm:$0xff]
    %408 = vst.msk [vmem:[#allocation7] sm:$0xff] %vm118, %v407
    // Predicated region
    $region41: #{seq2seq_forward.4} parent=1 // pred_check
      _
    $region42: #{seq2seq_forward.4} parent=1 // pred_check_branch
      %410 = sbr.rel (0) target = $region44
    $region43: #{seq2seq_forward.4} parent=1 // pred_region
      _
    $region44: #{seq2seq_forward.4} parent=1 // pred_fallthru
      _
    // Predicated region
    $region45: #{seq2seq_forward.4} parent=1 // pred_check
      _
    $region46: #{seq2seq_forward.4} parent=1 // pred_check_branch
      %412 = sbr.rel (0) target = $region48
    $region47: #{seq2seq_forward.4} parent=1 // pred_region
      %414 = vsyncadd [#allocation8], 0
      %s416 = sshll.u32 [#allocation7], 4
      %s417 = int_to_ptr.vmem [resolvable:$true] %s416
      %s418 = sshll.u32 %s9, 4
      %s419 = int_to_ptr.hbm [resolvable:$true] %s418
      %421 = dma.vmem_to_hbm [thread:$0]  %s417, 128, %s419, [#allocation8]
    $region48: #{seq2seq_forward.4} parent=1 // pred_fallthru
      _
    // Predicated region
    $region49: #{seq2seq_forward.4} parent=1 // pred_check
      _
    $region50: #{seq2seq_forward.4} parent=1 // pred_check_branch
      %423 = sbr.rel (0) target = $region52
    $region51: #{seq2seq_forward.4} parent=1 // pred_region
      _
    $region52: #{seq2seq_forward.4} parent=1 // pred_fallthru
      _
    // Predicated region
    $region53: #{seq2seq_forward.4} parent=1 // pred_check
      _
    $region54: #{seq2seq_forward.4} parent=1 // pred_check_branch
      %425 = sbr.rel (0) target = $region56
    $region55: #{seq2seq_forward.4} parent=1 // pred_region
      %427 = dma.done [#allocation8], 128
    $region56: #{seq2seq_forward.4} parent=1 // pred_fallthru
      _
    %428 = vsyncpa [#allocation8], 1

</llo_original>
